<compile_context>
chip_gen: v5e
topology: v5e:2x2
jax: 0.10.0
libtpu: 0.0.40
codegen_flags: <defaults>
</compile_context>

<pallas_src>
import math

import numpy as np
import jax
import jax.numpy as jnp
from jax import lax
from jax.experimental import pallas as pl
from jax.experimental.pallas import tpu as pltpu


# (Cin, Cout, K) for the 11 Conv1d layers of the PyTorch nn.Sequential.
LAYERS = (
    (2, 256, 5), (256, 128, 3), (128, 128, 3), (128, 128, 3), (128, 64, 3),
    (64, 64, 3), (64, 64, 3), (64, 32, 3), (32, 32, 3), (32, 32, 3), (32, 2, 3),
)
N_LAYERS = len(LAYERS)
PAD = 2            # max (K-1)//2 across the stack (layer 0 has K=5); >= every per-layer p
LANES = 128        # vreg / MXU lane width; Cin & Cout of all MXU layers are padded to this


def _round_up(n, m):
    return (n + m - 1) // m * m


def _buf_width(li):
    """Channel width of the activation buffer feeding layer li (li >= 1)."""
    return 256 if li == 1 else LANES


# ---------------------------------------------------------------------------
# Fused Pallas kernel: the whole 11-layer decoder in one kernel body.
# ---------------------------------------------------------------------------
def _decoder_kernel(*refs):
    # refs = (x, mask, w0, b0, ..., w10, b10, out, buf256, bufA, bufB)
    #   x     : (R, 128) f32   padded input; only lanes [0, 2) are meaningful
    #   mask  : (R, 1)   f32   1.0 on valid rows, 0.0 on pad / inter-batch-gap rows
    #   w0/b0 : (5, 2, 256) f32 / (1, 256) f32           (VPU layer)
    #   wi/bi : (K*Cw, 128) bf16 / (1, 128) f32, i >= 1  (im2col MXU layers)
    #   out   : (B, L, 2) f32
    #   buf256: (R, 256) f32 scratch (layer-0 output)
    #   bufA/B: (R, 128) f32 ping/pong scratch (layers 1..9 outputs)
    x_ref, mask_ref = refs[0], refs[1]
    wb = refs[2:2 + 2 * N_LAYERS]
    o_ref = refs[2 + 2 * N_LAYERS]
    buf256 = refs[3 + 2 * N_LAYERS]
    bufs = (refs[4 + 2 * N_LAYERS], refs[5 + 2 * N_LAYERS])

    R = x_ref.shape[0]
    B, L, _ = o_ref.shape
    Lp = L + 2 * PAD

    mask = mask_ref[...]                                   # (R, 1) f32

    def taps_of(x_full, K, p):
        # tap_k[r] = x_full[r + k - p]  (wrap is harmless: wrapped rows are only
        # ever produced for pad/gap rows, which are masked to zero before storing,
        # and valid rows never reach across the buffer ends since PAD >= p).
        out = []
        for k in range(K):
            sh = (p - k) % R                               # non-negative static shift
            out.append(x_full if sh == 0 else pltpu.roll(x_full, shift=sh, axis=0))
        return out

    # ---- Layer 0 (Cin=2, K=5): VPU broadcast FMAs, bias folded into acc init.
    w0_ref, b0_ref = wb[0], wb[1]
    cin0, cout0, K0 = LAYERS[0]
    p0 = (K0 - 1) // 2
    x0 = x_ref[...]                                        # (R, 128) f32, aligned full load
    acc = jnp.broadcast_to(b0_ref[...], (R, cout0))        # (R, 256) f32
    for k, xk in enumerate(taps_of(x0, K0, p0)):
        wk = w0_ref[k]                                     # (2, 256) f32
        for c in range(cin0):
            acc = acc + xk[:, c:c + 1] * wk[c:c + 1, :]
    buf256[...] = jnp.maximum(acc, 0.0) * mask             # single dense (R, 256) store

    # ---- Layers 1..10: one im2col MXU matmul per layer (contraction K*Cw).
    src = None
    for li in range(1, N_LAYERS):
        cin, cout, K = LAYERS[li]
        p = (K - 1) // 2
        w_ref = wb[2 * li]                                 # (K*Cw, 128) bf16
        b_ref = wb[2 * li + 1]                             # (1, 128)    f32
        x_full = buf256[...] if li == 1 else bufs[src][...]   # aligned full load (R, Cw)

        # Lane-concat K rolled copies (each Cw is a multiple of 128), cast to bf16 once.
        xcat = jnp.concatenate(taps_of(x_full, K, p), axis=1).astype(jnp.bfloat16)
        acc = jnp.dot(xcat, w_ref[...],
                      preferred_element_type=jnp.float32)  # (R, 128) f32
        y = acc + b_ref[...]                               # f32 epilogue

        if li < N_LAYERS - 1:
            dst = 0 if li == 1 else 1 - src
            # Masked ReLU keeps pad/gap rows (and zero-padded channels) exactly zero,
            # preserving free "same" padding; store is one dense aligned (R, 128) vst.
            bufs[dst][...] = jnp.maximum(y, 0.0) * mask
            src = dst
        else:
            # Final layer (real Cout=2, no ReLU): slice the valid rows / real lanes
            # per batch element straight into the (B, L, 2) output.
            # TODO(synk): 2/128 lane-sparse store — pack lane-dense if L grows.
            for bi in range(B):
                r0 = bi * Lp + PAD
                o_ref[bi] = y[r0:r0 + L, 0:2].astype(o_ref.dtype)


# ---------------------------------------------------------------------------
# Parameters & packing
# ---------------------------------------------------------------------------
def init_params(key):
    """Deterministic init mimicking PyTorch Conv1d default (uniform +/- 1/sqrt(Cin*K)).
    Weights are stored as (K, Cin, Cout) (i.e. torch weight.permute(2, 1, 0))."""
    params = []
    for (cin, cout, k) in LAYERS:
        key, kw, kb = jax.random.split(key, 3)
        bound = 1.0 / math.sqrt(cin * k)
        w = jax.random.uniform(kw, (k, cin, cout), jnp.float32, -bound, bound)
        b = jax.random.uniform(kb, (cout,), jnp.float32, -bound, bound)
        params.append((w, b))
    return params


def _pack_params(params):
    """Layer 0 stays f32 (VPU). Layers 1..10: zero-pad Cin -> buffer width and
    Cout -> 128, flatten taps into the contraction dim, cast to bf16."""
    flat = []
    w0, b0 = params[0]
    flat.append(w0.astype(jnp.float32))                    # (5, 2, 256)
    flat.append(b0.reshape(1, -1).astype(jnp.float32))     # (1, 256)
    for li in range(1, N_LAYERS):
        cin, cout, k = LAYERS[li]
        w, b = params[li]                                  # (K, cin, cout), (cout,)
        cw = _buf_width(li)
        wp = jnp.pad(w, ((0, 0), (0, cw - cin), (0, LANES - cout)))
        wp = wp.reshape(k * cw, LANES).astype(jnp.bfloat16)
        bp = jnp.pad(b, (0, LANES - cout)).reshape(1, LANES).astype(jnp.float32)
        flat.append(wp)
        flat.append(bp)
    return flat


# ---------------------------------------------------------------------------
# Forward pass
# ---------------------------------------------------------------------------
@jax.jit
def conv_decoder_forward(x, params):
    """x: (B, L_in) with L_in even -> (B, L_in//2, 2). Matches ConvDecoder.forward."""
    B, Lin = x.shape
    L = Lin // 2
    Lp = L + 2 * PAD
    R = _round_up(B * Lp, 8)                               # full row span (sublane aligned)

    # Layout plumbing (not compute): build the padded, lane-dense input slab once.
    h = x.astype(jnp.float32).reshape(B, 2, L)             # torch: .float().reshape(B,2,L//2)
    h = jnp.transpose(h, (0, 2, 1))                        # NCL -> NLC (channels on lanes)
    hp = jnp.pad(h, ((0, 0), (PAD, PAD), (0, 0)))          # (B, Lp, 2) with zero pad rows
    hp = hp.reshape(B * Lp, 2)
    hp = jnp.pad(hp, ((0, R - B * Lp), (0, LANES - 2)))    # (R, 128)

    # Row-validity mask (constant): 1 on real output rows, 0 on pad/gap/tail rows.
    mask_np = np.zeros((R, 1), np.float32)
    for bi in range(B):
        r0 = bi * Lp + PAD
        mask_np[r0:r0 + L, 0] = 1.0
    mask = jnp.asarray(mask_np)

    flat = _pack_params(params)

    return pl.pallas_call(
        _decoder_kernel,
        out_shape=jax.ShapeDtypeStruct((B, L, 2), jnp.float32),
        scratch_shapes=[
            pltpu.VMEM((R, 256), jnp.float32),             # layer-0 output
            pltpu.VMEM((R, LANES), jnp.float32),           # ping
            pltpu.VMEM((R, LANES), jnp.float32),           # pong
        ],
    )(hp, mask, *flat)


# ---------------------------------------------------------------------------
# Pure-JAX references for correctness checking.
#   bf16_matmul=True mirrors the kernel's precision choices (layer 0 pure f32 on
#   the VPU; layers 1+ bf16 operands with f32 accumulation).
# ---------------------------------------------------------------------------
def conv_decoder_reference(x, params, *, bf16_matmul=False):
    B, Lin = x.shape
    L = Lin // 2
    h = x.astype(jnp.float32).reshape(B, 2, L).transpose(0, 2, 1)
    n = len(params)
    for i, (w, b) in enumerate(params):
        if bf16_matmul and i > 0:
            hin = h.astype(jnp.bfloat16)
            wi = w.astype(jnp.bfloat16)
        else:
            hin = h
            wi = w
        h = lax.conv_general_dilated(
            hin, wi, window_strides=(1,), padding="SAME",
            dimension_numbers=("NWC", "WIO", "NWC"),
            preferred_element_type=jnp.float32)
        h = h + b
        if i < n - 1:
            h = jnp.maximum(h, 0.0)
    return h


if __name__ == "__main__":
    key = jax.random.PRNGKey(0)
    kp, kx = jax.random.split(key)

    params = init_params(kp)

    B, Lin = 2, 32                      # input (B, 32) -> reshaped to (B, 2, 16)
    x = jax.random.normal(kx, (B, Lin), jnp.float32)

    out = jax.block_until_ready(conv_decoder_forward(x, params))
    assert out.shape == (B, Lin // 2, 2), out.shape

    ref_bf16 = jax.block_until_ready(
        conv_decoder_reference(x, params, bf16_matmul=True))
    ref_f32 = jax.block_until_ready(conv_decoder_reference(x, params))

    # Meaningful check: reference with matching matmul precision.
    assert jnp.allclose(out, ref_bf16, atol=5e-4, rtol=1e-2), (
        float(jnp.max(jnp.abs(out - ref_bf16))))
    # Sanity check against the exact f32 (PyTorch-semantics) reference.
    assert jnp.allclose(out, ref_f32, atol=1e-3, rtol=1e-1), (
        float(jnp.max(jnp.abs(out - ref_f32))))

    print("KERNEL_OK")
</pallas_src>

<mosaic_0001>
module attributes {stable_mosaic.version = 11 : i64} {
  func.func @_decoder_kernel(%arg0: memref<40x128xf32, #tpu.memory_space<vmem>>, %arg1: memref<40x1xf32, #tpu.memory_space<vmem>>, %arg2: memref<5x2x256xf32, #tpu.memory_space<vmem>>, %arg3: memref<1x256xf32, #tpu.memory_space<vmem>>, %arg4: memref<768x128xbf16, #tpu.memory_space<vmem>>, %arg5: memref<1x128xf32, #tpu.memory_space<vmem>>, %arg6: memref<384x128xbf16, #tpu.memory_space<vmem>>, %arg7: memref<1x128xf32, #tpu.memory_space<vmem>>, %arg8: memref<384x128xbf16, #tpu.memory_space<vmem>>, %arg9: memref<1x128xf32, #tpu.memory_space<vmem>>, %arg10: memref<384x128xbf16, #tpu.memory_space<vmem>>, %arg11: memref<1x128xf32, #tpu.memory_space<vmem>>, %arg12: memref<384x128xbf16, #tpu.memory_space<vmem>>, %arg13: memref<1x128xf32, #tpu.memory_space<vmem>>, %arg14: memref<384x128xbf16, #tpu.memory_space<vmem>>, %arg15: memref<1x128xf32, #tpu.memory_space<vmem>>, %arg16: memref<384x128xbf16, #tpu.memory_space<vmem>>, %arg17: memref<1x128xf32, #tpu.memory_space<vmem>>, %arg18: memref<384x128xbf16, #tpu.memory_space<vmem>>, %arg19: memref<1x128xf32, #tpu.memory_space<vmem>>, %arg20: memref<384x128xbf16, #tpu.memory_space<vmem>>, %arg21: memref<1x128xf32, #tpu.memory_space<vmem>>, %arg22: memref<384x128xbf16, #tpu.memory_space<vmem>>, %arg23: memref<1x128xf32, #tpu.memory_space<vmem>>, %arg24: memref<2x16x2xf32, #tpu.memory_space<vmem>>, %arg25: memref<40x256xf32, #tpu.memory_space<vmem>>, %arg26: memref<40x128xf32, #tpu.memory_space<vmem>>, %arg27: memref<40x128xf32, #tpu.memory_space<vmem>>) attributes {dimension_semantics = [], scalar_prefetch = 0 : i64, scratch_operands = 3 : i64, tpu.core_type = #tpu.core_type<tc>} {
    %c0 = arith.constant 0 : index
    %c0_0 = arith.constant 0 : index
    %0 = vector.load %arg1[%c0, %c0_0] : memref<40x1xf32, #tpu.memory_space<vmem>>, vector<40x1xf32>
    %c0_1 = arith.constant 0 : index
    %c0_2 = arith.constant 0 : index
    %1 = vector.load %arg0[%c0_1, %c0_2] : memref<40x128xf32, #tpu.memory_space<vmem>>, vector<40x128xf32>
    %c0_3 = arith.constant 0 : index
    %c0_4 = arith.constant 0 : index
    %2 = vector.load %arg3[%c0_3, %c0_4] : memref<1x256xf32, #tpu.memory_space<vmem>>, vector<1x256xf32>
    %3 = vector.shape_cast %2 : vector<1x256xf32> to vector<1x256xf32>
    %4 = vector.broadcast %3 : vector<1x256xf32> to vector<40x256xf32>
    %c2_i32 = arith.constant 2 : i32
    %5 = tpu.dynamic_rotate %1 by %c2_i32 dim 0 : vector<40x128xf32>, i32 -> vector<40x128xf32>
    %c1_i32 = arith.constant 1 : i32
    %6 = tpu.dynamic_rotate %1 by %c1_i32 dim 0 : vector<40x128xf32>, i32 -> vector<40x128xf32>
    %c39_i32 = arith.constant 39 : i32
    %7 = tpu.dynamic_rotate %1 by %c39_i32 dim 0 : vector<40x128xf32>, i32 -> vector<40x128xf32>
    %c38_i32 = arith.constant 38 : i32
    %8 = tpu.dynamic_rotate %1 by %c38_i32 dim 0 : vector<40x128xf32>, i32 -> vector<40x128xf32>
    %c0_5 = arith.constant 0 : index
    %c0_6 = arith.constant 0 : index
    %c0_7 = arith.constant 0 : index
    %9 = vector.load %arg2[%c0_5, %c0_6, %c0_7] : memref<5x2x256xf32, #tpu.memory_space<vmem>>, vector<1x2x256xf32>
    %10 = vector.shape_cast %9 : vector<1x2x256xf32> to vector<2x256xf32>
    %11 = vector.extract_strided_slice %5 {offsets = [0, 0], sizes = [40, 1], strides = [1, 1]} : vector<40x128xf32> to vector<40x1xf32>
    %12 = vector.extract_strided_slice %10 {offsets = [0, 0], sizes = [1, 256], strides = [1, 1]} : vector<2x256xf32> to vector<1x256xf32>
    %13 = vector.broadcast %11 : vector<40x1xf32> to vector<40x256xf32>
    %14 = vector.broadcast %12 : vector<1x256xf32> to vector<40x256xf32>
    %15 = arith.mulf %13, %14 : vector<40x256xf32>
    %16 = arith.addf %4, %15 : vector<40x256xf32>
    %17 = vector.extract_strided_slice %5 {offsets = [0, 1], sizes = [40, 1], strides = [1, 1]} : vector<40x128xf32> to vector<40x1xf32>
    %18 = vector.extract_strided_slice %10 {offsets = [1, 0], sizes = [1, 256], strides = [1, 1]} : vector<2x256xf32> to vector<1x256xf32>
    %19 = vector.broadcast %17 : vector<40x1xf32> to vector<40x256xf32>
    %20 = vector.broadcast %18 : vector<1x256xf32> to vector<40x256xf32>
    %21 = arith.mulf %19, %20 : vector<40x256xf32>
    %22 = arith.addf %16, %21 : vector<40x256xf32>
    %c1 = arith.constant 1 : index
    %c0_8 = arith.constant 0 : index
    %c0_9 = arith.constant 0 : index
    %23 = vector.load %arg2[%c1, %c0_8, %c0_9] : memref<5x2x256xf32, #tpu.memory_space<vmem>>, vector<1x2x256xf32>
    %24 = vector.shape_cast %23 : vector<1x2x256xf32> to vector<2x256xf32>
    %25 = vector.extract_strided_slice %6 {offsets = [0, 0], sizes = [40, 1], strides = [1, 1]} : vector<40x128xf32> to vector<40x1xf32>
    %26 = vector.extract_strided_slice %24 {offsets = [0, 0], sizes = [1, 256], strides = [1, 1]} : vector<2x256xf32> to vector<1x256xf32>
    %27 = vector.broadcast %25 : vector<40x1xf32> to vector<40x256xf32>
    %28 = vector.broadcast %26 : vector<1x256xf32> to vector<40x256xf32>
    %29 = arith.mulf %27, %28 : vector<40x256xf32>
    %30 = arith.addf %22, %29 : vector<40x256xf32>
    %31 = vector.extract_strided_slice %6 {offsets = [0, 1], sizes = [40, 1], strides = [1, 1]} : vector<40x128xf32> to vector<40x1xf32>
    %32 = vector.extract_strided_slice %24 {offsets = [1, 0], sizes = [1, 256], strides = [1, 1]} : vector<2x256xf32> to vector<1x256xf32>
    %33 = vector.broadcast %31 : vector<40x1xf32> to vector<40x256xf32>
    %34 = vector.broadcast %32 : vector<1x256xf32> to vector<40x256xf32>
    %35 = arith.mulf %33, %34 : vector<40x256xf32>
    %36 = arith.addf %30, %35 : vector<40x256xf32>
    %c2 = arith.constant 2 : index
    %c0_10 = arith.constant 0 : index
    %c0_11 = arith.constant 0 : index
    %37 = vector.load %arg2[%c2, %c0_10, %c0_11] : memref<5x2x256xf32, #tpu.memory_space<vmem>>, vector<1x2x256xf32>
    %38 = vector.shape_cast %37 : vector<1x2x256xf32> to vector<2x256xf32>
    %39 = vector.extract_strided_slice %1 {offsets = [0, 0], sizes = [40, 1], strides = [1, 1]} : vector<40x128xf32> to vector<40x1xf32>
    %40 = vector.extract_strided_slice %38 {offsets = [0, 0], sizes = [1, 256], strides = [1, 1]} : vector<2x256xf32> to vector<1x256xf32>
    %41 = vector.broadcast %39 : vector<40x1xf32> to vector<40x256xf32>
    %42 = vector.broadcast %40 : vector<1x256xf32> to vector<40x256xf32>
    %43 = arith.mulf %41, %42 : vector<40x256xf32>
    %44 = arith.addf %36, %43 : vector<40x256xf32>
    %45 = vector.extract_strided_slice %1 {offsets = [0, 1], sizes = [40, 1], strides = [1, 1]} : vector<40x128xf32> to vector<40x1xf32>
    %46 = vector.extract_strided_slice %38 {offsets = [1, 0], sizes = [1, 256], strides = [1, 1]} : vector<2x256xf32> to vector<1x256xf32>
    %47 = vector.broadcast %45 : vector<40x1xf32> to vector<40x256xf32>
    %48 = vector.broadcast %46 : vector<1x256xf32> to vector<40x256xf32>
    %49 = arith.mulf %47, %48 : vector<40x256xf32>
    %50 = arith.addf %44, %49 : vector<40x256xf32>
    %c3 = arith.constant 3 : index
    %c0_12 = arith.constant 0 : index
    %c0_13 = arith.constant 0 : index
    %51 = vector.load %arg2[%c3, %c0_12, %c0_13] : memref<5x2x256xf32, #tpu.memory_space<vmem>>, vector<1x2x256xf32>
    %52 = vector.shape_cast %51 : vector<1x2x256xf32> to vector<2x256xf32>
    %53 = vector.extract_strided_slice %7 {offsets = [0, 0], sizes = [40, 1], strides = [1, 1]} : vector<40x128xf32> to vector<40x1xf32>
    %54 = vector.extract_strided_slice %52 {offsets = [0, 0], sizes = [1, 256], strides = [1, 1]} : vector<2x256xf32> to vector<1x256xf32>
    %55 = vector.broadcast %53 : vector<40x1xf32> to vector<40x256xf32>
    %56 = vector.broadcast %54 : vector<1x256xf32> to vector<40x256xf32>
    %57 = arith.mulf %55, %56 : vector<40x256xf32>
    %58 = arith.addf %50, %57 : vector<40x256xf32>
    %59 = vector.extract_strided_slice %7 {offsets = [0, 1], sizes = [40, 1], strides = [1, 1]} : vector<40x128xf32> to vector<40x1xf32>
    %60 = vector.extract_strided_slice %52 {offsets = [1, 0], sizes = [1, 256], strides = [1, 1]} : vector<2x256xf32> to vector<1x256xf32>
    %61 = vector.broadcast %59 : vector<40x1xf32> to vector<40x256xf32>
    %62 = vector.broadcast %60 : vector<1x256xf32> to vector<40x256xf32>
    %63 = arith.mulf %61, %62 : vector<40x256xf32>
    %64 = arith.addf %58, %63 : vector<40x256xf32>
    %c4 = arith.constant 4 : index
    %c0_14 = arith.constant 0 : index
    %c0_15 = arith.constant 0 : index
    %65 = vector.load %arg2[%c4, %c0_14, %c0_15] : memref<5x2x256xf32, #tpu.memory_space<vmem>>, vector<1x2x256xf32>
    %66 = vector.shape_cast %65 : vector<1x2x256xf32> to vector<2x256xf32>
    %67 = vector.extract_strided_slice %8 {offsets = [0, 0], sizes = [40, 1], strides = [1, 1]} : vector<40x128xf32> to vector<40x1xf32>
    %68 = vector.extract_strided_slice %66 {offsets = [0, 0], sizes = [1, 256], strides = [1, 1]} : vector<2x256xf32> to vector<1x256xf32>
    %69 = vector.broadcast %67 : vector<40x1xf32> to vector<40x256xf32>
    %70 = vector.broadcast %68 : vector<1x256xf32> to vector<40x256xf32>
    %71 = arith.mulf %69, %70 : vector<40x256xf32>
    %72 = arith.addf %64, %71 : vector<40x256xf32>
    %73 = vector.extract_strided_slice %8 {offsets = [0, 1], sizes = [40, 1], strides = [1, 1]} : vector<40x128xf32> to vector<40x1xf32>
    %74 = vector.extract_strided_slice %66 {offsets = [1, 0], sizes = [1, 256], strides = [1, 1]} : vector<2x256xf32> to vector<1x256xf32>
    %75 = vector.broadcast %73 : vector<40x1xf32> to vector<40x256xf32>
    %76 = vector.broadcast %74 : vector<1x256xf32> to vector<40x256xf32>
    %77 = arith.mulf %75, %76 : vector<40x256xf32>
    %78 = arith.addf %72, %77 : vector<40x256xf32>
    %cst = arith.constant 0.000000e+00 : f32
    %79 = vector.broadcast %cst : f32 to vector<40x256xf32>
    %80 = arith.maximumf %78, %79 : vector<40x256xf32>
    %81 = vector.broadcast %0 : vector<40x1xf32> to vector<40x256xf32>
    %82 = arith.mulf %80, %81 : vector<40x256xf32>
    %c0_16 = arith.constant 0 : index
    %c0_17 = arith.constant 0 : index
    %83 = vector.load %arg25[%c0_16, %c0_17] : memref<40x256xf32, #tpu.memory_space<vmem>>, vector<40x256xf32>
    tpu.vector_store %arg25[%c0_16, %c0_17], %82 {strides = array<i32>} : memref<40x256xf32, #tpu.memory_space<vmem>>, vector<40x256xf32>,
    %c0_18 = arith.constant 0 : index
    %c0_19 = arith.constant 0 : index
    %84 = vector.load %arg25[%c0_18, %c0_19] : memref<40x256xf32, #tpu.memory_space<vmem>>, vector<40x256xf32>
    %c1_i32_20 = arith.constant 1 : i32
    %85 = tpu.dynamic_rotate %84 by %c1_i32_20 dim 0 : vector<40x256xf32>, i32 -> vector<40x256xf32>
    %c39_i32_21 = arith.constant 39 : i32
    %86 = tpu.dynamic_rotate %84 by %c39_i32_21 dim 0 : vector<40x256xf32>, i32 -> vector<40x256xf32>
    %87 = tpu.concatenate %85, %84, %86 in 1 : vector<40x256xf32>, vector<40x256xf32>, vector<40x256xf32> -> vector<40x768xf32>
    %88 = arith.truncf %87 : vector<40x768xf32> to vector<40x768xbf16>
    %c0_22 = arith.constant 0 : index
    %c0_23 = arith.constant 0 : index
    %89 = vector.load %arg4[%c0_22, %c0_23] : memref<768x128xbf16, #tpu.memory_space<vmem>>, vector<768x128xbf16>
    %cst_24 = arith.constant dense<0.000000e+00> : vector<40x128xf32>
    %90 = tpu.matmul %88, %89, %cst_24 {dimension_numbers = #tpu.dot_dimension_numbers<[1], [0], [0], [1], [0, 0, 1, 1], [], []>} : vector<40x768xbf16>, vector<768x128xbf16>, vector<40x128xf32> -> vector<40x128xf32>
    %c0_25 = arith.constant 0 : index
    %c0_26 = arith.constant 0 : index
    %91 = vector.load %arg5[%c0_25, %c0_26] : memref<1x128xf32, #tpu.memory_space<vmem>>, vector<1x128xf32>
    %92 = vector.broadcast %91 : vector<1x128xf32> to vector<40x128xf32>
    %93 = arith.addf %90, %92 : vector<40x128xf32>
    %cst_27 = arith.constant 0.000000e+00 : f32
    %94 = vector.broadcast %cst_27 : f32 to vector<40x128xf32>
    %95 = arith.maximumf %93, %94 : vector<40x128xf32>
    %96 = vector.broadcast %0 : vector<40x1xf32> to vector<40x128xf32>
    %97 = arith.mulf %95, %96 : vector<40x128xf32>
    %c0_28 = arith.constant 0 : index
    %c0_29 = arith.constant 0 : index
    %98 = vector.load %arg26[%c0_28, %c0_29] : memref<40x128xf32, #tpu.memory_space<vmem>>, vector<40x128xf32>
    tpu.vector_store %arg26[%c0_28, %c0_29], %97 {strides = array<i32>} : memref<40x128xf32, #tpu.memory_space<vmem>>, vector<40x128xf32>,
    %c0_30 = arith.constant 0 : index
    %c0_31 = arith.constant 0 : index
    %99 = vector.load %arg26[%c0_30, %c0_31] : memref<40x128xf32, #tpu.memory_space<vmem>>, vector<40x128xf32>
    %c1_i32_32 = arith.constant 1 : i32
    %100 = tpu.dynamic_rotate %99 by %c1_i32_32 dim 0 : vector<40x128xf32>, i32 -> vector<40x128xf32>
    %c39_i32_33 = arith.constant 39 : i32
    %101 = tpu.dynamic_rotate %99 by %c39_i32_33 dim 0 : vector<40x128xf32>, i32 -> vector<40x128xf32>
    %102 = tpu.concatenate %100, %99, %101 in 1 : vector<40x128xf32>, vector<40x128xf32>, vector<40x128xf32> -> vector<40x384xf32>
    %103 = arith.truncf %102 : vector<40x384xf32> to vector<40x384xbf16>
    %c0_34 = arith.constant 0 : index
    %c0_35 = arith.constant 0 : index
    %104 = vector.load %arg6[%c0_34, %c0_35] : memref<384x128xbf16, #tpu.memory_space<vmem>>, vector<384x128xbf16>
    %cst_36 = arith.constant dense<0.000000e+00> : vector<40x128xf32>
    %105 = tpu.matmul %103, %104, %cst_36 {dimension_numbers = #tpu.dot_dimension_numbers<[1], [0], [0], [1], [0, 0, 1, 1], [], []>} : vector<40x384xbf16>, vector<384x128xbf16>, vector<40x128xf32> -> vector<40x128xf32>
    %c0_37 = arith.constant 0 : index
    %c0_38 = arith.constant 0 : index
    %106 = vector.load %arg7[%c0_37, %c0_38] : memref<1x128xf32, #tpu.memory_space<vmem>>, vector<1x128xf32>
    %107 = vector.broadcast %106 : vector<1x128xf32> to vector<40x128xf32>
    %108 = arith.addf %105, %107 : vector<40x128xf32>
    %cst_39 = arith.constant 0.000000e+00 : f32
    %109 = vector.broadcast %cst_39 : f32 to vector<40x128xf32>
    %110 = arith.maximumf %108, %109 : vector<40x128xf32>
    %111 = vector.broadcast %0 : vector<40x1xf32> to vector<40x128xf32>
    %112 = arith.mulf %110, %111 : vector<40x128xf32>
    %c0_40 = arith.constant 0 : index
    %c0_41 = arith.constant 0 : index
    %113 = vector.load %arg27[%c0_40, %c0_41] : memref<40x128xf32, #tpu.memory_space<vmem>>, vector<40x128xf32>
    tpu.vector_store %arg27[%c0_40, %c0_41], %112 {strides = array<i32>} : memref<40x128xf32, #tpu.memory_space<vmem>>, vector<40x128xf32>,
    %c0_42 = arith.constant 0 : index
    %c0_43 = arith.constant 0 : index
    %114 = vector.load %arg27[%c0_42, %c0_43] : memref<40x128xf32, #tpu.memory_space<vmem>>, vector<40x128xf32>
    %c1_i32_44 = arith.constant 1 : i32
    %115 = tpu.dynamic_rotate %114 by %c1_i32_44 dim 0 : vector<40x128xf32>, i32 -> vector<40x128xf32>
    %c39_i32_45 = arith.constant 39 : i32
    %116 = tpu.dynamic_rotate %114 by %c39_i32_45 dim 0 : vector<40x128xf32>, i32 -> vector<40x128xf32>
    %117 = tpu.concatenate %115, %114, %116 in 1 : vector<40x128xf32>, vector<40x128xf32>, vector<40x128xf32> -> vector<40x384xf32>
    %118 = arith.truncf %117 : vector<40x384xf32> to vector<40x384xbf16>
    %c0_46 = arith.constant 0 : index
    %c0_47 = arith.constant 0 : index
    %119 = vector.load %arg8[%c0_46, %c0_47] : memref<384x128xbf16, #tpu.memory_space<vmem>>, vector<384x128xbf16>
    %cst_48 = arith.constant dense<0.000000e+00> : vector<40x128xf32>
    %120 = tpu.matmul %118, %119, %cst_48 {dimension_numbers = #tpu.dot_dimension_numbers<[1], [0], [0], [1], [0, 0, 1, 1], [], []>} : vector<40x384xbf16>, vector<384x128xbf16>, vector<40x128xf32> -> vector<40x128xf32>
    %c0_49 = arith.constant 0 : index
    %c0_50 = arith.constant 0 : index
    %121 = vector.load %arg9[%c0_49, %c0_50] : memref<1x128xf32, #tpu.memory_space<vmem>>, vector<1x128xf32>
    %122 = vector.broadcast %121 : vector<1x128xf32> to vector<40x128xf32>
    %123 = arith.addf %120, %122 : vector<40x128xf32>
    %cst_51 = arith.constant 0.000000e+00 : f32
    %124 = vector.broadcast %cst_51 : f32 to vector<40x128xf32>
    %125 = arith.maximumf %123, %124 : vector<40x128xf32>
    %126 = vector.broadcast %0 : vector<40x1xf32> to vector<40x128xf32>
    %127 = arith.mulf %125, %126 : vector<40x128xf32>
    %c0_52 = arith.constant 0 : index
    %c0_53 = arith.constant 0 : index
    %128 = vector.load %arg26[%c0_52, %c0_53] : memref<40x128xf32, #tpu.memory_space<vmem>>, vector<40x128xf32>
    tpu.vector_store %arg26[%c0_52, %c0_53], %127 {strides = array<i32>} : memref<40x128xf32, #tpu.memory_space<vmem>>, vector<40x128xf32>,
    %c0_54 = arith.constant 0 : index
    %c0_55 = arith.constant 0 : index
    %129 = vector.load %arg26[%c0_54, %c0_55] : memref<40x128xf32, #tpu.memory_space<vmem>>, vector<40x128xf32>
    %c1_i32_56 = arith.constant 1 : i32
    %130 = tpu.dynamic_rotate %129 by %c1_i32_56 dim 0 : vector<40x128xf32>, i32 -> vector<40x128xf32>
    %c39_i32_57 = arith.constant 39 : i32
    %131 = tpu.dynamic_rotate %129 by %c39_i32_57 dim 0 : vector<40x128xf32>, i32 -> vector<40x128xf32>
    %132 = tpu.concatenate %130, %129, %131 in 1 : vector<40x128xf32>, vector<40x128xf32>, vector<40x128xf32> -> vector<40x384xf32>
    %133 = arith.truncf %132 : vector<40x384xf32> to vector<40x384xbf16>
    %c0_58 = arith.constant 0 : index
    %c0_59 = arith.constant 0 : index
    %134 = vector.load %arg10[%c0_58, %c0_59] : memref<384x128xbf16, #tpu.memory_space<vmem>>, vector<384x128xbf16>
    %cst_60 = arith.constant dense<0.000000e+00> : vector<40x128xf32>
    %135 = tpu.matmul %133, %134, %cst_60 {dimension_numbers = #tpu.dot_dimension_numbers<[1], [0], [0], [1], [0, 0, 1, 1], [], []>} : vector<40x384xbf16>, vector<384x128xbf16>, vector<40x128xf32> -> vector<40x128xf32>
    %c0_61 = arith.constant 0 : index
    %c0_62 = arith.constant 0 : index
    %136 = vector.load %arg11[%c0_61, %c0_62] : memref<1x128xf32, #tpu.memory_space<vmem>>, vector<1x128xf32>
    %137 = vector.broadcast %136 : vector<1x128xf32> to vector<40x128xf32>
    %138 = arith.addf %135, %137 : vector<40x128xf32>
    %cst_63 = arith.constant 0.000000e+00 : f32
    %139 = vector.broadcast %cst_63 : f32 to vector<40x128xf32>
    %140 = arith.maximumf %138, %139 : vector<40x128xf32>
    %141 = vector.broadcast %0 : vector<40x1xf32> to vector<40x128xf32>
    %142 = arith.mulf %140, %141 : vector<40x128xf32>
    %c0_64 = arith.constant 0 : index
    %c0_65 = arith.constant 0 : index
    %143 = vector.load %arg27[%c0_64, %c0_65] : memref<40x128xf32, #tpu.memory_space<vmem>>, vector<40x128xf32>
    tpu.vector_store %arg27[%c0_64, %c0_65], %142 {strides = array<i32>} : memref<40x128xf32, #tpu.memory_space<vmem>>, vector<40x128xf32>,
    %c0_66 = arith.constant 0 : index
    %c0_67 = arith.constant 0 : index
    %144 = vector.load %arg27[%c0_66, %c0_67] : memref<40x128xf32, #tpu.memory_space<vmem>>, vector<40x128xf32>
    %c1_i32_68 = arith.constant 1 : i32
    %145 = tpu.dynamic_rotate %144 by %c1_i32_68 dim 0 : vector<40x128xf32>, i32 -> vector<40x128xf32>
    %c39_i32_69 = arith.constant 39 : i32
    %146 = tpu.dynamic_rotate %144 by %c39_i32_69 dim 0 : vector<40x128xf32>, i32 -> vector<40x128xf32>
    %147 = tpu.concatenate %145, %144, %146 in 1 : vector<40x128xf32>, vector<40x128xf32>, vector<40x128xf32> -> vector<40x384xf32>
    %148 = arith.truncf %147 : vector<40x384xf32> to vector<40x384xbf16>
    %c0_70 = arith.constant 0 : index
    %c0_71 = arith.constant 0 : index
    %149 = vector.load %arg12[%c0_70, %c0_71] : memref<384x128xbf16, #tpu.memory_space<vmem>>, vector<384x128xbf16>
    %cst_72 = arith.constant dense<0.000000e+00> : vector<40x128xf32>
    %150 = tpu.matmul %148, %149, %cst_72 {dimension_numbers = #tpu.dot_dimension_numbers<[1], [0], [0], [1], [0, 0, 1, 1], [], []>} : vector<40x384xbf16>, vector<384x128xbf16>, vector<40x128xf32> -> vector<40x128xf32>
    %c0_73 = arith.constant 0 : index
    %c0_74 = arith.constant 0 : index
    %151 = vector.load %arg13[%c0_73, %c0_74] : memref<1x128xf32, #tpu.memory_space<vmem>>, vector<1x128xf32>
    %152 = vector.broadcast %151 : vector<1x128xf32> to vector<40x128xf32>
    %153 = arith.addf %150, %152 : vector<40x128xf32>
    %cst_75 = arith.constant 0.000000e+00 : f32
    %154 = vector.broadcast %cst_75 : f32 to vector<40x128xf32>
    %155 = arith.maximumf %153, %154 : vector<40x128xf32>
    %156 = vector.broadcast %0 : vector<40x1xf32> to vector<40x128xf32>
    %157 = arith.mulf %155, %156 : vector<40x128xf32>
    %c0_76 = arith.constant 0 : index
    %c0_77 = arith.constant 0 : index
    %158 = vector.load %arg26[%c0_76, %c0_77] : memref<40x128xf32, #tpu.memory_space<vmem>>, vector<40x128xf32>
    tpu.vector_store %arg26[%c0_76, %c0_77], %157 {strides = array<i32>} : memref<40x128xf32, #tpu.memory_space<vmem>>, vector<40x128xf32>,
    %c0_78 = arith.constant 0 : index
    %c0_79 = arith.constant 0 : index
    %159 = vector.load %arg26[%c0_78, %c0_79] : memref<40x128xf32, #tpu.memory_space<vmem>>, vector<40x128xf32>
    %c1_i32_80 = arith.constant 1 : i32
    %160 = tpu.dynamic_rotate %159 by %c1_i32_80 dim 0 : vector<40x128xf32>, i32 -> vector<40x128xf32>
    %c39_i32_81 = arith.constant 39 : i32
    %161 = tpu.dynamic_rotate %159 by %c39_i32_81 dim 0 : vector<40x128xf32>, i32 -> vector<40x128xf32>
    %162 = tpu.concatenate %160, %159, %161 in 1 : vector<40x128xf32>, vector<40x128xf32>, vector<40x128xf32> -> vector<40x384xf32>
    %163 = arith.truncf %162 : vector<40x384xf32> to vector<40x384xbf16>
    %c0_82 = arith.constant 0 : index
    %c0_83 = arith.constant 0 : index
    %164 = vector.load %arg14[%c0_82, %c0_83] : memref<384x128xbf16, #tpu.memory_space<vmem>>, vector<384x128xbf16>
    %cst_84 = arith.constant dense<0.000000e+00> : vector<40x128xf32>
    %165 = tpu.matmul %163, %164, %cst_84 {dimension_numbers = #tpu.dot_dimension_numbers<[1], [0], [0], [1], [0, 0, 1, 1], [], []>} : vector<40x384xbf16>, vector<384x128xbf16>, vector<40x128xf32> -> vector<40x128xf32>
    %c0_85 = arith.constant 0 : index
    %c0_86 = arith.constant 0 : index
    %166 = vector.load %arg15[%c0_85, %c0_86] : memref<1x128xf32, #tpu.memory_space<vmem>>, vector<1x128xf32>
    %167 = vector.broadcast %166 : vector<1x128xf32> to vector<40x128xf32>
    %168 = arith.addf %165, %167 : vector<40x128xf32>
    %cst_87 = arith.constant 0.000000e+00 : f32
    %169 = vector.broadcast %cst_87 : f32 to vector<40x128xf32>
    %170 = arith.maximumf %168, %169 : vector<40x128xf32>
    %171 = vector.broadcast %0 : vector<40x1xf32> to vector<40x128xf32>
    %172 = arith.mulf %170, %171 : vector<40x128xf32>
    %c0_88 = arith.constant 0 : index
    %c0_89 = arith.constant 0 : index
    %173 = vector.load %arg27[%c0_88, %c0_89] : memref<40x128xf32, #tpu.memory_space<vmem>>, vector<40x128xf32>
    tpu.vector_store %arg27[%c0_88, %c0_89], %172 {strides = array<i32>} : memref<40x128xf32, #tpu.memory_space<vmem>>, vector<40x128xf32>,
    %c0_90 = arith.constant 0 : index
    %c0_91 = arith.constant 0 : index
    %174 = vector.load %arg27[%c0_90, %c0_91] : memref<40x128xf32, #tpu.memory_space<vmem>>, vector<40x128xf32>
    %c1_i32_92 = arith.constant 1 : i32
    %175 = tpu.dynamic_rotate %174 by %c1_i32_92 dim 0 : vector<40x128xf32>, i32 -> vector<40x128xf32>
    %c39_i32_93 = arith.constant 39 : i32
    %176 = tpu.dynamic_rotate %174 by %c39_i32_93 dim 0 : vector<40x128xf32>, i32 -> vector<40x128xf32>
    %177 = tpu.concatenate %175, %174, %176 in 1 : vector<40x128xf32>, vector<40x128xf32>, vector<40x128xf32> -> vector<40x384xf32>
    %178 = arith.truncf %177 : vector<40x384xf32> to vector<40x384xbf16>
    %c0_94 = arith.constant 0 : index
    %c0_95 = arith.constant 0 : index
    %179 = vector.load %arg16[%c0_94, %c0_95] : memref<384x128xbf16, #tpu.memory_space<vmem>>, vector<384x128xbf16>
    %cst_96 = arith.constant dense<0.000000e+00> : vector<40x128xf32>
    %180 = tpu.matmul %178, %179, %cst_96 {dimension_numbers = #tpu.dot_dimension_numbers<[1], [0], [0], [1], [0, 0, 1, 1], [], []>} : vector<40x384xbf16>, vector<384x128xbf16>, vector<40x128xf32> -> vector<40x128xf32>
    %c0_97 = arith.constant 0 : index
    %c0_98 = arith.constant 0 : index
    %181 = vector.load %arg17[%c0_97, %c0_98] : memref<1x128xf32, #tpu.memory_space<vmem>>, vector<1x128xf32>
    %182 = vector.broadcast %181 : vector<1x128xf32> to vector<40x128xf32>
    %183 = arith.addf %180, %182 : vector<40x128xf32>
    %cst_99 = arith.constant 0.000000e+00 : f32
    %184 = vector.broadcast %cst_99 : f32 to vector<40x128xf32>
    %185 = arith.maximumf %183, %184 : vector<40x128xf32>
    %186 = vector.broadcast %0 : vector<40x1xf32> to vector<40x128xf32>
    %187 = arith.mulf %185, %186 : vector<40x128xf32>
    %c0_100 = arith.constant 0 : index
    %c0_101 = arith.constant 0 : index
    %188 = vector.load %arg26[%c0_100, %c0_101] : memref<40x128xf32, #tpu.memory_space<vmem>>, vector<40x128xf32>
    tpu.vector_store %arg26[%c0_100, %c0_101], %187 {strides = array<i32>} : memref<40x128xf32, #tpu.memory_space<vmem>>, vector<40x128xf32>,
    %c0_102 = arith.constant 0 : index
    %c0_103 = arith.constant 0 : index
    %189 = vector.load %arg26[%c0_102, %c0_103] : memref<40x128xf32, #tpu.memory_space<vmem>>, vector<40x128xf32>
    %c1_i32_104 = arith.constant 1 : i32
    %190 = tpu.dynamic_rotate %189 by %c1_i32_104 dim 0 : vector<40x128xf32>, i32 -> vector<40x128xf32>
    %c39_i32_105 = arith.constant 39 : i32
    %191 = tpu.dynamic_rotate %189 by %c39_i32_105 dim 0 : vector<40x128xf32>, i32 -> vector<40x128xf32>
    %192 = tpu.concatenate %190, %189, %191 in 1 : vector<40x128xf32>, vector<40x128xf32>, vector<40x128xf32> -> vector<40x384xf32>
    %193 = arith.truncf %192 : vector<40x384xf32> to vector<40x384xbf16>
    %c0_106 = arith.constant 0 : index
    %c0_107 = arith.constant 0 : index
    %194 = vector.load %arg18[%c0_106, %c0_107] : memref<384x128xbf16, #tpu.memory_space<vmem>>, vector<384x128xbf16>
    %cst_108 = arith.constant dense<0.000000e+00> : vector<40x128xf32>
    %195 = tpu.matmul %193, %194, %cst_108 {dimension_numbers = #tpu.dot_dimension_numbers<[1], [0], [0], [1], [0, 0, 1, 1], [], []>} : vector<40x384xbf16>, vector<384x128xbf16>, vector<40x128xf32> -> vector<40x128xf32>
    %c0_109 = arith.constant 0 : index
    %c0_110 = arith.constant 0 : index
    %196 = vector.load %arg19[%c0_109, %c0_110] : memref<1x128xf32, #tpu.memory_space<vmem>>, vector<1x128xf32>
    %197 = vector.broadcast %196 : vector<1x128xf32> to vector<40x128xf32>
    %198 = arith.addf %195, %197 : vector<40x128xf32>
    %cst_111 = arith.constant 0.000000e+00 : f32
    %199 = vector.broadcast %cst_111 : f32 to vector<40x128xf32>
    %200 = arith.maximumf %198, %199 : vector<40x128xf32>
    %201 = vector.broadcast %0 : vector<40x1xf32> to vector<40x128xf32>
    %202 = arith.mulf %200, %201 : vector<40x128xf32>
    %c0_112 = arith.constant 0 : index
    %c0_113 = arith.constant 0 : index
    %203 = vector.load %arg27[%c0_112, %c0_113] : memref<40x128xf32, #tpu.memory_space<vmem>>, vector<40x128xf32>
    tpu.vector_store %arg27[%c0_112, %c0_113], %202 {strides = array<i32>} : memref<40x128xf32, #tpu.memory_space<vmem>>, vector<40x128xf32>,
    %c0_114 = arith.constant 0 : index
    %c0_115 = arith.constant 0 : index
    %204 = vector.load %arg27[%c0_114, %c0_115] : memref<40x128xf32, #tpu.memory_space<vmem>>, vector<40x128xf32>
    %c1_i32_116 = arith.constant 1 : i32
    %205 = tpu.dynamic_rotate %204 by %c1_i32_116 dim 0 : vector<40x128xf32>, i32 -> vector<40x128xf32>
    %c39_i32_117 = arith.constant 39 : i32
    %206 = tpu.dynamic_rotate %204 by %c39_i32_117 dim 0 : vector<40x128xf32>, i32 -> vector<40x128xf32>
    %207 = tpu.concatenate %205, %204, %206 in 1 : vector<40x128xf32>, vector<40x128xf32>, vector<40x128xf32> -> vector<40x384xf32>
    %208 = arith.truncf %207 : vector<40x384xf32> to vector<40x384xbf16>
    %c0_118 = arith.constant 0 : index
    %c0_119 = arith.constant 0 : index
    %209 = vector.load %arg20[%c0_118, %c0_119] : memref<384x128xbf16, #tpu.memory_space<vmem>>, vector<384x128xbf16>
    %cst_120 = arith.constant dense<0.000000e+00> : vector<40x128xf32>
    %210 = tpu.matmul %208, %209, %cst_120 {dimension_numbers = #tpu.dot_dimension_numbers<[1], [0], [0], [1], [0, 0, 1, 1], [], []>} : vector<40x384xbf16>, vector<384x128xbf16>, vector<40x128xf32> -> vector<40x128xf32>
    %c0_121 = arith.constant 0 : index
    %c0_122 = arith.constant 0 : index
    %211 = vector.load %arg21[%c0_121, %c0_122] : memref<1x128xf32, #tpu.memory_space<vmem>>, vector<1x128xf32>
    %212 = vector.broadcast %211 : vector<1x128xf32> to vector<40x128xf32>
    %213 = arith.addf %210, %212 : vector<40x128xf32>
    %cst_123 = arith.constant 0.000000e+00 : f32
    %214 = vector.broadcast %cst_123 : f32 to vector<40x128xf32>
    %215 = arith.maximumf %213, %214 : vector<40x128xf32>
    %216 = vector.broadcast %0 : vector<40x1xf32> to vector<40x128xf32>
    %217 = arith.mulf %215, %216 : vector<40x128xf32>
    %c0_124 = arith.constant 0 : index
    %c0_125 = arith.constant 0 : index
    %218 = vector.load %arg26[%c0_124, %c0_125] : memref<40x128xf32, #tpu.memory_space<vmem>>, vector<40x128xf32>
    tpu.vector_store %arg26[%c0_124, %c0_125], %217 {strides = array<i32>} : memref<40x128xf32, #tpu.memory_space<vmem>>, vector<40x128xf32>,
    %c0_126 = arith.constant 0 : index
    %c0_127 = arith.constant 0 : index
    %219 = vector.load %arg26[%c0_126, %c0_127] : memref<40x128xf32, #tpu.memory_space<vmem>>, vector<40x128xf32>
    %c1_i32_128 = arith.constant 1 : i32
    %220 = tpu.dynamic_rotate %219 by %c1_i32_128 dim 0 : vector<40x128xf32>, i32 -> vector<40x128xf32>
    %c39_i32_129 = arith.constant 39 : i32
    %221 = tpu.dynamic_rotate %219 by %c39_i32_129 dim 0 : vector<40x128xf32>, i32 -> vector<40x128xf32>
    %222 = tpu.concatenate %220, %219, %221 in 1 : vector<40x128xf32>, vector<40x128xf32>, vector<40x128xf32> -> vector<40x384xf32>
    %223 = arith.truncf %222 : vector<40x384xf32> to vector<40x384xbf16>
    %c0_130 = arith.constant 0 : index
    %c0_131 = arith.constant 0 : index
    %224 = vector.load %arg22[%c0_130, %c0_131] : memref<384x128xbf16, #tpu.memory_space<vmem>>, vector<384x128xbf16>
    %cst_132 = arith.constant dense<0.000000e+00> : vector<40x128xf32>
    %225 = tpu.matmul %223, %224, %cst_132 {dimension_numbers = #tpu.dot_dimension_numbers<[1], [0], [0], [1], [0, 0, 1, 1], [], []>} : vector<40x384xbf16>, vector<384x128xbf16>, vector<40x128xf32> -> vector<40x128xf32>
    %c0_133 = arith.constant 0 : index
    %c0_134 = arith.constant 0 : index
    %226 = vector.load %arg23[%c0_133, %c0_134] : memref<1x128xf32, #tpu.memory_space<vmem>>, vector<1x128xf32>
    %227 = vector.broadcast %226 : vector<1x128xf32> to vector<40x128xf32>
    %228 = arith.addf %225, %227 : vector<40x128xf32>
    %229 = vector.extract_strided_slice %228 {offsets = [2, 0], sizes = [16, 2], strides = [1, 1]} : vector<40x128xf32> to vector<16x2xf32>
    %c0_135 = arith.constant 0 : index
    %c0_136 = arith.constant 0 : index
    %c0_137 = arith.constant 0 : index
    %230 = vector.load %arg24[%c0_135, %c0_136, %c0_137] : memref<2x16x2xf32, #tpu.memory_space<vmem>>, vector<1x16x2xf32>
    %231 = vector.shape_cast %230 : vector<1x16x2xf32> to vector<16x2xf32>
    %232 = vector.shape_cast %229 : vector<16x2xf32> to vector<1x16x2xf32>
    tpu.vector_store %arg24[%c0_135, %c0_136, %c0_137], %232 {strides = array<i32>} : memref<2x16x2xf32, #tpu.memory_space<vmem>>, vector<1x16x2xf32>,
    %233 = vector.extract_strided_slice %228 {offsets = [22, 0], sizes = [16, 2], strides = [1, 1]} : vector<40x128xf32> to vector<16x2xf32>
    %c1_138 = arith.constant 1 : index
    %c0_139 = arith.constant 0 : index
    %c0_140 = arith.constant 0 : index
    %234 = vector.load %arg24[%c1_138, %c0_139, %c0_140] : memref<2x16x2xf32, #tpu.memory_space<vmem>>, vector<1x16x2xf32>
    %235 = vector.shape_cast %234 : vector<1x16x2xf32> to vector<16x2xf32>
    %236 = vector.shape_cast %233 : vector<16x2xf32> to vector<1x16x2xf32>
    tpu.vector_store %arg24[%c1_138, %c0_139, %c0_140], %236 {strides = array<i32>} : memref<2x16x2xf32, #tpu.memory_space<vmem>>, vector<1x16x2xf32>,
    return
  }
}

</mosaic_0001>

<llo_original>
// kernel: conv_decoder_forward.1
$region0: #{conv_decoder_forward.1}
  #allocation0 [shape = 'u32[]', space=smem, size = 0x4, offset = 0x4, fixed_abs, tag = 'smem constant byte address 0x4 - core index']
  #allocation1 [shape = 'u32[72,128]{1,0:T(1,128)}', space=vmem, size = 0x9000, scoped, tag = 'internal scratch']
  #allocation2 [shape = 'f32[40,256]{1,0:T(8,128)}', space=vmem, size = 0xa000, scoped, tag = 'scratch operand']
  #allocation3 [shape = 'f32[40,128]{1,0:T(8,128)}', space=vmem, size = 0x5000, scoped, tag = 'scratch operand']
  #allocation4 [shape = 'f32[40,128]{1,0:T(8,128)}', space=vmem, size = 0x5000, scoped, tag = 'scratch operand']
  %s0 = inlined_call_operand.vmem [shape: f32[40,128], index: 0, kind: input, shape index: {}]
  %s1 = inlined_call_operand.vmem [shape: f32[40,1], index: 1, kind: input, shape index: {}]
  %s2 = inlined_call_operand.vmem [shape: f32[5,2,256], index: 2, kind: input, shape index: {}]
  %s3 = inlined_call_operand.vmem [shape: f32[1,256], index: 3, kind: input, shape index: {}]
  %s4 = inlined_call_operand.vmem [shape: bf16[768,128], index: 4, kind: input, shape index: {}]
  %s5 = inlined_call_operand.vmem [shape: f32[1,128], index: 5, kind: input, shape index: {}]
  %s6 = inlined_call_operand.vmem [shape: bf16[384,128], index: 6, kind: input, shape index: {}]
  %s7 = inlined_call_operand.vmem [shape: f32[1,128], index: 7, kind: input, shape index: {}]
  %s8 = inlined_call_operand.vmem [shape: bf16[384,128], index: 8, kind: input, shape index: {}]
  %s9 = inlined_call_operand.vmem [shape: f32[1,128], index: 9, kind: input, shape index: {}]
  %s10 = inlined_call_operand.vmem [shape: bf16[384,128], index: 10, kind: input, shape index: {}]
  %s11 = inlined_call_operand.vmem [shape: f32[1,128], index: 11, kind: input, shape index: {}]
  %s12 = inlined_call_operand.vmem [shape: bf16[384,128], index: 12, kind: input, shape index: {}]
  %s13 = inlined_call_operand.vmem [shape: f32[1,128], index: 13, kind: input, shape index: {}]
  %s14 = inlined_call_operand.vmem [shape: bf16[384,128], index: 14, kind: input, shape index: {}]
  %s15 = inlined_call_operand.vmem [shape: f32[1,128], index: 15, kind: input, shape index: {}]
  %s16 = inlined_call_operand.vmem [shape: bf16[384,128], index: 16, kind: input, shape index: {}]
  %s17 = inlined_call_operand.vmem [shape: f32[1,128], index: 17, kind: input, shape index: {}]
  %s18 = inlined_call_operand.vmem [shape: bf16[384,128], index: 18, kind: input, shape index: {}]
  %s19 = inlined_call_operand.vmem [shape: f32[1,128], index: 19, kind: input, shape index: {}]
  %s20 = inlined_call_operand.vmem [shape: bf16[384,128], index: 20, kind: input, shape index: {}]
  %s21 = inlined_call_operand.vmem [shape: f32[1,128], index: 21, kind: input, shape index: {}]
  %s22 = inlined_call_operand.vmem [shape: bf16[384,128], index: 22, kind: input, shape index: {}]
  %s23 = inlined_call_operand.vmem [shape: f32[1,128], index: 23, kind: input, shape index: {}]
  %s24 = inlined_call_operand.vmem [shape: f32[2,16,2], index: 24, kind: output, shape index: {}]
  %s25 = sld [smem:[#allocation0]]
  $region106: #{conv_decoder_forward.1} parent=0
    _
  %s27 = ssub.s32 1, %s25
  %s28 = scalar_select 0, %s27, %s25
  // Predicated region
  $region2: #{conv_decoder_forward.1} parent=0 // pred_check
    _
  $region3: #{conv_decoder_forward.1} parent=0 // pred_check_branch
    %30 = sbr.rel (0) target = $region5
  $region4: #{conv_decoder_forward.1} parent=0 // pred_region
    _
  $region5: #{conv_decoder_forward.1} parent=0 // pred_fallthru
    _
  // Predicated region
  $region6: #{conv_decoder_forward.1} parent=0 // pred_check
    _
  $region7: #{conv_decoder_forward.1} parent=0 // pred_check_branch
    %32 = sbr.rel (0) target = $region9
  $region8: #{conv_decoder_forward.1} parent=0 // pred_region
    _
  $region9: #{conv_decoder_forward.1} parent=0 // pred_fallthru
    _
  // Predicated region
  $region10: #{conv_decoder_forward.1} parent=0 // pred_check
    _
  $region11: #{conv_decoder_forward.1} parent=0 // pred_check_branch
    %34 = sbr.rel (0) target = $region13
  $region12: #{conv_decoder_forward.1} parent=0 // pred_region
    _
  $region13: #{conv_decoder_forward.1} parent=0 // pred_fallthru
    _
  // Predicated region
  $region14: #{conv_decoder_forward.1} parent=0 // pred_check
    _
  $region15: #{conv_decoder_forward.1} parent=0 // pred_check_branch
    %36 = sbr.rel (0) target = $region17
  $region16: #{conv_decoder_forward.1} parent=0 // pred_region
    _
  $region17: #{conv_decoder_forward.1} parent=0 // pred_fallthru
    _
  // Predicated region
  $region18: #{conv_decoder_forward.1} parent=0 // pred_check
    _
  $region19: #{conv_decoder_forward.1} parent=0 // pred_check_branch
    %38 = sbr.rel (0) target = $region21
  $region20: #{conv_decoder_forward.1} parent=0 // pred_region
    _
  $region21: #{conv_decoder_forward.1} parent=0 // pred_fallthru
    _
  // Predicated region
  $region22: #{conv_decoder_forward.1} parent=0 // pred_check
    _
  $region23: #{conv_decoder_forward.1} parent=0 // pred_check_branch
    %40 = sbr.rel (0) target = $region25
  $region24: #{conv_decoder_forward.1} parent=0 // pred_region
    _
  $region25: #{conv_decoder_forward.1} parent=0 // pred_fallthru
    _
  // Predicated region
  $region26: #{conv_decoder_forward.1} parent=0 // pred_check
    _
  $region27: #{conv_decoder_forward.1} parent=0 // pred_check_branch
    %42 = sbr.rel (0) target = $region29
  $region28: #{conv_decoder_forward.1} parent=0 // pred_region
    _
  $region29: #{conv_decoder_forward.1} parent=0 // pred_fallthru
    _
  // Predicated region
  $region30: #{conv_decoder_forward.1} parent=0 // pred_check
    _
  $region31: #{conv_decoder_forward.1} parent=0 // pred_check_branch
    %44 = sbr.rel (0) target = $region33
  $region32: #{conv_decoder_forward.1} parent=0 // pred_region
    _
  $region33: #{conv_decoder_forward.1} parent=0 // pred_fallthru
    _
  // Predicated region
  $region34: #{conv_decoder_forward.1} parent=0 // pred_check
    _
  $region35: #{conv_decoder_forward.1} parent=0 // pred_check_branch
    %46 = sbr.rel (0) target = $region37
  $region36: #{conv_decoder_forward.1} parent=0 // pred_region
    _
  $region37: #{conv_decoder_forward.1} parent=0 // pred_fallthru
    _
  // Predicated region
  $region38: #{conv_decoder_forward.1} parent=0 // pred_check
    _
  $region39: #{conv_decoder_forward.1} parent=0 // pred_check_branch
    %48 = sbr.rel (0) target = $region41
  $region40: #{conv_decoder_forward.1} parent=0 // pred_region
    _
  $region41: #{conv_decoder_forward.1} parent=0 // pred_fallthru
    _
  // Predicated region
  $region42: #{conv_decoder_forward.1} parent=0 // pred_check
    _
  $region43: #{conv_decoder_forward.1} parent=0 // pred_check_branch
    %50 = sbr.rel (0) target = $region45
  $region44: #{conv_decoder_forward.1} parent=0 // pred_region
    _
  $region45: #{conv_decoder_forward.1} parent=0 // pred_fallthru
    _
  // Predicated region
  $region46: #{conv_decoder_forward.1} parent=0 // pred_check
    _
  $region47: #{conv_decoder_forward.1} parent=0 // pred_check_branch
    %52 = sbr.rel (0) target = $region49
  $region48: #{conv_decoder_forward.1} parent=0 // pred_region
    _
  $region49: #{conv_decoder_forward.1} parent=0 // pred_fallthru
    _
  // Predicated region
  $region50: #{conv_decoder_forward.1} parent=0 // pred_check
    _
  $region51: #{conv_decoder_forward.1} parent=0 // pred_check_branch
    %54 = sbr.rel (0) target = $region53
  $region52: #{conv_decoder_forward.1} parent=0 // pred_region
    _
  $region53: #{conv_decoder_forward.1} parent=0 // pred_fallthru
    _
  // Predicated region
  $region54: #{conv_decoder_forward.1} parent=0 // pred_check
    _
  $region55: #{conv_decoder_forward.1} parent=0 // pred_check_branch
    %56 = sbr.rel (0) target = $region57
  $region56: #{conv_decoder_forward.1} parent=0 // pred_region
    _
  $region57: #{conv_decoder_forward.1} parent=0 // pred_fallthru
    _
  // Predicated region
  $region58: #{conv_decoder_forward.1} parent=0 // pred_check
    _
  $region59: #{conv_decoder_forward.1} parent=0 // pred_check_branch
    %58 = sbr.rel (0) target = $region61
  $region60: #{conv_decoder_forward.1} parent=0 // pred_region
    _
  $region61: #{conv_decoder_forward.1} parent=0 // pred_fallthru
    _
  // Predicated region
  $region62: #{conv_decoder_forward.1} parent=0 // pred_check
    _
  $region63: #{conv_decoder_forward.1} parent=0 // pred_check_branch
    %60 = sbr.rel (0) target = $region65
  $region64: #{conv_decoder_forward.1} parent=0 // pred_region
    _
  $region65: #{conv_decoder_forward.1} parent=0 // pred_fallthru
    _
  // Predicated region
  $region66: #{conv_decoder_forward.1} parent=0 // pred_check
    _
  $region67: #{conv_decoder_forward.1} parent=0 // pred_check_branch
    %62 = sbr.rel (0) target = $region69
  $region68: #{conv_decoder_forward.1} parent=0 // pred_region
    _
  $region69: #{conv_decoder_forward.1} parent=0 // pred_fallthru
    _
  // Predicated region
  $region70: #{conv_decoder_forward.1} parent=0 // pred_check
    _
  $region71: #{conv_decoder_forward.1} parent=0 // pred_check_branch
    %64 = sbr.rel (0) target = $region73
  $region72: #{conv_decoder_forward.1} parent=0 // pred_region
    _
  $region73: #{conv_decoder_forward.1} parent=0 // pred_fallthru
    _
  // Predicated region
  $region74: #{conv_decoder_forward.1} parent=0 // pred_check
    _
  $region75: #{conv_decoder_forward.1} parent=0 // pred_check_branch
    %66 = sbr.rel (0) target = $region77
  $region76: #{conv_decoder_forward.1} parent=0 // pred_region
    _
  $region77: #{conv_decoder_forward.1} parent=0 // pred_fallthru
    _
  // Predicated region
  $region78: #{conv_decoder_forward.1} parent=0 // pred_check
    _
  $region79: #{conv_decoder_forward.1} parent=0 // pred_check_branch
    %68 = sbr.rel (0) target = $region81
  $region80: #{conv_decoder_forward.1} parent=0 // pred_region
    _
  $region81: #{conv_decoder_forward.1} parent=0 // pred_fallthru
    _
  // Predicated region
  $region82: #{conv_decoder_forward.1} parent=0 // pred_check
    _
  $region83: #{conv_decoder_forward.1} parent=0 // pred_check_branch
    %70 = sbr.rel (0) target = $region85
  $region84: #{conv_decoder_forward.1} parent=0 // pred_region
    _
  $region85: #{conv_decoder_forward.1} parent=0 // pred_fallthru
    _
  // Predicated region
  $region86: #{conv_decoder_forward.1} parent=0 // pred_check
    _
  $region87: #{conv_decoder_forward.1} parent=0 // pred_check_branch
    %72 = sbr.rel (0) target = $region89
  $region88: #{conv_decoder_forward.1} parent=0 // pred_region
    _
  $region89: #{conv_decoder_forward.1} parent=0 // pred_fallthru
    _
  // Predicated region
  $region90: #{conv_decoder_forward.1} parent=0 // pred_check
    _
  $region91: #{conv_decoder_forward.1} parent=0 // pred_check_branch
    %74 = sbr.rel (0) target = $region93
  $region92: #{conv_decoder_forward.1} parent=0 // pred_region
    _
  $region93: #{conv_decoder_forward.1} parent=0 // pred_fallthru
    _
  // Predicated region
  $region94: #{conv_decoder_forward.1} parent=0 // pred_check
    _
  $region95: #{conv_decoder_forward.1} parent=0 // pred_check_branch
    %76 = sbr.rel (0) target = $region97
  $region96: #{conv_decoder_forward.1} parent=0 // pred_region
    _
  $region97: #{conv_decoder_forward.1} parent=0 // pred_fallthru
    _
  %v77 = vld [vmem:[%s1] sm:$0xff]
  %v78 = vld [vmem:[%s1 + $0x8] sm:$0xff]
  %v79 = vld [vmem:[%s1 + $0x10] sm:$0xff]
  %v80 = vld [vmem:[%s1 + $0x18] sm:$0xff]
  %v81 = vld [vmem:[%s1 + $0x20] sm:$0xff]
  %v82 = vld [vmem:[%s0] sm:$0xff]
  %v83 = vld [vmem:[%s0 + $0x8] sm:$0xff]
  %v84 = vld [vmem:[%s0 + $0x10] sm:$0xff]
  %v85 = vld [vmem:[%s0 + $0x18] sm:$0xff]
  %v86 = vld [vmem:[%s0 + $0x20] sm:$0xff]
  %v87 = vld [vmem:[%s3] sm:$0x3]
  %v89 = vperm.slane %v87, 0
  %v90 = vperm.slane %v87, 1
  %v93 = vrot.slane %v82, 6
  %v94 = vrot.slane %v83, 6
  %v95 = vrot.slane %v84, 6
  %v96 = vrot.slane %v85, 6
  %v97 = vrot.slane %v86, 6
  %v98 = vlaneseq
  %v99 = vshrl.u32 %v98, 7
  %vm100 = vcmp.lt.s32.totalorder %v99, 2
  %v101 = vsel %vm100, %v96, %v97
  %v102 = vsel %vm100, %v95, %v96
  %v103 = vsel %vm100, %v94, %v95
  %v104 = vsel %vm100, %v93, %v94
  %v105 = vsel %vm100, %v97, %v93
  %v106 = vrot.slane %v82, 7
  %v107 = vrot.slane %v83, 7
  %v108 = vrot.slane %v84, 7
  %v109 = vrot.slane %v85, 7
  %v110 = vrot.slane %v86, 7
  %vm111 = vcmp.lt.s32.totalorder %v99, 1
  %v112 = vsel %vm111, %v109, %v110
  %v113 = vsel %vm111, %v108, %v109
  %v114 = vsel %vm111, %v107, %v108
  %v115 = vsel %vm111, %v106, %v107
  %v116 = vsel %vm111, %v110, %v106
  %v117 = vrot.slane %v82, 1
  %v118 = vrot.slane %v83, 1
  %v119 = vrot.slane %v84, 1
  %v120 = vrot.slane %v85, 1
  %v121 = vrot.slane %v86, 1
  %vm122 = vcmp.lt.s32.totalorder %v99, 7
  %v123 = vsel %vm122, %v120, %v121
  %v124 = vsel %vm122, %v119, %v120
  %v125 = vsel %vm122, %v118, %v119
  %v126 = vsel %vm122, %v117, %v118
  %v127 = vsel %vm122, %v121, %v117
  %v128 = vrot.slane %v82, 2
  %v129 = vrot.slane %v83, 2
  %v130 = vrot.slane %v84, 2
  %v131 = vrot.slane %v85, 2
  %v132 = vrot.slane %v86, 2
  %vm133 = vcmp.lt.s32.totalorder %v99, 6
  %v134 = vsel %vm133, %v131, %v132
  %v135 = vsel %vm133, %v130, %v131
  %v136 = vsel %vm133, %v129, %v130
  %v137 = vsel %vm133, %v128, %v129
  %v138 = vsel %vm133, %v132, %v128
  %v139 = vld [vmem:[%s2] sm:$0xf]
  %141 = vset.pattern.permute.xlu0 0
  %142 = vperm.xlu0 %141, %v105
  %v143 = vpop.permute.xlu0 %142
  %146 = vset.pattern.permute.xlu0 0
  %147 = vperm.xlu0 %146, %v104
  %v148 = vpop.permute.xlu0 %147
  %151 = vset.pattern.permute.xlu0 0
  %152 = vperm.xlu0 %151, %v103
  %v153 = vpop.permute.xlu0 %152
  %156 = vset.pattern.permute.xlu0 0
  %157 = vperm.xlu0 %156, %v102
  %v158 = vpop.permute.xlu0 %157
  %161 = vset.pattern.permute.xlu0 0
  %162 = vperm.xlu0 %161, %v101
  %v163 = vpop.permute.xlu0 %162
  %v166 = vperm.slane %v139, 0
  %v167 = vperm.slane %v139, 2
  %v170 = vperm.slane %v166, 0
  %v171 = vperm.slane %v167, 0
  %v172 = vmul.f32 %v143, %v170
  %v173 = vmul.f32 %v143, %v171
  %v174 = vmul.f32 %v148, %v170
  %v175 = vmul.f32 %v148, %v171
  %v176 = vmul.f32 %v153, %v170
  %v177 = vmul.f32 %v153, %v171
  %v178 = vmul.f32 %v158, %v170
  %v179 = vmul.f32 %v158, %v171
  %v180 = vmul.f32 %v163, %v170
  %v181 = vmul.f32 %v163, %v171
  %v182 = vadd.f32 %v89, %v172
  %v183 = vadd.f32 %v90, %v173
  %v184 = vadd.f32 %v89, %v174
  %v185 = vadd.f32 %v90, %v175
  %v186 = vadd.f32 %v89, %v176
  %v187 = vadd.f32 %v90, %v177
  %v188 = vadd.f32 %v89, %v178
  %v189 = vadd.f32 %v90, %v179
  %v190 = vadd.f32 %v89, %v180
  %v191 = vadd.f32 %v90, %v181
  %192 = vset.pattern.permute.xlu0 1
  %193 = vperm.xlu0 %192, %v105
  %v194 = vpop.permute.xlu0 %193
  %196 = vset.pattern.permute.xlu0 1
  %197 = vperm.xlu0 %196, %v104
  %v198 = vpop.permute.xlu0 %197
  %200 = vset.pattern.permute.xlu0 1
  %201 = vperm.xlu0 %200, %v103
  %v202 = vpop.permute.xlu0 %201
  %204 = vset.pattern.permute.xlu0 1
  %205 = vperm.xlu0 %204, %v102
  %v206 = vpop.permute.xlu0 %205
  %208 = vset.pattern.permute.xlu0 1
  %209 = vperm.xlu0 %208, %v101
  %v210 = vpop.permute.xlu0 %209
  %v212 = vperm.slane %v139, 1
  %v213 = vperm.slane %v139, 3
  %v216 = vperm.slane %v212, 1
  %v217 = vperm.slane %v213, 1
  %v218 = vmul.f32 %v194, %v216
  %v219 = vmul.f32 %v194, %v217
  %v220 = vmul.f32 %v198, %v216
  %v221 = vmul.f32 %v198, %v217
  %v222 = vmul.f32 %v202, %v216
  %v223 = vmul.f32 %v202, %v217
  %v224 = vmul.f32 %v206, %v216
  %v225 = vmul.f32 %v206, %v217
  %v226 = vmul.f32 %v210, %v216
  %v227 = vmul.f32 %v210, %v217
  %v228 = vadd.f32 %v182, %v218
  %v229 = vadd.f32 %v183, %v219
  %v230 = vadd.f32 %v184, %v220
  %v231 = vadd.f32 %v185, %v221
  %v232 = vadd.f32 %v186, %v222
  %v233 = vadd.f32 %v187, %v223
  %v234 = vadd.f32 %v188, %v224
  %v235 = vadd.f32 %v189, %v225
  %v236 = vadd.f32 %v190, %v226
  %v237 = vadd.f32 %v191, %v227
  %s238 = scalar_lea.vmem %s2, 4
  %v239 = vld [vmem:[%s238] sm:$0xf]
  %241 = vset.pattern.permute.xlu0 0
  %242 = vperm.xlu0 %241, %v116
  %v243 = vpop.permute.xlu0 %242
  %246 = vset.pattern.permute.xlu0 0
  %247 = vperm.xlu0 %246, %v115
  %v248 = vpop.permute.xlu0 %247
  %251 = vset.pattern.permute.xlu0 0
  %252 = vperm.xlu0 %251, %v114
  %v253 = vpop.permute.xlu0 %252
  %256 = vset.pattern.permute.xlu0 0
  %257 = vperm.xlu0 %256, %v113
  %v258 = vpop.permute.xlu0 %257
  %261 = vset.pattern.permute.xlu0 0
  %262 = vperm.xlu0 %261, %v112
  %v263 = vpop.permute.xlu0 %262
  %v266 = vperm.slane %v239, 0
  %v267 = vperm.slane %v239, 2
  %v270 = vperm.slane %v266, 0
  %v271 = vperm.slane %v267, 0
  %v272 = vmul.f32 %v243, %v270
  %v273 = vmul.f32 %v243, %v271
  %v274 = vmul.f32 %v248, %v270
  %v275 = vmul.f32 %v248, %v271
  %v276 = vmul.f32 %v253, %v270
  %v277 = vmul.f32 %v253, %v271
  %v278 = vmul.f32 %v258, %v270
  %v279 = vmul.f32 %v258, %v271
  %v280 = vmul.f32 %v263, %v270
  %v281 = vmul.f32 %v263, %v271
  %v282 = vadd.f32 %v228, %v272
  %v283 = vadd.f32 %v229, %v273
  %v284 = vadd.f32 %v230, %v274
  %v285 = vadd.f32 %v231, %v275
  %v286 = vadd.f32 %v232, %v276
  %v287 = vadd.f32 %v233, %v277
  %v288 = vadd.f32 %v234, %v278
  %v289 = vadd.f32 %v235, %v279
  %v290 = vadd.f32 %v236, %v280
  %v291 = vadd.f32 %v237, %v281
  %292 = vset.pattern.permute.xlu0 1
  %293 = vperm.xlu0 %292, %v116
  %v294 = vpop.permute.xlu0 %293
  %296 = vset.pattern.permute.xlu0 1
  %297 = vperm.xlu0 %296, %v115
  %v298 = vpop.permute.xlu0 %297
  %300 = vset.pattern.permute.xlu0 1
  %301 = vperm.xlu0 %300, %v114
  %v302 = vpop.permute.xlu0 %301
  %304 = vset.pattern.permute.xlu0 1
  %305 = vperm.xlu0 %304, %v113
  %v306 = vpop.permute.xlu0 %305
  %308 = vset.pattern.permute.xlu0 1
  %309 = vperm.xlu0 %308, %v112
  %v310 = vpop.permute.xlu0 %309
  %v312 = vperm.slane %v239, 1
  %v313 = vperm.slane %v239, 3
  %v316 = vperm.slane %v312, 1
  %v317 = vperm.slane %v313, 1
  %v318 = vmul.f32 %v294, %v316
  %v319 = vmul.f32 %v294, %v317
  %v320 = vmul.f32 %v298, %v316
  %v321 = vmul.f32 %v298, %v317
  %v322 = vmul.f32 %v302, %v316
  %v323 = vmul.f32 %v302, %v317
  %v324 = vmul.f32 %v306, %v316
  %v325 = vmul.f32 %v306, %v317
  %v326 = vmul.f32 %v310, %v316
  %v327 = vmul.f32 %v310, %v317
  %v328 = vadd.f32 %v282, %v318
  %v329 = vadd.f32 %v283, %v319
  %v330 = vadd.f32 %v284, %v320
  %v331 = vadd.f32 %v285, %v321
  %v332 = vadd.f32 %v286, %v322
  %v333 = vadd.f32 %v287, %v323
  %v334 = vadd.f32 %v288, %v324
  %v335 = vadd.f32 %v289, %v325
  %v336 = vadd.f32 %v290, %v326
  %v337 = vadd.f32 %v291, %v327
  %s338 = scalar_lea.vmem %s2, 8
  %v339 = vld [vmem:[%s338] sm:$0xf]
  %341 = vset.pattern.permute.xlu0 0
  %342 = vperm.xlu0 %341, %v82
  %v343 = vpop.permute.xlu0 %342
  %346 = vset.pattern.permute.xlu0 0
  %347 = vperm.xlu0 %346, %v83
  %v348 = vpop.permute.xlu0 %347
  %351 = vset.pattern.permute.xlu0 0
  %352 = vperm.xlu0 %351, %v84
  %v353 = vpop.permute.xlu0 %352
  %356 = vset.pattern.permute.xlu0 0
  %357 = vperm.xlu0 %356, %v85
  %v358 = vpop.permute.xlu0 %357
  %361 = vset.pattern.permute.xlu0 0
  %362 = vperm.xlu0 %361, %v86
  %v363 = vpop.permute.xlu0 %362
  %v366 = vperm.slane %v339, 0
  %v367 = vperm.slane %v339, 2
  %v370 = vperm.slane %v366, 0
  %v371 = vperm.slane %v367, 0
  %v372 = vmul.f32 %v343, %v370
  %v373 = vmul.f32 %v343, %v371
  %v374 = vmul.f32 %v348, %v370
  %v375 = vmul.f32 %v348, %v371
  %v376 = vmul.f32 %v353, %v370
  %v377 = vmul.f32 %v353, %v371
  %v378 = vmul.f32 %v358, %v370
  %v379 = vmul.f32 %v358, %v371
  %v380 = vmul.f32 %v363, %v370
  %v381 = vmul.f32 %v363, %v371
  %v382 = vadd.f32 %v328, %v372
  %v383 = vadd.f32 %v329, %v373
  %v384 = vadd.f32 %v330, %v374
  %v385 = vadd.f32 %v331, %v375
  %v386 = vadd.f32 %v332, %v376
  %v387 = vadd.f32 %v333, %v377
  %v388 = vadd.f32 %v334, %v378
  %v389 = vadd.f32 %v335, %v379
  %v390 = vadd.f32 %v336, %v380
  %v391 = vadd.f32 %v337, %v381
  %392 = vset.pattern.permute.xlu0 1
  %393 = vperm.xlu0 %392, %v82
  %v394 = vpop.permute.xlu0 %393
  %396 = vset.pattern.permute.xlu0 1
  %397 = vperm.xlu0 %396, %v83
  %v398 = vpop.permute.xlu0 %397
  %400 = vset.pattern.permute.xlu0 1
  %401 = vperm.xlu0 %400, %v84
  %v402 = vpop.permute.xlu0 %401
  %404 = vset.pattern.permute.xlu0 1
  %405 = vperm.xlu0 %404, %v85
  %v406 = vpop.permute.xlu0 %405
  %408 = vset.pattern.permute.xlu0 1
  %409 = vperm.xlu0 %408, %v86
  %v410 = vpop.permute.xlu0 %409
  %v412 = vperm.slane %v339, 1
  %v413 = vperm.slane %v339, 3
  %v416 = vperm.slane %v412, 1
  %v417 = vperm.slane %v413, 1
  %v418 = vmul.f32 %v394, %v416
  %v419 = vmul.f32 %v394, %v417
  %v420 = vmul.f32 %v398, %v416
  %v421 = vmul.f32 %v398, %v417
  %v422 = vmul.f32 %v402, %v416
  %v423 = vmul.f32 %v402, %v417
  %v424 = vmul.f32 %v406, %v416
  %v425 = vmul.f32 %v406, %v417
  %v426 = vmul.f32 %v410, %v416
  %v427 = vmul.f32 %v410, %v417
  %v428 = vadd.f32 %v382, %v418
  %v429 = vadd.f32 %v383, %v419
  %v430 = vadd.f32 %v384, %v420
  %v431 = vadd.f32 %v385, %v421
  %v432 = vadd.f32 %v386, %v422
  %v433 = vadd.f32 %v387, %v423
  %v434 = vadd.f32 %v388, %v424
  %v435 = vadd.f32 %v389, %v425
  %v436 = vadd.f32 %v390, %v426
  %v437 = vadd.f32 %v391, %v427
  %s438 = scalar_lea.vmem %s2, 12
  %v439 = vld [vmem:[%s438] sm:$0xf]
  %441 = vset.pattern.permute.xlu0 0
  %442 = vperm.xlu0 %441, %v126
  %v443 = vpop.permute.xlu0 %442
  %446 = vset.pattern.permute.xlu0 0
  %447 = vperm.xlu0 %446, %v125
  %v448 = vpop.permute.xlu0 %447
  %451 = vset.pattern.permute.xlu0 0
  %452 = vperm.xlu0 %451, %v124
  %v453 = vpop.permute.xlu0 %452
  %456 = vset.pattern.permute.xlu0 0
  %457 = vperm.xlu0 %456, %v123
  %v458 = vpop.permute.xlu0 %457
  %461 = vset.pattern.permute.xlu0 0
  %462 = vperm.xlu0 %461, %v127
  %v463 = vpop.permute.xlu0 %462
  %v466 = vperm.slane %v439, 0
  %v467 = vperm.slane %v439, 2
  %v470 = vperm.slane %v466, 0
  %v471 = vperm.slane %v467, 0
  %v472 = vmul.f32 %v443, %v470
  %v473 = vmul.f32 %v443, %v471
  %v474 = vmul.f32 %v448, %v470
  %v475 = vmul.f32 %v448, %v471
  %v476 = vmul.f32 %v453, %v470
  %v477 = vmul.f32 %v453, %v471
  %v478 = vmul.f32 %v458, %v470
  %v479 = vmul.f32 %v458, %v471
  %v480 = vmul.f32 %v463, %v470
  %v481 = vmul.f32 %v463, %v471
  %v482 = vadd.f32 %v428, %v472
  %v483 = vadd.f32 %v429, %v473
  %v484 = vadd.f32 %v430, %v474
  %v485 = vadd.f32 %v431, %v475
  %v486 = vadd.f32 %v432, %v476
  %v487 = vadd.f32 %v433, %v477
  %v488 = vadd.f32 %v434, %v478
  %v489 = vadd.f32 %v435, %v479
  %v490 = vadd.f32 %v436, %v480
  %v491 = vadd.f32 %v437, %v481
  %492 = vset.pattern.permute.xlu0 1
  %493 = vperm.xlu0 %492, %v126
  %v494 = vpop.permute.xlu0 %493
  %496 = vset.pattern.permute.xlu0 1
  %497 = vperm.xlu0 %496, %v125
  %v498 = vpop.permute.xlu0 %497
  %500 = vset.pattern.permute.xlu0 1
  %501 = vperm.xlu0 %500, %v124
  %v502 = vpop.permute.xlu0 %501
  %504 = vset.pattern.permute.xlu0 1
  %505 = vperm.xlu0 %504, %v123
  %v506 = vpop.permute.xlu0 %505
  %508 = vset.pattern.permute.xlu0 1
  %509 = vperm.xlu0 %508, %v127
  %v510 = vpop.permute.xlu0 %509
  %v512 = vperm.slane %v439, 1
  %v513 = vperm.slane %v439, 3
  %v516 = vperm.slane %v512, 1
  %v517 = vperm.slane %v513, 1
  %v518 = vmul.f32 %v494, %v516
  %v519 = vmul.f32 %v494, %v517
  %v520 = vmul.f32 %v498, %v516
  %v521 = vmul.f32 %v498, %v517
  %v522 = vmul.f32 %v502, %v516
  %v523 = vmul.f32 %v502, %v517
  %v524 = vmul.f32 %v506, %v516
  %v525 = vmul.f32 %v506, %v517
  %v526 = vmul.f32 %v510, %v516
  %v527 = vmul.f32 %v510, %v517
  %v528 = vadd.f32 %v482, %v518
  %v529 = vadd.f32 %v483, %v519
  %v530 = vadd.f32 %v484, %v520
  %v531 = vadd.f32 %v485, %v521
  %v532 = vadd.f32 %v486, %v522
  %v533 = vadd.f32 %v487, %v523
  %v534 = vadd.f32 %v488, %v524
  %v535 = vadd.f32 %v489, %v525
  %v536 = vadd.f32 %v490, %v526
  %v537 = vadd.f32 %v491, %v527
  %s538 = scalar_lea.vmem %s2, 16
  %v539 = vld [vmem:[%s538] sm:$0xf]
  %541 = vset.pattern.permute.xlu0 0
  %542 = vperm.xlu0 %541, %v137
  %v543 = vpop.permute.xlu0 %542
  %546 = vset.pattern.permute.xlu0 0
  %547 = vperm.xlu0 %546, %v136
  %v548 = vpop.permute.xlu0 %547
  %551 = vset.pattern.permute.xlu0 0
  %552 = vperm.xlu0 %551, %v135
  %v553 = vpop.permute.xlu0 %552
  %556 = vset.pattern.permute.xlu0 0
  %557 = vperm.xlu0 %556, %v134
  %v558 = vpop.permute.xlu0 %557
  %561 = vset.pattern.permute.xlu0 0
  %562 = vperm.xlu0 %561, %v138
  %v563 = vpop.permute.xlu0 %562
  %v566 = vperm.slane %v539, 0
  %v567 = vperm.slane %v539, 2
  %v570 = vperm.slane %v566, 0
  %v571 = vperm.slane %v567, 0
  %v572 = vmul.f32 %v543, %v570
  %v573 = vmul.f32 %v543, %v571
  %v574 = vmul.f32 %v548, %v570
  %v575 = vmul.f32 %v548, %v571
  %v576 = vmul.f32 %v553, %v570
  %v577 = vmul.f32 %v553, %v571
  %v578 = vmul.f32 %v558, %v570
  %v579 = vmul.f32 %v558, %v571
  %v580 = vmul.f32 %v563, %v570
  %v581 = vmul.f32 %v563, %v571
  %v582 = vadd.f32 %v528, %v572
  %v583 = vadd.f32 %v529, %v573
  %v584 = vadd.f32 %v530, %v574
  %v585 = vadd.f32 %v531, %v575
  %v586 = vadd.f32 %v532, %v576
  %v587 = vadd.f32 %v533, %v577
  %v588 = vadd.f32 %v534, %v578
  %v589 = vadd.f32 %v535, %v579
  %v590 = vadd.f32 %v536, %v580
  %v591 = vadd.f32 %v537, %v581
  %592 = vset.pattern.permute.xlu0 1
  %593 = vperm.xlu0 %592, %v137
  %v594 = vpop.permute.xlu0 %593
  %596 = vset.pattern.permute.xlu0 1
  %597 = vperm.xlu0 %596, %v136
  %v598 = vpop.permute.xlu0 %597
  %600 = vset.pattern.permute.xlu0 1
  %601 = vperm.xlu0 %600, %v135
  %v602 = vpop.permute.xlu0 %601
  %604 = vset.pattern.permute.xlu0 1
  %605 = vperm.xlu0 %604, %v134
  %v606 = vpop.permute.xlu0 %605
  %608 = vset.pattern.permute.xlu0 1
  %609 = vperm.xlu0 %608, %v138
  %v610 = vpop.permute.xlu0 %609
  %v612 = vperm.slane %v539, 1
  %v613 = vperm.slane %v539, 3
  %v616 = vperm.slane %v612, 1
  %v617 = vperm.slane %v613, 1
  %v618 = vmul.f32 %v594, %v616
  %v619 = vmul.f32 %v594, %v617
  %v620 = vmul.f32 %v598, %v616
  %v621 = vmul.f32 %v598, %v617
  %v622 = vmul.f32 %v602, %v616
  %v623 = vmul.f32 %v602, %v617
  %v624 = vmul.f32 %v606, %v616
  %v625 = vmul.f32 %v606, %v617
  %v626 = vmul.f32 %v610, %v616
  %v627 = vmul.f32 %v610, %v617
  %v628 = vadd.f32 %v582, %v618
  %v629 = vadd.f32 %v583, %v619
  %v630 = vadd.f32 %v584, %v620
  %v631 = vadd.f32 %v585, %v621
  %v632 = vadd.f32 %v586, %v622
  %v633 = vadd.f32 %v587, %v623
  %v634 = vadd.f32 %v588, %v624
  %v635 = vadd.f32 %v589, %v625
  %v636 = vadd.f32 %v590, %v626
  %v637 = vadd.f32 %v591, %v627
  %v638 = vmax.f32 %v628, 0.0
  %v639 = vmax.f32 %v629, 0.0
  %v640 = vmax.f32 %v630, 0.0
  %v641 = vmax.f32 %v631, 0.0
  %v642 = vmax.f32 %v632, 0.0
  %v643 = vmax.f32 %v633, 0.0
  %v644 = vmax.f32 %v634, 0.0
  %v645 = vmax.f32 %v635, 0.0
  %v646 = vmax.f32 %v636, 0.0
  %v647 = vmax.f32 %v637, 0.0
  %649 = vset.pattern.permute.xlu0 0
  %650 = vperm.xlu0 %649, %v77
  %v651 = vpop.permute.xlu0 %650
  %654 = vset.pattern.permute.xlu0 0
  %655 = vperm.xlu0 %654, %v78
  %v656 = vpop.permute.xlu0 %655
  %659 = vset.pattern.permute.xlu0 0
  %660 = vperm.xlu0 %659, %v79
  %v661 = vpop.permute.xlu0 %660
  %664 = vset.pattern.permute.xlu0 0
  %665 = vperm.xlu0 %664, %v80
  %v666 = vpop.permute.xlu0 %665
  %669 = vset.pattern.permute.xlu0 0
  %670 = vperm.xlu0 %669, %v81
  %v671 = vpop.permute.xlu0 %670
  %v673 = vmul.f32 %v638, %v651
  %v674 = vmul.f32 %v639, %v651
  %v675 = vmul.f32 %v640, %v656
  %v676 = vmul.f32 %v641, %v656
  %v677 = vmul.f32 %v642, %v661
  %v678 = vmul.f32 %v643, %v661
  %v679 = vmul.f32 %v644, %v666
  %v680 = vmul.f32 %v645, %v666
  %v681 = vmul.f32 %v646, %v671
  %v682 = vmul.f32 %v647, %v671
  %683 = vst [vmem:[#allocation2] sm:$0xff] %v673
  %684 = vst [vmem:[#allocation2 + $0x8] sm:$0xff] %v674
  %685 = vst [vmem:[#allocation2 + $0x10] sm:$0xff] %v675
  %686 = vst [vmem:[#allocation2 + $0x18] sm:$0xff] %v676
  %687 = vst [vmem:[#allocation2 + $0x20] sm:$0xff] %v677
  %688 = vst [vmem:[#allocation2 + $0x28] sm:$0xff] %v678
  %689 = vst [vmem:[#allocation2 + $0x30] sm:$0xff] %v679
  %690 = vst [vmem:[#allocation2 + $0x38] sm:$0xff] %v680
  %691 = vst [vmem:[#allocation2 + $0x40] sm:$0xff] %v681
  %692 = vst [vmem:[#allocation2 + $0x48] sm:$0xff] %v682
  %v693 = vld [vmem:[#allocation2] sm:$0xff]
  %v694 = vld [vmem:[#allocation2 + $0x8] sm:$0xff]
  %v695 = vld [vmem:[#allocation2 + $0x10] sm:$0xff]
  %v696 = vld [vmem:[#allocation2 + $0x18] sm:$0xff]
  %v697 = vld [vmem:[#allocation2 + $0x20] sm:$0xff]
  %v698 = vld [vmem:[#allocation2 + $0x28] sm:$0xff]
  %v699 = vld [vmem:[#allocation2 + $0x30] sm:$0xff]
  %v700 = vld [vmem:[#allocation2 + $0x38] sm:$0xff]
  %v701 = vld [vmem:[#allocation2 + $0x40] sm:$0xff]
  %v702 = vld [vmem:[#allocation2 + $0x48] sm:$0xff]
  %v703 = vrot.slane %v693, 7
  %v704 = vrot.slane %v694, 7
  %v705 = vrot.slane %v695, 7
  %v706 = vrot.slane %v696, 7
  %v707 = vrot.slane %v697, 7
  %v708 = vrot.slane %v698, 7
  %v709 = vrot.slane %v699, 7
  %v710 = vrot.slane %v700, 7
  %v711 = vrot.slane %v701, 7
  %v712 = vrot.slane %v702, 7
  %v713 = vsel %vm111, %v709, %v711
  %v714 = vsel %vm111, %v710, %v712
  %v715 = vsel %vm111, %v707, %v709
  %v716 = vsel %vm111, %v708, %v710
  %v717 = vsel %vm111, %v705, %v707
  %v718 = vsel %vm111, %v706, %v708
  %v719 = vsel %vm111, %v703, %v705
  %v720 = vsel %vm111, %v704, %v706
  %v721 = vsel %vm111, %v711, %v703
  %v722 = vsel %vm111, %v712, %v704
  %v723 = vrot.slane %v693, 1
  %v724 = vrot.slane %v694, 1
  %v725 = vrot.slane %v695, 1
  %v726 = vrot.slane %v696, 1
  %v727 = vrot.slane %v697, 1
  %v728 = vrot.slane %v698, 1
  %v729 = vrot.slane %v699, 1
  %v730 = vrot.slane %v700, 1
  %v731 = vrot.slane %v701, 1
  %v732 = vrot.slane %v702, 1
  %v733 = vsel %vm122, %v729, %v731
  %v734 = vsel %vm122, %v730, %v732
  %v735 = vsel %vm122, %v727, %v729
  %v736 = vsel %vm122, %v728, %v730
  %v737 = vsel %vm122, %v725, %v727
  %v738 = vsel %vm122, %v726, %v728
  %v739 = vsel %vm122, %v723, %v725
  %v740 = vsel %vm122, %v724, %v726
  %v741 = vsel %vm122, %v731, %v723
  %v742 = vsel %vm122, %v732, %v724
  %v743 = vpack.c.bf16 %v719, %v721
  %v744 = vpack.c.bf16 %v720, %v722
  %v745 = vpack.c.bf16 %v695, %v693
  %v746 = vpack.c.bf16 %v696, %v694
  %v747 = vpack.c.bf16 %v737, %v739
  %v748 = vpack.c.bf16 %v738, %v740
  %v749 = vpack.c.bf16 %v715, %v717
  %v750 = vpack.c.bf16 %v716, %v718
  %v751 = vpack.c.bf16 %v699, %v697
  %v752 = vpack.c.bf16 %v700, %v698
  %v753 = vpack.c.bf16 %v733, %v735
  %v754 = vpack.c.bf16 %v734, %v736
  %v755 = vpack.c.bf16 %v713, %v713
  %v756 = vpack.c.bf16 %v714, %v714
  %v757 = vpack.c.bf16 %v701, %v701
  %v758 = vpack.c.bf16 %v702, %v702
  %v759 = vpack.c.bf16 %v741, %v741
  %v760 = vpack.c.bf16 %v742, %v742
  %v761 = vld [vmem:[%s4] sm:$0xf]
  %v762 = vld [vmem:[%s4 + $0x4] sm:$0xf]
  %v763 = vld [vmem:[%s4 + $0x8] sm:$0xf]
  %v764 = vld [vmem:[%s4 + $0xc] sm:$0xf]
  %v765 = vld [vmem:[%s4 + $0x10] sm:$0xf]
  %v766 = vld [vmem:[%s4 + $0x14] sm:$0xf]
  %v767 = vld [vmem:[%s4 + $0x18] sm:$0xf]
  %v768 = vld [vmem:[%s4 + $0x1c] sm:$0xf]
  %v769 = vld [vmem:[%s4 + $0x20] sm:$0xf]
  %v770 = vld [vmem:[%s4 + $0x24] sm:$0xf]
  %v771 = vld [vmem:[%s4 + $0x28] sm:$0xf]
  %v772 = vld [vmem:[%s4 + $0x2c] sm:$0xf]
  %v773 = vld [vmem:[%s4 + $0x30] sm:$0xf]
  %v774 = vld [vmem:[%s4 + $0x34] sm:$0xf]
  %v775 = vld [vmem:[%s4 + $0x38] sm:$0xf]
  %v776 = vld [vmem:[%s4 + $0x3c] sm:$0xf]
  %v777 = vld [vmem:[%s4 + $0x40] sm:$0xf]
  %v778 = vld [vmem:[%s4 + $0x44] sm:$0xf]
  %v779 = vld [vmem:[%s4 + $0x48] sm:$0xf]
  %v780 = vld [vmem:[%s4 + $0x4c] sm:$0xf]
  %v781 = vld [vmem:[%s4 + $0x50] sm:$0xf]
  %v782 = vld [vmem:[%s4 + $0x54] sm:$0xf]
  %v783 = vld [vmem:[%s4 + $0x58] sm:$0xf]
  %v784 = vld [vmem:[%s4 + $0x5c] sm:$0xf]
  %v785 = vld [vmem:[%s4 + $0x60] sm:$0xf]
  %v786 = vld [vmem:[%s4 + $0x64] sm:$0xf]
  %v787 = vld [vmem:[%s4 + $0x68] sm:$0xf]
  %v788 = vld [vmem:[%s4 + $0x6c] sm:$0xf]
  %v789 = vld [vmem:[%s4 + $0x70] sm:$0xf]
  %v790 = vld [vmem:[%s4 + $0x74] sm:$0xf]
  %v791 = vld [vmem:[%s4 + $0x78] sm:$0xf]
  %v792 = vld [vmem:[%s4 + $0x7c] sm:$0xf]
  %v793 = vld [vmem:[%s4 + $0x80] sm:$0xf]
  %v794 = vld [vmem:[%s4 + $0x84] sm:$0xf]
  %v795 = vld [vmem:[%s4 + $0x88] sm:$0xf]
  %v796 = vld [vmem:[%s4 + $0x8c] sm:$0xf]
  %v797 = vld [vmem:[%s4 + $0x90] sm:$0xf]
  %v798 = vld [vmem:[%s4 + $0x94] sm:$0xf]
  %v799 = vld [vmem:[%s4 + $0x98] sm:$0xf]
  %v800 = vld [vmem:[%s4 + $0x9c] sm:$0xf]
  %v801 = vld [vmem:[%s4 + $0xa0] sm:$0xf]
  %v802 = vld [vmem:[%s4 + $0xa4] sm:$0xf]
  %v803 = vld [vmem:[%s4 + $0xa8] sm:$0xf]
  %v804 = vld [vmem:[%s4 + $0xac] sm:$0xf]
  %v805 = vld [vmem:[%s4 + $0xb0] sm:$0xf]
  %v806 = vld [vmem:[%s4 + $0xb4] sm:$0xf]
  %v807 = vld [vmem:[%s4 + $0xb8] sm:$0xf]
  %v808 = vld [vmem:[%s4 + $0xbc] sm:$0xf]
  %v809 = vld [vmem:[%s4 + $0xc0] sm:$0xf]
  %v810 = vld [vmem:[%s4 + $0xc4] sm:$0xf]
  %v811 = vld [vmem:[%s4 + $0xc8] sm:$0xf]
  %v812 = vld [vmem:[%s4 + $0xcc] sm:$0xf]
  %v813 = vld [vmem:[%s4 + $0xd0] sm:$0xf]
  %v814 = vld [vmem:[%s4 + $0xd4] sm:$0xf]
  %v815 = vld [vmem:[%s4 + $0xd8] sm:$0xf]
  %v816 = vld [vmem:[%s4 + $0xdc] sm:$0xf]
  %v817 = vld [vmem:[%s4 + $0xe0] sm:$0xf]
  %v818 = vld [vmem:[%s4 + $0xe4] sm:$0xf]
  %v819 = vld [vmem:[%s4 + $0xe8] sm:$0xf]
  %v820 = vld [vmem:[%s4 + $0xec] sm:$0xf]
  %v821 = vld [vmem:[%s4 + $0xf0] sm:$0xf]
  %v822 = vld [vmem:[%s4 + $0xf4] sm:$0xf]
  %v823 = vld [vmem:[%s4 + $0xf8] sm:$0xf]
  %v824 = vld [vmem:[%s4 + $0xfc] sm:$0xf]
  %v825 = vld [vmem:[%s4 + $0x100] sm:$0xf]
  %v826 = vld [vmem:[%s4 + $0x104] sm:$0xf]
  %v827 = vld [vmem:[%s4 + $0x108] sm:$0xf]
  %v828 = vld [vmem:[%s4 + $0x10c] sm:$0xf]
  %v829 = vld [vmem:[%s4 + $0x110] sm:$0xf]
  %v830 = vld [vmem:[%s4 + $0x114] sm:$0xf]
  %v831 = vld [vmem:[%s4 + $0x118] sm:$0xf]
  %v832 = vld [vmem:[%s4 + $0x11c] sm:$0xf]
  %v833 = vld [vmem:[%s4 + $0x120] sm:$0xf]
  %v834 = vld [vmem:[%s4 + $0x124] sm:$0xf]
  %v835 = vld [vmem:[%s4 + $0x128] sm:$0xf]
  %v836 = vld [vmem:[%s4 + $0x12c] sm:$0xf]
  %v837 = vld [vmem:[%s4 + $0x130] sm:$0xf]
  %v838 = vld [vmem:[%s4 + $0x134] sm:$0xf]
  %v839 = vld [vmem:[%s4 + $0x138] sm:$0xf]
  %v840 = vld [vmem:[%s4 + $0x13c] sm:$0xf]
  %v841 = vld [vmem:[%s4 + $0x140] sm:$0xf]
  %v842 = vld [vmem:[%s4 + $0x144] sm:$0xf]
  %v843 = vld [vmem:[%s4 + $0x148] sm:$0xf]
  %v844 = vld [vmem:[%s4 + $0x14c] sm:$0xf]
  %v845 = vld [vmem:[%s4 + $0x150] sm:$0xf]
  %v846 = vld [vmem:[%s4 + $0x154] sm:$0xf]
  %v847 = vld [vmem:[%s4 + $0x158] sm:$0xf]
  %v848 = vld [vmem:[%s4 + $0x15c] sm:$0xf]
  %v849 = vld [vmem:[%s4 + $0x160] sm:$0xf]
  %v850 = vld [vmem:[%s4 + $0x164] sm:$0xf]
  %v851 = vld [vmem:[%s4 + $0x168] sm:$0xf]
  %v852 = vld [vmem:[%s4 + $0x16c] sm:$0xf]
  %v853 = vld [vmem:[%s4 + $0x170] sm:$0xf]
  %v854 = vld [vmem:[%s4 + $0x174] sm:$0xf]
  %v855 = vld [vmem:[%s4 + $0x178] sm:$0xf]
  %v856 = vld [vmem:[%s4 + $0x17c] sm:$0xf]
  %v857 = vld [vmem:[%s5] sm:$0x1]
  %v859 = vperm.slane %v857, 0
  %v957 = vunpack.c.l.b16 %v761
  %v958 = vunpack.c.l.b16 %v762
  %v959 = vunpack.c.l.b16 %v763
  %v960 = vunpack.c.l.b16 %v764
  %v961 = vunpack.c.l.b16 %v765
  %v962 = vunpack.c.l.b16 %v766
  %v963 = vunpack.c.l.b16 %v767
  %v964 = vunpack.c.l.b16 %v768
  %v965 = vunpack.c.l.b16 %v769
  %v966 = vunpack.c.l.b16 %v770
  %v967 = vunpack.c.l.b16 %v771
  %v968 = vunpack.c.l.b16 %v772
  %v969 = vunpack.c.l.b16 %v773
  %v970 = vunpack.c.l.b16 %v774
  %v971 = vunpack.c.l.b16 %v775
  %v972 = vunpack.c.l.b16 %v776
  %v973 = vunpack.c.l.b16 %v777
  %v974 = vunpack.c.l.b16 %v778
  %v975 = vunpack.c.l.b16 %v779
  %v976 = vunpack.c.l.b16 %v780
  %v977 = vunpack.c.l.b16 %v781
  %v978 = vunpack.c.l.b16 %v782
  %v979 = vunpack.c.l.b16 %v783
  %v980 = vunpack.c.l.b16 %v784
  %v981 = vunpack.c.l.b16 %v785
  %v982 = vunpack.c.l.b16 %v786
  %v983 = vunpack.c.l.b16 %v787
  %v984 = vunpack.c.l.b16 %v788
  %v985 = vunpack.c.l.b16 %v789
  %v986 = vunpack.c.l.b16 %v790
  %v987 = vunpack.c.l.b16 %v791
  %v988 = vunpack.c.l.b16 %v792
  %v989 = vunpack.c.l.b16 %v793
  %v990 = vunpack.c.l.b16 %v794
  %v991 = vunpack.c.l.b16 %v795
  %v992 = vunpack.c.l.b16 %v796
  %v993 = vunpack.c.l.b16 %v797
  %v994 = vunpack.c.l.b16 %v798
  %v995 = vunpack.c.l.b16 %v799
  %v996 = vunpack.c.l.b16 %v800
  %v997 = vunpack.c.l.b16 %v801
  %v998 = vunpack.c.l.b16 %v802
  %v999 = vunpack.c.l.b16 %v803
  %v1000 = vunpack.c.l.b16 %v804
  %v1001 = vunpack.c.l.b16 %v805
  %v1002 = vunpack.c.l.b16 %v806
  %v1003 = vunpack.c.l.b16 %v807
  %v1004 = vunpack.c.l.b16 %v808
  %v1005 = vunpack.c.l.b16 %v809
  %v1006 = vunpack.c.l.b16 %v810
  %v1007 = vunpack.c.l.b16 %v811
  %v1008 = vunpack.c.l.b16 %v812
  %v1009 = vunpack.c.l.b16 %v813
  %v1010 = vunpack.c.l.b16 %v814
  %v1011 = vunpack.c.l.b16 %v815
  %v1012 = vunpack.c.l.b16 %v816
  %v1013 = vunpack.c.l.b16 %v817
  %v1014 = vunpack.c.l.b16 %v818
  %v1015 = vunpack.c.l.b16 %v819
  %v1016 = vunpack.c.l.b16 %v820
  %v1017 = vunpack.c.l.b16 %v821
  %v1018 = vunpack.c.l.b16 %v822
  %v1019 = vunpack.c.l.b16 %v823
  %v1020 = vunpack.c.l.b16 %v824
  %v1021 = vunpack.c.l.b16 %v825
  %v1022 = vunpack.c.l.b16 %v826
  %v1023 = vunpack.c.l.b16 %v827
  %v1024 = vunpack.c.l.b16 %v828
  %v1025 = vunpack.c.l.b16 %v829
  %v1026 = vunpack.c.l.b16 %v830
  %v1027 = vunpack.c.l.b16 %v831
  %v1028 = vunpack.c.l.b16 %v832
  %v1029 = vunpack.c.l.b16 %v833
  %v1030 = vunpack.c.l.b16 %v834
  %v1031 = vunpack.c.l.b16 %v835
  %v1032 = vunpack.c.l.b16 %v836
  %v1033 = vunpack.c.l.b16 %v837
  %v1034 = vunpack.c.l.b16 %v838
  %v1035 = vunpack.c.l.b16 %v839
  %v1036 = vunpack.c.l.b16 %v840
  %v1037 = vunpack.c.l.b16 %v841
  %v1038 = vunpack.c.l.b16 %v842
  %v1039 = vunpack.c.l.b16 %v843
  %v1040 = vunpack.c.l.b16 %v844
  %v1041 = vunpack.c.l.b16 %v845
  %v1042 = vunpack.c.l.b16 %v846
  %v1043 = vunpack.c.l.b16 %v847
  %v1044 = vunpack.c.l.b16 %v848
  %v1045 = vunpack.c.l.b16 %v849
  %v1046 = vunpack.c.l.b16 %v850
  %v1047 = vunpack.c.l.b16 %v851
  %v1048 = vunpack.c.l.b16 %v852
  %v1049 = vunpack.c.l.b16 %v853
  %v1050 = vunpack.c.l.b16 %v854
  %v1051 = vunpack.c.l.b16 %v855
  %v1052 = vunpack.c.l.b16 %v856
  %v1053 = vpack.c.b16 %v958, %v957
  %v1054 = vpack.c.b16 %v960, %v959
  %v1055 = vpack.c.b16 %v962, %v961
  %v1056 = vpack.c.b16 %v964, %v963
  %v1057 = vpack.c.b16 %v966, %v965
  %v1058 = vpack.c.b16 %v968, %v967
  %v1059 = vpack.c.b16 %v970, %v969
  %v1060 = vpack.c.b16 %v972, %v971
  %v1061 = vpack.c.b16 %v974, %v973
  %v1062 = vpack.c.b16 %v976, %v975
  %v1063 = vpack.c.b16 %v978, %v977
  %v1064 = vpack.c.b16 %v980, %v979
  %v1065 = vpack.c.b16 %v982, %v981
  %v1066 = vpack.c.b16 %v984, %v983
  %v1067 = vpack.c.b16 %v986, %v985
  %v1068 = vpack.c.b16 %v988, %v987
  %v1069 = vpack.c.b16 %v990, %v989
  %v1070 = vpack.c.b16 %v992, %v991
  %v1071 = vpack.c.b16 %v994, %v993
  %v1072 = vpack.c.b16 %v996, %v995
  %v1073 = vpack.c.b16 %v998, %v997
  %v1074 = vpack.c.b16 %v1000, %v999
  %v1075 = vpack.c.b16 %v1002, %v1001
  %v1076 = vpack.c.b16 %v1004, %v1003
  %v1077 = vpack.c.b16 %v1006, %v1005
  %v1078 = vpack.c.b16 %v1008, %v1007
  %v1079 = vpack.c.b16 %v1010, %v1009
  %v1080 = vpack.c.b16 %v1012, %v1011
  %v1081 = vpack.c.b16 %v1014, %v1013
  %v1082 = vpack.c.b16 %v1016, %v1015
  %v1083 = vpack.c.b16 %v1018, %v1017
  %v1084 = vpack.c.b16 %v1020, %v1019
  %v1085 = vpack.c.b16 %v1022, %v1021
  %v1086 = vpack.c.b16 %v1024, %v1023
  %v1087 = vpack.c.b16 %v1026, %v1025
  %v1088 = vpack.c.b16 %v1028, %v1027
  %v1089 = vpack.c.b16 %v1030, %v1029
  %v1090 = vpack.c.b16 %v1032, %v1031
  %v1091 = vpack.c.b16 %v1034, %v1033
  %v1092 = vpack.c.b16 %v1036, %v1035
  %v1093 = vpack.c.b16 %v1038, %v1037
  %v1094 = vpack.c.b16 %v1040, %v1039
  %v1095 = vpack.c.b16 %v1042, %v1041
  %v1096 = vpack.c.b16 %v1044, %v1043
  %v1097 = vpack.c.b16 %v1046, %v1045
  %v1098 = vpack.c.b16 %v1048, %v1047
  %v1099 = vpack.c.b16 %v1050, %v1049
  %v1100 = vpack.c.b16 %v1052, %v1051
  %1149 = vmatpush.bf16.msra.mxu0 %v1060
  %1150 = vmatpush.bf16.msra.mxu0 %v1059
  %1151 = vmatpush.bf16.msra.mxu0 %v1058
  %1152 = vmatpush.bf16.msra.mxu0 %v1057
  %1153 = vmatpush.bf16.msra.mxu0 %v1056
  %1154 = vmatpush.bf16.msra.mxu0 %v1055
  %1155 = vmatpush.bf16.msra.mxu0 %v1054
  %1156 = vmatpush.bf16.msra.mxu0 %v1053
  %1157 = vmatmul.bf16.gmra.mxu0 %v743
  %v1158 = vpop.f32.mrf.mxu0
  %v1159 = vadd.f32 %v859, %v1158
  %v1160 = vpop.f32.mrf.mxu0
  %v1161 = vadd.f32 %v859, %v1160
  %1162 = vmatmul.bf16.gmra.mxu0 %v749
  %v1163 = vpop.f32.mrf.mxu0
  %v1164 = vadd.f32 %v859, %v1163
  %v1165 = vpop.f32.mrf.mxu0
  %v1166 = vadd.f32 %v859, %v1165
  %1167 = vmatmul.bf16.gmra.mxu0 %v755
  %v1168 = vpop.f32.mrf.mxu0
  %v1169 = vadd.f32 %v859, %v1168
  %v1170 = vpop.f32.mrf.mxu0
  %1171 = vdwg.mxu0
  %1172 = vmatpush.bf16.msra.mxu0 %v1068
  %1173 = vmatpush.bf16.msra.mxu0 %v1067
  %1174 = vmatpush.bf16.msra.mxu0 %v1066
  %1175 = vmatpush.bf16.msra.mxu0 %v1065
  %1176 = vmatpush.bf16.msra.mxu0 %v1064
  %1177 = vmatpush.bf16.msra.mxu0 %v1063
  %1178 = vmatpush.bf16.msra.mxu0 %v1062
  %1179 = vmatpush.bf16.msra.mxu0 %v1061
  %1180 = vmatmul.bf16.gmra.mxu0 %v744
  %v1181 = vpop.f32.mrf.mxu0
  %v1182 = vadd.f32 %v1159, %v1181
  %v1183 = vpop.f32.mrf.mxu0
  %v1184 = vadd.f32 %v1161, %v1183
  %1185 = vmatmul.bf16.gmra.mxu0 %v750
  %v1186 = vpop.f32.mrf.mxu0
  %v1187 = vadd.f32 %v1164, %v1186
  %v1188 = vpop.f32.mrf.mxu0
  %v1189 = vadd.f32 %v1166, %v1188
  %1190 = vmatmul.bf16.gmra.mxu0 %v756
  %v1191 = vpop.f32.mrf.mxu0
  %v1192 = vadd.f32 %v1169, %v1191
  %v1193 = vpop.f32.mrf.mxu0
  %1194 = vdwg.mxu0
  %1195 = vmatpush.bf16.msra.mxu0 %v1076
  %1196 = vmatpush.bf16.msra.mxu0 %v1075
  %1197 = vmatpush.bf16.msra.mxu0 %v1074
  %1198 = vmatpush.bf16.msra.mxu0 %v1073
  %1199 = vmatpush.bf16.msra.mxu0 %v1072
  %1200 = vmatpush.bf16.msra.mxu0 %v1071
  %1201 = vmatpush.bf16.msra.mxu0 %v1070
  %1202 = vmatpush.bf16.msra.mxu0 %v1069
  %1203 = vmatmul.bf16.gmra.mxu0 %v745
  %v1204 = vpop.f32.mrf.mxu0
  %v1205 = vadd.f32 %v1182, %v1204
  %v1206 = vpop.f32.mrf.mxu0
  %v1207 = vadd.f32 %v1184, %v1206
  %1208 = vmatmul.bf16.gmra.mxu0 %v751
  %v1209 = vpop.f32.mrf.mxu0
  %v1210 = vadd.f32 %v1187, %v1209
  %v1211 = vpop.f32.mrf.mxu0
  %v1212 = vadd.f32 %v1189, %v1211
  %1213 = vmatmul.bf16.gmra.mxu0 %v757
  %v1214 = vpop.f32.mrf.mxu0
  %v1215 = vadd.f32 %v1192, %v1214
  %v1216 = vpop.f32.mrf.mxu0
  %1217 = vdwg.mxu0
  %1218 = vmatpush.bf16.msra.mxu0 %v1084
  %1219 = vmatpush.bf16.msra.mxu0 %v1083
  %1220 = vmatpush.bf16.msra.mxu0 %v1082
  %1221 = vmatpush.bf16.msra.mxu0 %v1081
  %1222 = vmatpush.bf16.msra.mxu0 %v1080
  %1223 = vmatpush.bf16.msra.mxu0 %v1079
  %1224 = vmatpush.bf16.msra.mxu0 %v1078
  %1225 = vmatpush.bf16.msra.mxu0 %v1077
  %1226 = vmatmul.bf16.gmra.mxu0 %v746
  %v1227 = vpop.f32.mrf.mxu0
  %v1228 = vadd.f32 %v1205, %v1227
  %v1229 = vpop.f32.mrf.mxu0
  %v1230 = vadd.f32 %v1207, %v1229
  %1231 = vmatmul.bf16.gmra.mxu0 %v752
  %v1232 = vpop.f32.mrf.mxu0
  %v1233 = vadd.f32 %v1210, %v1232
  %v1234 = vpop.f32.mrf.mxu0
  %v1235 = vadd.f32 %v1212, %v1234
  %1236 = vmatmul.bf16.gmra.mxu0 %v758
  %v1237 = vpop.f32.mrf.mxu0
  %v1238 = vadd.f32 %v1215, %v1237
  %v1239 = vpop.f32.mrf.mxu0
  %1240 = vdwg.mxu0
  %1241 = vmatpush.bf16.msra.mxu0 %v1092
  %1242 = vmatpush.bf16.msra.mxu0 %v1091
  %1243 = vmatpush.bf16.msra.mxu0 %v1090
  %1244 = vmatpush.bf16.msra.mxu0 %v1089
  %1245 = vmatpush.bf16.msra.mxu0 %v1088
  %1246 = vmatpush.bf16.msra.mxu0 %v1087
  %1247 = vmatpush.bf16.msra.mxu0 %v1086
  %1248 = vmatpush.bf16.msra.mxu0 %v1085
  %1249 = vmatmul.bf16.gmra.mxu0 %v747
  %v1250 = vpop.f32.mrf.mxu0
  %v1251 = vadd.f32 %v1228, %v1250
  %v1252 = vpop.f32.mrf.mxu0
  %v1253 = vadd.f32 %v1230, %v1252
  %1254 = vmatmul.bf16.gmra.mxu0 %v753
  %v1255 = vpop.f32.mrf.mxu0
  %v1256 = vadd.f32 %v1233, %v1255
  %v1257 = vpop.f32.mrf.mxu0
  %v1258 = vadd.f32 %v1235, %v1257
  %1259 = vmatmul.bf16.gmra.mxu0 %v759
  %v1260 = vpop.f32.mrf.mxu0
  %v1261 = vadd.f32 %v1238, %v1260
  %v1262 = vpop.f32.mrf.mxu0
  %1263 = vdwg.mxu0
  %1264 = vmatpush.bf16.msra.mxu0 %v1100
  %1265 = vmatpush.bf16.msra.mxu0 %v1099
  %1266 = vmatpush.bf16.msra.mxu0 %v1098
  %1267 = vmatpush.bf16.msra.mxu0 %v1097
  %1268 = vmatpush.bf16.msra.mxu0 %v1096
  %1269 = vmatpush.bf16.msra.mxu0 %v1095
  %1270 = vmatpush.bf16.msra.mxu0 %v1094
  %1271 = vmatpush.bf16.msra.mxu0 %v1093
  %1272 = vmatmul.bf16.gmra.mxu0 %v748
  %v1273 = vpop.f32.mrf.mxu0
  %v1274 = vadd.f32 %v1251, %v1273
  %v1275 = vpop.f32.mrf.mxu0
  %v1276 = vadd.f32 %v1253, %v1275
  %1277 = vmatmul.bf16.gmra.mxu0 %v754
  %v1278 = vpop.f32.mrf.mxu0
  %v1279 = vadd.f32 %v1256, %v1278
  %v1280 = vpop.f32.mrf.mxu0
  %v1281 = vadd.f32 %v1258, %v1280
  %1282 = vmatmul.bf16.gmra.mxu0 %v760
  %v1283 = vpop.f32.mrf.mxu0
  %v1284 = vadd.f32 %v1261, %v1283
  %v1285 = vpop.f32.mrf.mxu0
  %1286 = vdwg.mxu0
  %v1287 = vmax.f32 %v1274, 0.0
  %v1288 = vmax.f32 %v1276, 0.0
  %v1289 = vmax.f32 %v1279, 0.0
  %v1290 = vmax.f32 %v1281, 0.0
  %v1291 = vmax.f32 %v1284, 0.0
  %v1292 = vmul.f32 %v1287, %v651
  %v1293 = vmul.f32 %v1288, %v656
  %v1294 = vmul.f32 %v1289, %v661
  %v1295 = vmul.f32 %v1290, %v666
  %v1296 = vmul.f32 %v1291, %v671
  %1297 = vst [vmem:[#allocation3] sm:$0xff] %v1292
  %1298 = vst [vmem:[#allocation3 + $0x8] sm:$0xff] %v1293
  %1299 = vst [vmem:[#allocation3 + $0x10] sm:$0xff] %v1294
  %1300 = vst [vmem:[#allocation3 + $0x18] sm:$0xff] %v1295
  %1301 = vst [vmem:[#allocation3 + $0x20] sm:$0xff] %v1296
  %v1302 = vld [vmem:[#allocation3] sm:$0xff]
  %v1303 = vld [vmem:[#allocation3 + $0x8] sm:$0xff]
  %v1304 = vld [vmem:[#allocation3 + $0x10] sm:$0xff]
  %v1305 = vld [vmem:[#allocation3 + $0x18] sm:$0xff]
  %v1306 = vld [vmem:[#allocation3 + $0x20] sm:$0xff]
  %v1307 = vrot.slane %v1302, 7
  %v1308 = vrot.slane %v1303, 7
  %v1309 = vrot.slane %v1304, 7
  %v1310 = vrot.slane %v1305, 7
  %v1311 = vrot.slane %v1306, 7
  %v1312 = vsel %vm111, %v1310, %v1311
  %v1313 = vsel %vm111, %v1309, %v1310
  %v1314 = vsel %vm111, %v1308, %v1309
  %v1315 = vsel %vm111, %v1307, %v1308
  %v1316 = vsel %vm111, %v1311, %v1307
  %v1317 = vrot.slane %v1302, 1
  %v1318 = vrot.slane %v1303, 1
  %v1319 = vrot.slane %v1304, 1
  %v1320 = vrot.slane %v1305, 1
  %v1321 = vrot.slane %v1306, 1
  %v1322 = vsel %vm122, %v1320, %v1321
  %v1323 = vsel %vm122, %v1319, %v1320
  %v1324 = vsel %vm122, %v1318, %v1319
  %v1325 = vsel %vm122, %v1317, %v1318
  %v1326 = vsel %vm122, %v1321, %v1317
  %v1327 = vpack.c.bf16 %v1315, %v1316
  %v1328 = vpack.c.bf16 %v1303, %v1302
  %v1329 = vpack.c.bf16 %v1324, %v1325
  %v1330 = vpack.c.bf16 %v1313, %v1314
  %v1331 = vpack.c.bf16 %v1305, %v1304
  %v1332 = vpack.c.bf16 %v1322, %v1323
  %v1333 = vpack.c.bf16 %v1312, %v1312
  %v1334 = vpack.c.bf16 %v1306, %v1306
  %v1335 = vpack.c.bf16 %v1326, %v1326
  %v1336 = vld [vmem:[%s6] sm:$0xf]
  %v1337 = vld [vmem:[%s6 + $0x4] sm:$0xf]
  %v1338 = vld [vmem:[%s6 + $0x8] sm:$0xf]
  %v1339 = vld [vmem:[%s6 + $0xc] sm:$0xf]
  %v1340 = vld [vmem:[%s6 + $0x10] sm:$0xf]
  %v1341 = vld [vmem:[%s6 + $0x14] sm:$0xf]
  %v1342 = vld [vmem:[%s6 + $0x18] sm:$0xf]
  %v1343 = vld [vmem:[%s6 + $0x1c] sm:$0xf]
  %v1344 = vld [vmem:[%s6 + $0x20] sm:$0xf]
  %v1345 = vld [vmem:[%s6 + $0x24] sm:$0xf]
  %v1346 = vld [vmem:[%s6 + $0x28] sm:$0xf]
  %v1347 = vld [vmem:[%s6 + $0x2c] sm:$0xf]
  %v1348 = vld [vmem:[%s6 + $0x30] sm:$0xf]
  %v1349 = vld [vmem:[%s6 + $0x34] sm:$0xf]
  %v1350 = vld [vmem:[%s6 + $0x38] sm:$0xf]
  %v1351 = vld [vmem:[%s6 + $0x3c] sm:$0xf]
  %v1352 = vld [vmem:[%s6 + $0x40] sm:$0xf]
  %v1353 = vld [vmem:[%s6 + $0x44] sm:$0xf]
  %v1354 = vld [vmem:[%s6 + $0x48] sm:$0xf]
  %v1355 = vld [vmem:[%s6 + $0x4c] sm:$0xf]
  %v1356 = vld [vmem:[%s6 + $0x50] sm:$0xf]
  %v1357 = vld [vmem:[%s6 + $0x54] sm:$0xf]
  %v1358 = vld [vmem:[%s6 + $0x58] sm:$0xf]
  %v1359 = vld [vmem:[%s6 + $0x5c] sm:$0xf]
  %v1360 = vld [vmem:[%s6 + $0x60] sm:$0xf]
  %v1361 = vld [vmem:[%s6 + $0x64] sm:$0xf]
  %v1362 = vld [vmem:[%s6 + $0x68] sm:$0xf]
  %v1363 = vld [vmem:[%s6 + $0x6c] sm:$0xf]
  %v1364 = vld [vmem:[%s6 + $0x70] sm:$0xf]
  %v1365 = vld [vmem:[%s6 + $0x74] sm:$0xf]
  %v1366 = vld [vmem:[%s6 + $0x78] sm:$0xf]
  %v1367 = vld [vmem:[%s6 + $0x7c] sm:$0xf]
  %v1368 = vld [vmem:[%s6 + $0x80] sm:$0xf]
  %v1369 = vld [vmem:[%s6 + $0x84] sm:$0xf]
  %v1370 = vld [vmem:[%s6 + $0x88] sm:$0xf]
  %v1371 = vld [vmem:[%s6 + $0x8c] sm:$0xf]
  %v1372 = vld [vmem:[%s6 + $0x90] sm:$0xf]
  %v1373 = vld [vmem:[%s6 + $0x94] sm:$0xf]
  %v1374 = vld [vmem:[%s6 + $0x98] sm:$0xf]
  %v1375 = vld [vmem:[%s6 + $0x9c] sm:$0xf]
  %v1376 = vld [vmem:[%s6 + $0xa0] sm:$0xf]
  %v1377 = vld [vmem:[%s6 + $0xa4] sm:$0xf]
  %v1378 = vld [vmem:[%s6 + $0xa8] sm:$0xf]
  %v1379 = vld [vmem:[%s6 + $0xac] sm:$0xf]
  %v1380 = vld [vmem:[%s6 + $0xb0] sm:$0xf]
  %v1381 = vld [vmem:[%s6 + $0xb4] sm:$0xf]
  %v1382 = vld [vmem:[%s6 + $0xb8] sm:$0xf]
  %v1383 = vld [vmem:[%s6 + $0xbc] sm:$0xf]
  %v1384 = vld [vmem:[%s7] sm:$0x1]
  %v1386 = vperm.slane %v1384, 0
  %v1436 = vunpack.c.l.b16 %v1336
  %v1437 = vunpack.c.l.b16 %v1337
  %v1438 = vunpack.c.l.b16 %v1338
  %v1439 = vunpack.c.l.b16 %v1339
  %v1440 = vunpack.c.l.b16 %v1340
  %v1441 = vunpack.c.l.b16 %v1341
  %v1442 = vunpack.c.l.b16 %v1342
  %v1443 = vunpack.c.l.b16 %v1343
  %v1444 = vunpack.c.l.b16 %v1344
  %v1445 = vunpack.c.l.b16 %v1345
  %v1446 = vunpack.c.l.b16 %v1346
  %v1447 = vunpack.c.l.b16 %v1347
  %v1448 = vunpack.c.l.b16 %v1348
  %v1449 = vunpack.c.l.b16 %v1349
  %v1450 = vunpack.c.l.b16 %v1350
  %v1451 = vunpack.c.l.b16 %v1351
  %v1452 = vunpack.c.l.b16 %v1352
  %v1453 = vunpack.c.l.b16 %v1353
  %v1454 = vunpack.c.l.b16 %v1354
  %v1455 = vunpack.c.l.b16 %v1355
  %v1456 = vunpack.c.l.b16 %v1356
  %v1457 = vunpack.c.l.b16 %v1357
  %v1458 = vunpack.c.l.b16 %v1358
  %v1459 = vunpack.c.l.b16 %v1359
  %v1460 = vunpack.c.l.b16 %v1360
  %v1461 = vunpack.c.l.b16 %v1361
  %v1462 = vunpack.c.l.b16 %v1362
  %v1463 = vunpack.c.l.b16 %v1363
  %v1464 = vunpack.c.l.b16 %v1364
  %v1465 = vunpack.c.l.b16 %v1365
  %v1466 = vunpack.c.l.b16 %v1366
  %v1467 = vunpack.c.l.b16 %v1367
  %v1468 = vunpack.c.l.b16 %v1368
  %v1469 = vunpack.c.l.b16 %v1369
  %v1470 = vunpack.c.l.b16 %v1370
  %v1471 = vunpack.c.l.b16 %v1371
  %v1472 = vunpack.c.l.b16 %v1372
  %v1473 = vunpack.c.l.b16 %v1373
  %v1474 = vunpack.c.l.b16 %v1374
  %v1475 = vunpack.c.l.b16 %v1375
  %v1476 = vunpack.c.l.b16 %v1376
  %v1477 = vunpack.c.l.b16 %v1377
  %v1478 = vunpack.c.l.b16 %v1378
  %v1479 = vunpack.c.l.b16 %v1379
  %v1480 = vunpack.c.l.b16 %v1380
  %v1481 = vunpack.c.l.b16 %v1381
  %v1482 = vunpack.c.l.b16 %v1382
  %v1483 = vunpack.c.l.b16 %v1383
  %v1484 = vpack.c.b16 %v1437, %v1436
  %v1485 = vpack.c.b16 %v1439, %v1438
  %v1486 = vpack.c.b16 %v1441, %v1440
  %v1487 = vpack.c.b16 %v1443, %v1442
  %v1488 = vpack.c.b16 %v1445, %v1444
  %v1489 = vpack.c.b16 %v1447, %v1446
  %v1490 = vpack.c.b16 %v1449, %v1448
  %v1491 = vpack.c.b16 %v1451, %v1450
  %v1492 = vpack.c.b16 %v1453, %v1452
  %v1493 = vpack.c.b16 %v1455, %v1454
  %v1494 = vpack.c.b16 %v1457, %v1456
  %v1495 = vpack.c.b16 %v1459, %v1458
  %v1496 = vpack.c.b16 %v1461, %v1460
  %v1497 = vpack.c.b16 %v1463, %v1462
  %v1498 = vpack.c.b16 %v1465, %v1464
  %v1499 = vpack.c.b16 %v1467, %v1466
  %v1500 = vpack.c.b16 %v1469, %v1468
  %v1501 = vpack.c.b16 %v1471, %v1470
  %v1502 = vpack.c.b16 %v1473, %v1472
  %v1503 = vpack.c.b16 %v1475, %v1474
  %v1504 = vpack.c.b16 %v1477, %v1476
  %v1505 = vpack.c.b16 %v1479, %v1478
  %v1506 = vpack.c.b16 %v1481, %v1480
  %v1507 = vpack.c.b16 %v1483, %v1482
  %1532 = vmatpush.bf16.msra.mxu0 %v1491
  %1533 = vmatpush.bf16.msra.mxu0 %v1490
  %1534 = vmatpush.bf16.msra.mxu0 %v1489
  %1535 = vmatpush.bf16.msra.mxu0 %v1488
  %1536 = vmatpush.bf16.msra.mxu0 %v1487
  %1537 = vmatpush.bf16.msra.mxu0 %v1486
  %1538 = vmatpush.bf16.msra.mxu0 %v1485
  %1539 = vmatpush.bf16.msra.mxu0 %v1484
  %1540 = vmatmul.bf16.gmra.mxu0 %v1327
  %v1541 = vpop.f32.mrf.mxu0
  %v1542 = vadd.f32 %v1386, %v1541
  %v1543 = vpop.f32.mrf.mxu0
  %v1544 = vadd.f32 %v1386, %v1543
  %1545 = vmatmul.bf16.gmra.mxu0 %v1330
  %v1546 = vpop.f32.mrf.mxu0
  %v1547 = vadd.f32 %v1386, %v1546
  %v1548 = vpop.f32.mrf.mxu0
  %v1549 = vadd.f32 %v1386, %v1548
  %1550 = vmatmul.bf16.gmra.mxu0 %v1333
  %v1551 = vpop.f32.mrf.mxu0
  %v1552 = vadd.f32 %v1386, %v1551
  %v1553 = vpop.f32.mrf.mxu0
  %1554 = vdwg.mxu0
  %1555 = vmatpush.bf16.msra.mxu0 %v1499
  %1556 = vmatpush.bf16.msra.mxu0 %v1498
  %1557 = vmatpush.bf16.msra.mxu0 %v1497
  %1558 = vmatpush.bf16.msra.mxu0 %v1496
  %1559 = vmatpush.bf16.msra.mxu0 %v1495
  %1560 = vmatpush.bf16.msra.mxu0 %v1494
  %1561 = vmatpush.bf16.msra.mxu0 %v1493
  %1562 = vmatpush.bf16.msra.mxu0 %v1492
  %1563 = vmatmul.bf16.gmra.mxu0 %v1328
  %v1564 = vpop.f32.mrf.mxu0
  %v1565 = vadd.f32 %v1542, %v1564
  %v1566 = vpop.f32.mrf.mxu0
  %v1567 = vadd.f32 %v1544, %v1566
  %1568 = vmatmul.bf16.gmra.mxu0 %v1331
  %v1569 = vpop.f32.mrf.mxu0
  %v1570 = vadd.f32 %v1547, %v1569
  %v1571 = vpop.f32.mrf.mxu0
  %v1572 = vadd.f32 %v1549, %v1571
  %1573 = vmatmul.bf16.gmra.mxu0 %v1334
  %v1574 = vpop.f32.mrf.mxu0
  %v1575 = vadd.f32 %v1552, %v1574
  %v1576 = vpop.f32.mrf.mxu0
  %1577 = vdwg.mxu0
  %1578 = vmatpush.bf16.msra.mxu0 %v1507
  %1579 = vmatpush.bf16.msra.mxu0 %v1506
  %1580 = vmatpush.bf16.msra.mxu0 %v1505
  %1581 = vmatpush.bf16.msra.mxu0 %v1504
  %1582 = vmatpush.bf16.msra.mxu0 %v1503
  %1583 = vmatpush.bf16.msra.mxu0 %v1502
  %1584 = vmatpush.bf16.msra.mxu0 %v1501
  %1585 = vmatpush.bf16.msra.mxu0 %v1500
  %1586 = vmatmul.bf16.gmra.mxu0 %v1329
  %v1587 = vpop.f32.mrf.mxu0
  %v1588 = vadd.f32 %v1565, %v1587
  %v1589 = vpop.f32.mrf.mxu0
  %v1590 = vadd.f32 %v1567, %v1589
  %1591 = vmatmul.bf16.gmra.mxu0 %v1332
  %v1592 = vpop.f32.mrf.mxu0
  %v1593 = vadd.f32 %v1570, %v1592
  %v1594 = vpop.f32.mrf.mxu0
  %v1595 = vadd.f32 %v1572, %v1594
  %1596 = vmatmul.bf16.gmra.mxu0 %v1335
  %v1597 = vpop.f32.mrf.mxu0
  %v1598 = vadd.f32 %v1575, %v1597
  %v1599 = vpop.f32.mrf.mxu0
  %1600 = vdwg.mxu0
  %v1601 = vmax.f32 %v1588, 0.0
  %v1602 = vmax.f32 %v1590, 0.0
  %v1603 = vmax.f32 %v1593, 0.0
  %v1604 = vmax.f32 %v1595, 0.0
  %v1605 = vmax.f32 %v1598, 0.0
  %v1606 = vmul.f32 %v1601, %v651
  %v1607 = vmul.f32 %v1602, %v656
  %v1608 = vmul.f32 %v1603, %v661
  %v1609 = vmul.f32 %v1604, %v666
  %v1610 = vmul.f32 %v1605, %v671
  %1611 = vst [vmem:[#allocation4] sm:$0xff] %v1606
  %1612 = vst [vmem:[#allocation4 + $0x8] sm:$0xff] %v1607
  %1613 = vst [vmem:[#allocation4 + $0x10] sm:$0xff] %v1608
  %1614 = vst [vmem:[#allocation4 + $0x18] sm:$0xff] %v1609
  %1615 = vst [vmem:[#allocation4 + $0x20] sm:$0xff] %v1610
  %v1616 = vld [vmem:[#allocation4] sm:$0xff]
  %v1617 = vld [vmem:[#allocation4 + $0x8] sm:$0xff]
  %v1618 = vld [vmem:[#allocation4 + $0x10] sm:$0xff]
  %v1619 = vld [vmem:[#allocation4 + $0x18] sm:$0xff]
  %v1620 = vld [vmem:[#allocation4 + $0x20] sm:$0xff]
  %v1621 = vrot.slane %v1616, 7
  %v1622 = vrot.slane %v1617, 7
  %v1623 = vrot.slane %v1618, 7
  %v1624 = vrot.slane %v1619, 7
  %v1625 = vrot.slane %v1620, 7
  %v1626 = vsel %vm111, %v1624, %v1625
  %v1627 = vsel %vm111, %v1623, %v1624
  %v1628 = vsel %vm111, %v1622, %v1623
  %v1629 = vsel %vm111, %v1621, %v1622
  %v1630 = vsel %vm111, %v1625, %v1621
  %v1631 = vrot.slane %v1616, 1
  %v1632 = vrot.slane %v1617, 1
  %v1633 = vrot.slane %v1618, 1
  %v1634 = vrot.slane %v1619, 1
  %v1635 = vrot.slane %v1620, 1
  %v1636 = vsel %vm122, %v1634, %v1635
  %v1637 = vsel %vm122, %v1633, %v1634
  %v1638 = vsel %vm122, %v1632, %v1633
  %v1639 = vsel %vm122, %v1631, %v1632
  %v1640 = vsel %vm122, %v1635, %v1631
  %v1641 = vpack.c.bf16 %v1629, %v1630
  %v1642 = vpack.c.bf16 %v1617, %v1616
  %v1643 = vpack.c.bf16 %v1638, %v1639
  %v1644 = vpack.c.bf16 %v1627, %v1628
  %v1645 = vpack.c.bf16 %v1619, %v1618
  %v1646 = vpack.c.bf16 %v1636, %v1637
  %v1647 = vpack.c.bf16 %v1626, %v1626
  %v1648 = vpack.c.bf16 %v1620, %v1620
  %v1649 = vpack.c.bf16 %v1640, %v1640
  %v1650 = vld [vmem:[%s8] sm:$0xf]
  %v1651 = vld [vmem:[%s8 + $0x4] sm:$0xf]
  %v1652 = vld [vmem:[%s8 + $0x8] sm:$0xf]
  %v1653 = vld [vmem:[%s8 + $0xc] sm:$0xf]
  %v1654 = vld [vmem:[%s8 + $0x10] sm:$0xf]
  %v1655 = vld [vmem:[%s8 + $0x14] sm:$0xf]
  %v1656 = vld [vmem:[%s8 + $0x18] sm:$0xf]
  %v1657 = vld [vmem:[%s8 + $0x1c] sm:$0xf]
  %v1658 = vld [vmem:[%s8 + $0x20] sm:$0xf]
  %v1659 = vld [vmem:[%s8 + $0x24] sm:$0xf]
  %v1660 = vld [vmem:[%s8 + $0x28] sm:$0xf]
  %v1661 = vld [vmem:[%s8 + $0x2c] sm:$0xf]
  %v1662 = vld [vmem:[%s8 + $0x30] sm:$0xf]
  %v1663 = vld [vmem:[%s8 + $0x34] sm:$0xf]
  %v1664 = vld [vmem:[%s8 + $0x38] sm:$0xf]
  %v1665 = vld [vmem:[%s8 + $0x3c] sm:$0xf]
  %v1666 = vld [vmem:[%s8 + $0x40] sm:$0xf]
  %v1667 = vld [vmem:[%s8 + $0x44] sm:$0xf]
  %v1668 = vld [vmem:[%s8 + $0x48] sm:$0xf]
  %v1669 = vld [vmem:[%s8 + $0x4c] sm:$0xf]
  %v1670 = vld [vmem:[%s8 + $0x50] sm:$0xf]
  %v1671 = vld [vmem:[%s8 + $0x54] sm:$0xf]
  %v1672 = vld [vmem:[%s8 + $0x58] sm:$0xf]
  %v1673 = vld [vmem:[%s8 + $0x5c] sm:$0xf]
  %v1674 = vld [vmem:[%s8 + $0x60] sm:$0xf]
  %v1675 = vld [vmem:[%s8 + $0x64] sm:$0xf]
  %v1676 = vld [vmem:[%s8 + $0x68] sm:$0xf]
  %v1677 = vld [vmem:[%s8 + $0x6c] sm:$0xf]
  %v1678 = vld [vmem:[%s8 + $0x70] sm:$0xf]
  %v1679 = vld [vmem:[%s8 + $0x74] sm:$0xf]
  %v1680 = vld [vmem:[%s8 + $0x78] sm:$0xf]
  %v1681 = vld [vmem:[%s8 + $0x7c] sm:$0xf]
  %v1682 = vld [vmem:[%s8 + $0x80] sm:$0xf]
  %v1683 = vld [vmem:[%s8 + $0x84] sm:$0xf]
  %v1684 = vld [vmem:[%s8 + $0x88] sm:$0xf]
  %v1685 = vld [vmem:[%s8 + $0x8c] sm:$0xf]
  %v1686 = vld [vmem:[%s8 + $0x90] sm:$0xf]
  %v1687 = vld [vmem:[%s8 + $0x94] sm:$0xf]
  %v1688 = vld [vmem:[%s8 + $0x98] sm:$0xf]
  %v1689 = vld [vmem:[%s8 + $0x9c] sm:$0xf]
  %v1690 = vld [vmem:[%s8 + $0xa0] sm:$0xf]
  %v1691 = vld [vmem:[%s8 + $0xa4] sm:$0xf]
  %v1692 = vld [vmem:[%s8 + $0xa8] sm:$0xf]
  %v1693 = vld [vmem:[%s8 + $0xac] sm:$0xf]
  %v1694 = vld [vmem:[%s8 + $0xb0] sm:$0xf]
  %v1695 = vld [vmem:[%s8 + $0xb4] sm:$0xf]
  %v1696 = vld [vmem:[%s8 + $0xb8] sm:$0xf]
  %v1697 = vld [vmem:[%s8 + $0xbc] sm:$0xf]
  %v1698 = vld [vmem:[%s9] sm:$0x1]
  %v1700 = vperm.slane %v1698, 0
  %v1750 = vunpack.c.l.b16 %v1650
  %v1751 = vunpack.c.l.b16 %v1651
  %v1752 = vunpack.c.l.b16 %v1652
  %v1753 = vunpack.c.l.b16 %v1653
  %v1754 = vunpack.c.l.b16 %v1654
  %v1755 = vunpack.c.l.b16 %v1655
  %v1756 = vunpack.c.l.b16 %v1656
  %v1757 = vunpack.c.l.b16 %v1657
  %v1758 = vunpack.c.l.b16 %v1658
  %v1759 = vunpack.c.l.b16 %v1659
  %v1760 = vunpack.c.l.b16 %v1660
  %v1761 = vunpack.c.l.b16 %v1661
  %v1762 = vunpack.c.l.b16 %v1662
  %v1763 = vunpack.c.l.b16 %v1663
  %v1764 = vunpack.c.l.b16 %v1664
  %v1765 = vunpack.c.l.b16 %v1665
  %v1766 = vunpack.c.l.b16 %v1666
  %v1767 = vunpack.c.l.b16 %v1667
  %v1768 = vunpack.c.l.b16 %v1668
  %v1769 = vunpack.c.l.b16 %v1669
  %v1770 = vunpack.c.l.b16 %v1670
  %v1771 = vunpack.c.l.b16 %v1671
  %v1772 = vunpack.c.l.b16 %v1672
  %v1773 = vunpack.c.l.b16 %v1673
  %v1774 = vunpack.c.l.b16 %v1674
  %v1775 = vunpack.c.l.b16 %v1675
  %v1776 = vunpack.c.l.b16 %v1676
  %v1777 = vunpack.c.l.b16 %v1677
  %v1778 = vunpack.c.l.b16 %v1678
  %v1779 = vunpack.c.l.b16 %v1679
  %v1780 = vunpack.c.l.b16 %v1680
  %v1781 = vunpack.c.l.b16 %v1681
  %v1782 = vunpack.c.l.b16 %v1682
  %v1783 = vunpack.c.l.b16 %v1683
  %v1784 = vunpack.c.l.b16 %v1684
  %v1785 = vunpack.c.l.b16 %v1685
  %v1786 = vunpack.c.l.b16 %v1686
  %v1787 = vunpack.c.l.b16 %v1687
  %v1788 = vunpack.c.l.b16 %v1688
  %v1789 = vunpack.c.l.b16 %v1689
  %v1790 = vunpack.c.l.b16 %v1690
  %v1791 = vunpack.c.l.b16 %v1691
  %v1792 = vunpack.c.l.b16 %v1692
  %v1793 = vunpack.c.l.b16 %v1693
  %v1794 = vunpack.c.l.b16 %v1694
  %v1795 = vunpack.c.l.b16 %v1695
  %v1796 = vunpack.c.l.b16 %v1696
  %v1797 = vunpack.c.l.b16 %v1697
  %v1798 = vpack.c.b16 %v1751, %v1750
  %v1799 = vpack.c.b16 %v1753, %v1752
  %v1800 = vpack.c.b16 %v1755, %v1754
  %v1801 = vpack.c.b16 %v1757, %v1756
  %v1802 = vpack.c.b16 %v1759, %v1758
  %v1803 = vpack.c.b16 %v1761, %v1760
  %v1804 = vpack.c.b16 %v1763, %v1762
  %v1805 = vpack.c.b16 %v1765, %v1764
  %v1806 = vpack.c.b16 %v1767, %v1766
  %v1807 = vpack.c.b16 %v1769, %v1768
  %v1808 = vpack.c.b16 %v1771, %v1770
  %v1809 = vpack.c.b16 %v1773, %v1772
  %v1810 = vpack.c.b16 %v1775, %v1774
  %v1811 = vpack.c.b16 %v1777, %v1776
  %v1812 = vpack.c.b16 %v1779, %v1778
  %v1813 = vpack.c.b16 %v1781, %v1780
  %v1814 = vpack.c.b16 %v1783, %v1782
  %v1815 = vpack.c.b16 %v1785, %v1784
  %v1816 = vpack.c.b16 %v1787, %v1786
  %v1817 = vpack.c.b16 %v1789, %v1788
  %v1818 = vpack.c.b16 %v1791, %v1790
  %v1819 = vpack.c.b16 %v1793, %v1792
  %v1820 = vpack.c.b16 %v1795, %v1794
  %v1821 = vpack.c.b16 %v1797, %v1796
  %1846 = vmatpush.bf16.msra.mxu0 %v1805
  %1847 = vmatpush.bf16.msra.mxu0 %v1804
  %1848 = vmatpush.bf16.msra.mxu0 %v1803
  %1849 = vmatpush.bf16.msra.mxu0 %v1802
  %1850 = vmatpush.bf16.msra.mxu0 %v1801
  %1851 = vmatpush.bf16.msra.mxu0 %v1800
  %1852 = vmatpush.bf16.msra.mxu0 %v1799
  %1853 = vmatpush.bf16.msra.mxu0 %v1798
  %1854 = vmatmul.bf16.gmra.mxu0 %v1641
  %v1855 = vpop.f32.mrf.mxu0
  %v1856 = vadd.f32 %v1700, %v1855
  %v1857 = vpop.f32.mrf.mxu0
  %v1858 = vadd.f32 %v1700, %v1857
  %1859 = vmatmul.bf16.gmra.mxu0 %v1644
  %v1860 = vpop.f32.mrf.mxu0
  %v1861 = vadd.f32 %v1700, %v1860
  %v1862 = vpop.f32.mrf.mxu0
  %v1863 = vadd.f32 %v1700, %v1862
  %1864 = vmatmul.bf16.gmra.mxu0 %v1647
  %v1865 = vpop.f32.mrf.mxu0
  %v1866 = vadd.f32 %v1700, %v1865
  %v1867 = vpop.f32.mrf.mxu0
  %1868 = vdwg.mxu0
  %1869 = vmatpush.bf16.msra.mxu0 %v1813
  %1870 = vmatpush.bf16.msra.mxu0 %v1812
  %1871 = vmatpush.bf16.msra.mxu0 %v1811
  %1872 = vmatpush.bf16.msra.mxu0 %v1810
  %1873 = vmatpush.bf16.msra.mxu0 %v1809
  %1874 = vmatpush.bf16.msra.mxu0 %v1808
  %1875 = vmatpush.bf16.msra.mxu0 %v1807
  %1876 = vmatpush.bf16.msra.mxu0 %v1806
  %1877 = vmatmul.bf16.gmra.mxu0 %v1642
  %v1878 = vpop.f32.mrf.mxu0
  %v1879 = vadd.f32 %v1856, %v1878
  %v1880 = vpop.f32.mrf.mxu0
  %v1881 = vadd.f32 %v1858, %v1880
  %1882 = vmatmul.bf16.gmra.mxu0 %v1645
  %v1883 = vpop.f32.mrf.mxu0
  %v1884 = vadd.f32 %v1861, %v1883
  %v1885 = vpop.f32.mrf.mxu0
  %v1886 = vadd.f32 %v1863, %v1885
  %1887 = vmatmul.bf16.gmra.mxu0 %v1648
  %v1888 = vpop.f32.mrf.mxu0
  %v1889 = vadd.f32 %v1866, %v1888
  %v1890 = vpop.f32.mrf.mxu0
  %1891 = vdwg.mxu0
  %1892 = vmatpush.bf16.msra.mxu0 %v1821
  %1893 = vmatpush.bf16.msra.mxu0 %v1820
  %1894 = vmatpush.bf16.msra.mxu0 %v1819
  %1895 = vmatpush.bf16.msra.mxu0 %v1818
  %1896 = vmatpush.bf16.msra.mxu0 %v1817
  %1897 = vmatpush.bf16.msra.mxu0 %v1816
  %1898 = vmatpush.bf16.msra.mxu0 %v1815
  %1899 = vmatpush.bf16.msra.mxu0 %v1814
  %1900 = vmatmul.bf16.gmra.mxu0 %v1643
  %v1901 = vpop.f32.mrf.mxu0
  %v1902 = vadd.f32 %v1879, %v1901
  %v1903 = vpop.f32.mrf.mxu0
  %v1904 = vadd.f32 %v1881, %v1903
  %1905 = vmatmul.bf16.gmra.mxu0 %v1646
  %v1906 = vpop.f32.mrf.mxu0
  %v1907 = vadd.f32 %v1884, %v1906
  %v1908 = vpop.f32.mrf.mxu0
  %v1909 = vadd.f32 %v1886, %v1908
  %1910 = vmatmul.bf16.gmra.mxu0 %v1649
  %v1911 = vpop.f32.mrf.mxu0
  %v1912 = vadd.f32 %v1889, %v1911
  %v1913 = vpop.f32.mrf.mxu0
  %1914 = vdwg.mxu0
  %v1915 = vmax.f32 %v1902, 0.0
  %v1916 = vmax.f32 %v1904, 0.0
  %v1917 = vmax.f32 %v1907, 0.0
  %v1918 = vmax.f32 %v1909, 0.0
  %v1919 = vmax.f32 %v1912, 0.0
  %v1920 = vmul.f32 %v1915, %v651
  %v1921 = vmul.f32 %v1916, %v656
  %v1922 = vmul.f32 %v1917, %v661
  %v1923 = vmul.f32 %v1918, %v666
  %v1924 = vmul.f32 %v1919, %v671
  %1925 = vst [vmem:[#allocation3] sm:$0xff] %v1920
  %1926 = vst [vmem:[#allocation3 + $0x8] sm:$0xff] %v1921
  %1927 = vst [vmem:[#allocation3 + $0x10] sm:$0xff] %v1922
  %1928 = vst [vmem:[#allocation3 + $0x18] sm:$0xff] %v1923
  %1929 = vst [vmem:[#allocation3 + $0x20] sm:$0xff] %v1924
  %v1930 = vld [vmem:[#allocation3] sm:$0xff]
  %v1931 = vld [vmem:[#allocation3 + $0x8] sm:$0xff]
  %v1932 = vld [vmem:[#allocation3 + $0x10] sm:$0xff]
  %v1933 = vld [vmem:[#allocation3 + $0x18] sm:$0xff]
  %v1934 = vld [vmem:[#allocation3 + $0x20] sm:$0xff]
  %v1935 = vrot.slane %v1930, 7
  %v1936 = vrot.slane %v1931, 7
  %v1937 = vrot.slane %v1932, 7
  %v1938 = vrot.slane %v1933, 7
  %v1939 = vrot.slane %v1934, 7
  %v1940 = vsel %vm111, %v1938, %v1939
  %v1941 = vsel %vm111, %v1937, %v1938
  %v1942 = vsel %vm111, %v1936, %v1937
  %v1943 = vsel %vm111, %v1935, %v1936
  %v1944 = vsel %vm111, %v1939, %v1935
  %v1945 = vrot.slane %v1930, 1
  %v1946 = vrot.slane %v1931, 1
  %v1947 = vrot.slane %v1932, 1
  %v1948 = vrot.slane %v1933, 1
  %v1949 = vrot.slane %v1934, 1
  %v1950 = vsel %vm122, %v1948, %v1949
  %v1951 = vsel %vm122, %v1947, %v1948
  %v1952 = vsel %vm122, %v1946, %v1947
  %v1953 = vsel %vm122, %v1945, %v1946
  %v1954 = vsel %vm122, %v1949, %v1945
  %v1955 = vpack.c.bf16 %v1943, %v1944
  %v1956 = vpack.c.bf16 %v1931, %v1930
  %v1957 = vpack.c.bf16 %v1952, %v1953
  %v1958 = vpack.c.bf16 %v1941, %v1942
  %v1959 = vpack.c.bf16 %v1933, %v1932
  %v1960 = vpack.c.bf16 %v1950, %v1951
  %v1961 = vpack.c.bf16 %v1940, %v1940
  %v1962 = vpack.c.bf16 %v1934, %v1934
  %v1963 = vpack.c.bf16 %v1954, %v1954
  %v1964 = vld [vmem:[%s10] sm:$0xf]
  %v1965 = vld [vmem:[%s10 + $0x4] sm:$0xf]
  %v1966 = vld [vmem:[%s10 + $0x8] sm:$0xf]
  %v1967 = vld [vmem:[%s10 + $0xc] sm:$0xf]
  %v1968 = vld [vmem:[%s10 + $0x10] sm:$0xf]
  %v1969 = vld [vmem:[%s10 + $0x14] sm:$0xf]
  %v1970 = vld [vmem:[%s10 + $0x18] sm:$0xf]
  %v1971 = vld [vmem:[%s10 + $0x1c] sm:$0xf]
  %v1972 = vld [vmem:[%s10 + $0x20] sm:$0xf]
  %v1973 = vld [vmem:[%s10 + $0x24] sm:$0xf]
  %v1974 = vld [vmem:[%s10 + $0x28] sm:$0xf]
  %v1975 = vld [vmem:[%s10 + $0x2c] sm:$0xf]
  %v1976 = vld [vmem:[%s10 + $0x30] sm:$0xf]
  %v1977 = vld [vmem:[%s10 + $0x34] sm:$0xf]
  %v1978 = vld [vmem:[%s10 + $0x38] sm:$0xf]
  %v1979 = vld [vmem:[%s10 + $0x3c] sm:$0xf]
  %v1980 = vld [vmem:[%s10 + $0x40] sm:$0xf]
  %v1981 = vld [vmem:[%s10 + $0x44] sm:$0xf]
  %v1982 = vld [vmem:[%s10 + $0x48] sm:$0xf]
  %v1983 = vld [vmem:[%s10 + $0x4c] sm:$0xf]
  %v1984 = vld [vmem:[%s10 + $0x50] sm:$0xf]
  %v1985 = vld [vmem:[%s10 + $0x54] sm:$0xf]
  %v1986 = vld [vmem:[%s10 + $0x58] sm:$0xf]
  %v1987 = vld [vmem:[%s10 + $0x5c] sm:$0xf]
  %v1988 = vld [vmem:[%s10 + $0x60] sm:$0xf]
  %v1989 = vld [vmem:[%s10 + $0x64] sm:$0xf]
  %v1990 = vld [vmem:[%s10 + $0x68] sm:$0xf]
  %v1991 = vld [vmem:[%s10 + $0x6c] sm:$0xf]
  %v1992 = vld [vmem:[%s10 + $0x70] sm:$0xf]
  %v1993 = vld [vmem:[%s10 + $0x74] sm:$0xf]
  %v1994 = vld [vmem:[%s10 + $0x78] sm:$0xf]
  %v1995 = vld [vmem:[%s10 + $0x7c] sm:$0xf]
  %v1996 = vld [vmem:[%s10 + $0x80] sm:$0xf]
  %v1997 = vld [vmem:[%s10 + $0x84] sm:$0xf]
  %v1998 = vld [vmem:[%s10 + $0x88] sm:$0xf]
  %v1999 = vld [vmem:[%s10 + $0x8c] sm:$0xf]
  %v2000 = vld [vmem:[%s10 + $0x90] sm:$0xf]
  %v2001 = vld [vmem:[%s10 + $0x94] sm:$0xf]
  %v2002 = vld [vmem:[%s10 + $0x98] sm:$0xf]
  %v2003 = vld [vmem:[%s10 + $0x9c] sm:$0xf]
  %v2004 = vld [vmem:[%s10 + $0xa0] sm:$0xf]
  %v2005 = vld [vmem:[%s10 + $0xa4] sm:$0xf]
  %v2006 = vld [vmem:[%s10 + $0xa8] sm:$0xf]
  %v2007 = vld [vmem:[%s10 + $0xac] sm:$0xf]
  %v2008 = vld [vmem:[%s10 + $0xb0] sm:$0xf]
  %v2009 = vld [vmem:[%s10 + $0xb4] sm:$0xf]
  %v2010 = vld [vmem:[%s10 + $0xb8] sm:$0xf]
  %v2011 = vld [vmem:[%s10 + $0xbc] sm:$0xf]
  %v2012 = vld [vmem:[%s11] sm:$0x1]
  %v2014 = vperm.slane %v2012, 0
  %v2064 = vunpack.c.l.b16 %v1964
  %v2065 = vunpack.c.l.b16 %v1965
  %v2066 = vunpack.c.l.b16 %v1966
  %v2067 = vunpack.c.l.b16 %v1967
  %v2068 = vunpack.c.l.b16 %v1968
  %v2069 = vunpack.c.l.b16 %v1969
  %v2070 = vunpack.c.l.b16 %v1970
  %v2071 = vunpack.c.l.b16 %v1971
  %v2072 = vunpack.c.l.b16 %v1972
  %v2073 = vunpack.c.l.b16 %v1973
  %v2074 = vunpack.c.l.b16 %v1974
  %v2075 = vunpack.c.l.b16 %v1975
  %v2076 = vunpack.c.l.b16 %v1976
  %v2077 = vunpack.c.l.b16 %v1977
  %v2078 = vunpack.c.l.b16 %v1978
  %v2079 = vunpack.c.l.b16 %v1979
  %v2080 = vunpack.c.l.b16 %v1980
  %v2081 = vunpack.c.l.b16 %v1981
  %v2082 = vunpack.c.l.b16 %v1982
  %v2083 = vunpack.c.l.b16 %v1983
  %v2084 = vunpack.c.l.b16 %v1984
  %v2085 = vunpack.c.l.b16 %v1985
  %v2086 = vunpack.c.l.b16 %v1986
  %v2087 = vunpack.c.l.b16 %v1987
  %v2088 = vunpack.c.l.b16 %v1988
  %v2089 = vunpack.c.l.b16 %v1989
  %v2090 = vunpack.c.l.b16 %v1990
  %v2091 = vunpack.c.l.b16 %v1991
  %v2092 = vunpack.c.l.b16 %v1992
  %v2093 = vunpack.c.l.b16 %v1993
  %v2094 = vunpack.c.l.b16 %v1994
  %v2095 = vunpack.c.l.b16 %v1995
  %v2096 = vunpack.c.l.b16 %v1996
  %v2097 = vunpack.c.l.b16 %v1997
  %v2098 = vunpack.c.l.b16 %v1998
  %v2099 = vunpack.c.l.b16 %v1999
  %v2100 = vunpack.c.l.b16 %v2000
  %v2101 = vunpack.c.l.b16 %v2001
  %v2102 = vunpack.c.l.b16 %v2002
  %v2103 = vunpack.c.l.b16 %v2003
  %v2104 = vunpack.c.l.b16 %v2004
  %v2105 = vunpack.c.l.b16 %v2005
  %v2106 = vunpack.c.l.b16 %v2006
  %v2107 = vunpack.c.l.b16 %v2007
  %v2108 = vunpack.c.l.b16 %v2008
  %v2109 = vunpack.c.l.b16 %v2009
  %v2110 = vunpack.c.l.b16 %v2010
  %v2111 = vunpack.c.l.b16 %v2011
  %v2112 = vpack.c.b16 %v2065, %v2064
  %v2113 = vpack.c.b16 %v2067, %v2066
  %v2114 = vpack.c.b16 %v2069, %v2068
  %v2115 = vpack.c.b16 %v2071, %v2070
  %v2116 = vpack.c.b16 %v2073, %v2072
  %v2117 = vpack.c.b16 %v2075, %v2074
  %v2118 = vpack.c.b16 %v2077, %v2076
  %v2119 = vpack.c.b16 %v2079, %v2078
  %v2120 = vpack.c.b16 %v2081, %v2080
  %v2121 = vpack.c.b16 %v2083, %v2082
  %v2122 = vpack.c.b16 %v2085, %v2084
  %v2123 = vpack.c.b16 %v2087, %v2086
  %v2124 = vpack.c.b16 %v2089, %v2088
  %v2125 = vpack.c.b16 %v2091, %v2090
  %v2126 = vpack.c.b16 %v2093, %v2092
  %v2127 = vpack.c.b16 %v2095, %v2094
  %v2128 = vpack.c.b16 %v2097, %v2096
  %v2129 = vpack.c.b16 %v2099, %v2098
  %v2130 = vpack.c.b16 %v2101, %v2100
  %v2131 = vpack.c.b16 %v2103, %v2102
  %v2132 = vpack.c.b16 %v2105, %v2104
  %v2133 = vpack.c.b16 %v2107, %v2106
  %v2134 = vpack.c.b16 %v2109, %v2108
  %v2135 = vpack.c.b16 %v2111, %v2110
  %2160 = vmatpush.bf16.msra.mxu0 %v2119
  %2161 = vmatpush.bf16.msra.mxu0 %v2118
  %2162 = vmatpush.bf16.msra.mxu0 %v2117
  %2163 = vmatpush.bf16.msra.mxu0 %v2116
  %2164 = vmatpush.bf16.msra.mxu0 %v2115
  %2165 = vmatpush.bf16.msra.mxu0 %v2114
  %2166 = vmatpush.bf16.msra.mxu0 %v2113
  %2167 = vmatpush.bf16.msra.mxu0 %v2112
  %2168 = vmatmul.bf16.gmra.mxu0 %v1955
  %v2169 = vpop.f32.mrf.mxu0
  %v2170 = vadd.f32 %v2014, %v2169
  %v2171 = vpop.f32.mrf.mxu0
  %v2172 = vadd.f32 %v2014, %v2171
  %2173 = vmatmul.bf16.gmra.mxu0 %v1958
  %v2174 = vpop.f32.mrf.mxu0
  %v2175 = vadd.f32 %v2014, %v2174
  %v2176 = vpop.f32.mrf.mxu0
  %v2177 = vadd.f32 %v2014, %v2176
  %2178 = vmatmul.bf16.gmra.mxu0 %v1961
  %v2179 = vpop.f32.mrf.mxu0
  %v2180 = vadd.f32 %v2014, %v2179
  %v2181 = vpop.f32.mrf.mxu0
  %2182 = vdwg.mxu0
  %2183 = vmatpush.bf16.msra.mxu0 %v2127
  %2184 = vmatpush.bf16.msra.mxu0 %v2126
  %2185 = vmatpush.bf16.msra.mxu0 %v2125
  %2186 = vmatpush.bf16.msra.mxu0 %v2124
  %2187 = vmatpush.bf16.msra.mxu0 %v2123
  %2188 = vmatpush.bf16.msra.mxu0 %v2122
  %2189 = vmatpush.bf16.msra.mxu0 %v2121
  %2190 = vmatpush.bf16.msra.mxu0 %v2120
  %2191 = vmatmul.bf16.gmra.mxu0 %v1956
  %v2192 = vpop.f32.mrf.mxu0
  %v2193 = vadd.f32 %v2170, %v2192
  %v2194 = vpop.f32.mrf.mxu0
  %v2195 = vadd.f32 %v2172, %v2194
  %2196 = vmatmul.bf16.gmra.mxu0 %v1959
  %v2197 = vpop.f32.mrf.mxu0
  %v2198 = vadd.f32 %v2175, %v2197
  %v2199 = vpop.f32.mrf.mxu0
  %v2200 = vadd.f32 %v2177, %v2199
  %2201 = vmatmul.bf16.gmra.mxu0 %v1962
  %v2202 = vpop.f32.mrf.mxu0
  %v2203 = vadd.f32 %v2180, %v2202
  %v2204 = vpop.f32.mrf.mxu0
  %2205 = vdwg.mxu0
  %2206 = vmatpush.bf16.msra.mxu0 %v2135
  %2207 = vmatpush.bf16.msra.mxu0 %v2134
  %2208 = vmatpush.bf16.msra.mxu0 %v2133
  %2209 = vmatpush.bf16.msra.mxu0 %v2132
  %2210 = vmatpush.bf16.msra.mxu0 %v2131
  %2211 = vmatpush.bf16.msra.mxu0 %v2130
  %2212 = vmatpush.bf16.msra.mxu0 %v2129
  %2213 = vmatpush.bf16.msra.mxu0 %v2128
  %2214 = vmatmul.bf16.gmra.mxu0 %v1957
  %v2215 = vpop.f32.mrf.mxu0
  %v2216 = vadd.f32 %v2193, %v2215
  %v2217 = vpop.f32.mrf.mxu0
  %v2218 = vadd.f32 %v2195, %v2217
  %2219 = vmatmul.bf16.gmra.mxu0 %v1960
  %v2220 = vpop.f32.mrf.mxu0
  %v2221 = vadd.f32 %v2198, %v2220
  %v2222 = vpop.f32.mrf.mxu0
  %v2223 = vadd.f32 %v2200, %v2222
  %2224 = vmatmul.bf16.gmra.mxu0 %v1963
  %v2225 = vpop.f32.mrf.mxu0
  %v2226 = vadd.f32 %v2203, %v2225
  %v2227 = vpop.f32.mrf.mxu0
  %2228 = vdwg.mxu0
  %v2229 = vmax.f32 %v2216, 0.0
  %v2230 = vmax.f32 %v2218, 0.0
  %v2231 = vmax.f32 %v2221, 0.0
  %v2232 = vmax.f32 %v2223, 0.0
  %v2233 = vmax.f32 %v2226, 0.0
  %v2234 = vmul.f32 %v2229, %v651
  %v2235 = vmul.f32 %v2230, %v656
  %v2236 = vmul.f32 %v2231, %v661
  %v2237 = vmul.f32 %v2232, %v666
  %v2238 = vmul.f32 %v2233, %v671
  %2239 = vst [vmem:[#allocation4] sm:$0xff] %v2234
  %2240 = vst [vmem:[#allocation4 + $0x8] sm:$0xff] %v2235
  %2241 = vst [vmem:[#allocation4 + $0x10] sm:$0xff] %v2236
  %2242 = vst [vmem:[#allocation4 + $0x18] sm:$0xff] %v2237
  %2243 = vst [vmem:[#allocation4 + $0x20] sm:$0xff] %v2238
  %v2244 = vld [vmem:[#allocation4] sm:$0xff]
  %v2245 = vld [vmem:[#allocation4 + $0x8] sm:$0xff]
  %v2246 = vld [vmem:[#allocation4 + $0x10] sm:$0xff]
  %v2247 = vld [vmem:[#allocation4 + $0x18] sm:$0xff]
  %v2248 = vld [vmem:[#allocation4 + $0x20] sm:$0xff]
  %v2249 = vrot.slane %v2244, 7
  %v2250 = vrot.slane %v2245, 7
  %v2251 = vrot.slane %v2246, 7
  %v2252 = vrot.slane %v2247, 7
  %v2253 = vrot.slane %v2248, 7
  %v2254 = vsel %vm111, %v2252, %v2253
  %v2255 = vsel %vm111, %v2251, %v2252
  %v2256 = vsel %vm111, %v2250, %v2251
  %v2257 = vsel %vm111, %v2249, %v2250
  %v2258 = vsel %vm111, %v2253, %v2249
  %v2259 = vrot.slane %v2244, 1
  %v2260 = vrot.slane %v2245, 1
  %v2261 = vrot.slane %v2246, 1
  %v2262 = vrot.slane %v2247, 1
  %v2263 = vrot.slane %v2248, 1
  %v2264 = vsel %vm122, %v2262, %v2263
  %v2265 = vsel %vm122, %v2261, %v2262
  %v2266 = vsel %vm122, %v2260, %v2261
  %v2267 = vsel %vm122, %v2259, %v2260
  %v2268 = vsel %vm122, %v2263, %v2259
  %v2269 = vpack.c.bf16 %v2257, %v2258
  %v2270 = vpack.c.bf16 %v2245, %v2244
  %v2271 = vpack.c.bf16 %v2266, %v2267
  %v2272 = vpack.c.bf16 %v2255, %v2256
  %v2273 = vpack.c.bf16 %v2247, %v2246
  %v2274 = vpack.c.bf16 %v2264, %v2265
  %v2275 = vpack.c.bf16 %v2254, %v2254
  %v2276 = vpack.c.bf16 %v2248, %v2248
  %v2277 = vpack.c.bf16 %v2268, %v2268
  %v2278 = vld [vmem:[%s12] sm:$0xf]
  %v2279 = vld [vmem:[%s12 + $0x4] sm:$0xf]
  %v2280 = vld [vmem:[%s12 + $0x8] sm:$0xf]
  %v2281 = vld [vmem:[%s12 + $0xc] sm:$0xf]
  %v2282 = vld [vmem:[%s12 + $0x10] sm:$0xf]
  %v2283 = vld [vmem:[%s12 + $0x14] sm:$0xf]
  %v2284 = vld [vmem:[%s12 + $0x18] sm:$0xf]
  %v2285 = vld [vmem:[%s12 + $0x1c] sm:$0xf]
  %v2286 = vld [vmem:[%s12 + $0x20] sm:$0xf]
  %v2287 = vld [vmem:[%s12 + $0x24] sm:$0xf]
  %v2288 = vld [vmem:[%s12 + $0x28] sm:$0xf]
  %v2289 = vld [vmem:[%s12 + $0x2c] sm:$0xf]
  %v2290 = vld [vmem:[%s12 + $0x30] sm:$0xf]
  %v2291 = vld [vmem:[%s12 + $0x34] sm:$0xf]
  %v2292 = vld [vmem:[%s12 + $0x38] sm:$0xf]
  %v2293 = vld [vmem:[%s12 + $0x3c] sm:$0xf]
  %v2294 = vld [vmem:[%s12 + $0x40] sm:$0xf]
  %v2295 = vld [vmem:[%s12 + $0x44] sm:$0xf]
  %v2296 = vld [vmem:[%s12 + $0x48] sm:$0xf]
  %v2297 = vld [vmem:[%s12 + $0x4c] sm:$0xf]
  %v2298 = vld [vmem:[%s12 + $0x50] sm:$0xf]
  %v2299 = vld [vmem:[%s12 + $0x54] sm:$0xf]
  %v2300 = vld [vmem:[%s12 + $0x58] sm:$0xf]
  %v2301 = vld [vmem:[%s12 + $0x5c] sm:$0xf]
  %v2302 = vld [vmem:[%s12 + $0x60] sm:$0xf]
  %v2303 = vld [vmem:[%s12 + $0x64] sm:$0xf]
  %v2304 = vld [vmem:[%s12 + $0x68] sm:$0xf]
  %v2305 = vld [vmem:[%s12 + $0x6c] sm:$0xf]
  %v2306 = vld [vmem:[%s12 + $0x70] sm:$0xf]
  %v2307 = vld [vmem:[%s12 + $0x74] sm:$0xf]
  %v2308 = vld [vmem:[%s12 + $0x78] sm:$0xf]
  %v2309 = vld [vmem:[%s12 + $0x7c] sm:$0xf]
  %v2310 = vld [vmem:[%s12 + $0x80] sm:$0xf]
  %v2311 = vld [vmem:[%s12 + $0x84] sm:$0xf]
  %v2312 = vld [vmem:[%s12 + $0x88] sm:$0xf]
  %v2313 = vld [vmem:[%s12 + $0x8c] sm:$0xf]
  %v2314 = vld [vmem:[%s12 + $0x90] sm:$0xf]
  %v2315 = vld [vmem:[%s12 + $0x94] sm:$0xf]
  %v2316 = vld [vmem:[%s12 + $0x98] sm:$0xf]
  %v2317 = vld [vmem:[%s12 + $0x9c] sm:$0xf]
  %v2318 = vld [vmem:[%s12 + $0xa0] sm:$0xf]
  %v2319 = vld [vmem:[%s12 + $0xa4] sm:$0xf]
  %v2320 = vld [vmem:[%s12 + $0xa8] sm:$0xf]
  %v2321 = vld [vmem:[%s12 + $0xac] sm:$0xf]
  %v2322 = vld [vmem:[%s12 + $0xb0] sm:$0xf]
  %v2323 = vld [vmem:[%s12 + $0xb4] sm:$0xf]
  %v2324 = vld [vmem:[%s12 + $0xb8] sm:$0xf]
  %v2325 = vld [vmem:[%s12 + $0xbc] sm:$0xf]
  %v2326 = vld [vmem:[%s13] sm:$0x1]
  %v2328 = vperm.slane %v2326, 0
  %v2378 = vunpack.c.l.b16 %v2278
  %v2379 = vunpack.c.l.b16 %v2279
  %v2380 = vunpack.c.l.b16 %v2280
  %v2381 = vunpack.c.l.b16 %v2281
  %v2382 = vunpack.c.l.b16 %v2282
  %v2383 = vunpack.c.l.b16 %v2283
  %v2384 = vunpack.c.l.b16 %v2284
  %v2385 = vunpack.c.l.b16 %v2285
  %v2386 = vunpack.c.l.b16 %v2286
  %v2387 = vunpack.c.l.b16 %v2287
  %v2388 = vunpack.c.l.b16 %v2288
  %v2389 = vunpack.c.l.b16 %v2289
  %v2390 = vunpack.c.l.b16 %v2290
  %v2391 = vunpack.c.l.b16 %v2291
  %v2392 = vunpack.c.l.b16 %v2292
  %v2393 = vunpack.c.l.b16 %v2293
  %v2394 = vunpack.c.l.b16 %v2294
  %v2395 = vunpack.c.l.b16 %v2295
  %v2396 = vunpack.c.l.b16 %v2296
  %v2397 = vunpack.c.l.b16 %v2297
  %v2398 = vunpack.c.l.b16 %v2298
  %v2399 = vunpack.c.l.b16 %v2299
  %v2400 = vunpack.c.l.b16 %v2300
  %v2401 = vunpack.c.l.b16 %v2301
  %v2402 = vunpack.c.l.b16 %v2302
  %v2403 = vunpack.c.l.b16 %v2303
  %v2404 = vunpack.c.l.b16 %v2304
  %v2405 = vunpack.c.l.b16 %v2305
  %v2406 = vunpack.c.l.b16 %v2306
  %v2407 = vunpack.c.l.b16 %v2307
  %v2408 = vunpack.c.l.b16 %v2308
  %v2409 = vunpack.c.l.b16 %v2309
  %v2410 = vunpack.c.l.b16 %v2310
  %v2411 = vunpack.c.l.b16 %v2311
  %v2412 = vunpack.c.l.b16 %v2312
  %v2413 = vunpack.c.l.b16 %v2313
  %v2414 = vunpack.c.l.b16 %v2314
  %v2415 = vunpack.c.l.b16 %v2315
  %v2416 = vunpack.c.l.b16 %v2316
  %v2417 = vunpack.c.l.b16 %v2317
  %v2418 = vunpack.c.l.b16 %v2318
  %v2419 = vunpack.c.l.b16 %v2319
  %v2420 = vunpack.c.l.b16 %v2320
  %v2421 = vunpack.c.l.b16 %v2321
  %v2422 = vunpack.c.l.b16 %v2322
  %v2423 = vunpack.c.l.b16 %v2323
  %v2424 = vunpack.c.l.b16 %v2324
  %v2425 = vunpack.c.l.b16 %v2325
  %v2426 = vpack.c.b16 %v2379, %v2378
  %v2427 = vpack.c.b16 %v2381, %v2380
  %v2428 = vpack.c.b16 %v2383, %v2382
  %v2429 = vpack.c.b16 %v2385, %v2384
  %v2430 = vpack.c.b16 %v2387, %v2386
  %v2431 = vpack.c.b16 %v2389, %v2388
  %v2432 = vpack.c.b16 %v2391, %v2390
  %v2433 = vpack.c.b16 %v2393, %v2392
  %v2434 = vpack.c.b16 %v2395, %v2394
  %v2435 = vpack.c.b16 %v2397, %v2396
  %v2436 = vpack.c.b16 %v2399, %v2398
  %v2437 = vpack.c.b16 %v2401, %v2400
  %v2438 = vpack.c.b16 %v2403, %v2402
  %v2439 = vpack.c.b16 %v2405, %v2404
  %v2440 = vpack.c.b16 %v2407, %v2406
  %v2441 = vpack.c.b16 %v2409, %v2408
  %v2442 = vpack.c.b16 %v2411, %v2410
  %v2443 = vpack.c.b16 %v2413, %v2412
  %v2444 = vpack.c.b16 %v2415, %v2414
  %v2445 = vpack.c.b16 %v2417, %v2416
  %v2446 = vpack.c.b16 %v2419, %v2418
  %v2447 = vpack.c.b16 %v2421, %v2420
  %v2448 = vpack.c.b16 %v2423, %v2422
  %v2449 = vpack.c.b16 %v2425, %v2424
  %2474 = vmatpush.bf16.msra.mxu0 %v2433
  %2475 = vmatpush.bf16.msra.mxu0 %v2432
  %2476 = vmatpush.bf16.msra.mxu0 %v2431
  %2477 = vmatpush.bf16.msra.mxu0 %v2430
  %2478 = vmatpush.bf16.msra.mxu0 %v2429
  %2479 = vmatpush.bf16.msra.mxu0 %v2428
  %2480 = vmatpush.bf16.msra.mxu0 %v2427
  %2481 = vmatpush.bf16.msra.mxu0 %v2426
  %2482 = vmatmul.bf16.gmra.mxu0 %v2269
  %v2483 = vpop.f32.mrf.mxu0
  %v2484 = vadd.f32 %v2328, %v2483
  %v2485 = vpop.f32.mrf.mxu0
  %v2486 = vadd.f32 %v2328, %v2485
  %2487 = vmatmul.bf16.gmra.mxu0 %v2272
  %v2488 = vpop.f32.mrf.mxu0
  %v2489 = vadd.f32 %v2328, %v2488
  %v2490 = vpop.f32.mrf.mxu0
  %v2491 = vadd.f32 %v2328, %v2490
  %2492 = vmatmul.bf16.gmra.mxu0 %v2275
  %v2493 = vpop.f32.mrf.mxu0
  %v2494 = vadd.f32 %v2328, %v2493
  %v2495 = vpop.f32.mrf.mxu0
  %2496 = vdwg.mxu0
  %2497 = vmatpush.bf16.msra.mxu0 %v2441
  %2498 = vmatpush.bf16.msra.mxu0 %v2440
  %2499 = vmatpush.bf16.msra.mxu0 %v2439
  %2500 = vmatpush.bf16.msra.mxu0 %v2438
  %2501 = vmatpush.bf16.msra.mxu0 %v2437
  %2502 = vmatpush.bf16.msra.mxu0 %v2436
  %2503 = vmatpush.bf16.msra.mxu0 %v2435
  %2504 = vmatpush.bf16.msra.mxu0 %v2434
  %2505 = vmatmul.bf16.gmra.mxu0 %v2270
  %v2506 = vpop.f32.mrf.mxu0
  %v2507 = vadd.f32 %v2484, %v2506
  %v2508 = vpop.f32.mrf.mxu0
  %v2509 = vadd.f32 %v2486, %v2508
  %2510 = vmatmul.bf16.gmra.mxu0 %v2273
  %v2511 = vpop.f32.mrf.mxu0
  %v2512 = vadd.f32 %v2489, %v2511
  %v2513 = vpop.f32.mrf.mxu0
  %v2514 = vadd.f32 %v2491, %v2513
  %2515 = vmatmul.bf16.gmra.mxu0 %v2276
  %v2516 = vpop.f32.mrf.mxu0
  %v2517 = vadd.f32 %v2494, %v2516
  %v2518 = vpop.f32.mrf.mxu0
  %2519 = vdwg.mxu0
  %2520 = vmatpush.bf16.msra.mxu0 %v2449
  %2521 = vmatpush.bf16.msra.mxu0 %v2448
  %2522 = vmatpush.bf16.msra.mxu0 %v2447
  %2523 = vmatpush.bf16.msra.mxu0 %v2446
  %2524 = vmatpush.bf16.msra.mxu0 %v2445
  %2525 = vmatpush.bf16.msra.mxu0 %v2444
  %2526 = vmatpush.bf16.msra.mxu0 %v2443
  %2527 = vmatpush.bf16.msra.mxu0 %v2442
  %2528 = vmatmul.bf16.gmra.mxu0 %v2271
  %v2529 = vpop.f32.mrf.mxu0
  %v2530 = vadd.f32 %v2507, %v2529
  %v2531 = vpop.f32.mrf.mxu0
  %v2532 = vadd.f32 %v2509, %v2531
  %2533 = vmatmul.bf16.gmra.mxu0 %v2274
  %v2534 = vpop.f32.mrf.mxu0
  %v2535 = vadd.f32 %v2512, %v2534
  %v2536 = vpop.f32.mrf.mxu0
  %v2537 = vadd.f32 %v2514, %v2536
  %2538 = vmatmul.bf16.gmra.mxu0 %v2277
  %v2539 = vpop.f32.mrf.mxu0
  %v2540 = vadd.f32 %v2517, %v2539
  %v2541 = vpop.f32.mrf.mxu0
  %2542 = vdwg.mxu0
  %v2543 = vmax.f32 %v2530, 0.0
  %v2544 = vmax.f32 %v2532, 0.0
  %v2545 = vmax.f32 %v2535, 0.0
  %v2546 = vmax.f32 %v2537, 0.0
  %v2547 = vmax.f32 %v2540, 0.0
  %v2548 = vmul.f32 %v2543, %v651
  %v2549 = vmul.f32 %v2544, %v656
  %v2550 = vmul.f32 %v2545, %v661
  %v2551 = vmul.f32 %v2546, %v666
  %v2552 = vmul.f32 %v2547, %v671
  %2553 = vst [vmem:[#allocation3] sm:$0xff] %v2548
  %2554 = vst [vmem:[#allocation3 + $0x8] sm:$0xff] %v2549
  %2555 = vst [vmem:[#allocation3 + $0x10] sm:$0xff] %v2550
  %2556 = vst [vmem:[#allocation3 + $0x18] sm:$0xff] %v2551
  %2557 = vst [vmem:[#allocation3 + $0x20] sm:$0xff] %v2552
  %v2558 = vld [vmem:[#allocation3] sm:$0xff]
  %v2559 = vld [vmem:[#allocation3 + $0x8] sm:$0xff]
  %v2560 = vld [vmem:[#allocation3 + $0x10] sm:$0xff]
  %v2561 = vld [vmem:[#allocation3 + $0x18] sm:$0xff]
  %v2562 = vld [vmem:[#allocation3 + $0x20] sm:$0xff]
  %v2563 = vrot.slane %v2558, 7
  %v2564 = vrot.slane %v2559, 7
  %v2565 = vrot.slane %v2560, 7
  %v2566 = vrot.slane %v2561, 7
  %v2567 = vrot.slane %v2562, 7
  %v2568 = vsel %vm111, %v2566, %v2567
  %v2569 = vsel %vm111, %v2565, %v2566
  %v2570 = vsel %vm111, %v2564, %v2565
  %v2571 = vsel %vm111, %v2563, %v2564
  %v2572 = vsel %vm111, %v2567, %v2563
  %v2573 = vrot.slane %v2558, 1
  %v2574 = vrot.slane %v2559, 1
  %v2575 = vrot.slane %v2560, 1
  %v2576 = vrot.slane %v2561, 1
  %v2577 = vrot.slane %v2562, 1
  %v2578 = vsel %vm122, %v2576, %v2577
  %v2579 = vsel %vm122, %v2575, %v2576
  %v2580 = vsel %vm122, %v2574, %v2575
  %v2581 = vsel %vm122, %v2573, %v2574
  %v2582 = vsel %vm122, %v2577, %v2573
  %v2583 = vpack.c.bf16 %v2571, %v2572
  %v2584 = vpack.c.bf16 %v2559, %v2558
  %v2585 = vpack.c.bf16 %v2580, %v2581
  %v2586 = vpack.c.bf16 %v2569, %v2570
  %v2587 = vpack.c.bf16 %v2561, %v2560
  %v2588 = vpack.c.bf16 %v2578, %v2579
  %v2589 = vpack.c.bf16 %v2568, %v2568
  %v2590 = vpack.c.bf16 %v2562, %v2562
  %v2591 = vpack.c.bf16 %v2582, %v2582
  %v2592 = vld [vmem:[%s14] sm:$0xf]
  %v2593 = vld [vmem:[%s14 + $0x4] sm:$0xf]
  %v2594 = vld [vmem:[%s14 + $0x8] sm:$0xf]
  %v2595 = vld [vmem:[%s14 + $0xc] sm:$0xf]
  %v2596 = vld [vmem:[%s14 + $0x10] sm:$0xf]
  %v2597 = vld [vmem:[%s14 + $0x14] sm:$0xf]
  %v2598 = vld [vmem:[%s14 + $0x18] sm:$0xf]
  %v2599 = vld [vmem:[%s14 + $0x1c] sm:$0xf]
  %v2600 = vld [vmem:[%s14 + $0x20] sm:$0xf]
  %v2601 = vld [vmem:[%s14 + $0x24] sm:$0xf]
  %v2602 = vld [vmem:[%s14 + $0x28] sm:$0xf]
  %v2603 = vld [vmem:[%s14 + $0x2c] sm:$0xf]
  %v2604 = vld [vmem:[%s14 + $0x30] sm:$0xf]
  %v2605 = vld [vmem:[%s14 + $0x34] sm:$0xf]
  %v2606 = vld [vmem:[%s14 + $0x38] sm:$0xf]
  %v2607 = vld [vmem:[%s14 + $0x3c] sm:$0xf]
  %v2608 = vld [vmem:[%s14 + $0x40] sm:$0xf]
  %v2609 = vld [vmem:[%s14 + $0x44] sm:$0xf]
  %v2610 = vld [vmem:[%s14 + $0x48] sm:$0xf]
  %v2611 = vld [vmem:[%s14 + $0x4c] sm:$0xf]
  %v2612 = vld [vmem:[%s14 + $0x50] sm:$0xf]
  %v2613 = vld [vmem:[%s14 + $0x54] sm:$0xf]
  %v2614 = vld [vmem:[%s14 + $0x58] sm:$0xf]
  %v2615 = vld [vmem:[%s14 + $0x5c] sm:$0xf]
  %v2616 = vld [vmem:[%s14 + $0x60] sm:$0xf]
  %v2617 = vld [vmem:[%s14 + $0x64] sm:$0xf]
  %v2618 = vld [vmem:[%s14 + $0x68] sm:$0xf]
  %v2619 = vld [vmem:[%s14 + $0x6c] sm:$0xf]
  %v2620 = vld [vmem:[%s14 + $0x70] sm:$0xf]
  %v2621 = vld [vmem:[%s14 + $0x74] sm:$0xf]
  %v2622 = vld [vmem:[%s14 + $0x78] sm:$0xf]
  %v2623 = vld [vmem:[%s14 + $0x7c] sm:$0xf]
  %v2624 = vld [vmem:[%s14 + $0x80] sm:$0xf]
  %v2625 = vld [vmem:[%s14 + $0x84] sm:$0xf]
  %v2626 = vld [vmem:[%s14 + $0x88] sm:$0xf]
  %v2627 = vld [vmem:[%s14 + $0x8c] sm:$0xf]
  %v2628 = vld [vmem:[%s14 + $0x90] sm:$0xf]
  %v2629 = vld [vmem:[%s14 + $0x94] sm:$0xf]
  %v2630 = vld [vmem:[%s14 + $0x98] sm:$0xf]
  %v2631 = vld [vmem:[%s14 + $0x9c] sm:$0xf]
  %v2632 = vld [vmem:[%s14 + $0xa0] sm:$0xf]
  %v2633 = vld [vmem:[%s14 + $0xa4] sm:$0xf]
  %v2634 = vld [vmem:[%s14 + $0xa8] sm:$0xf]
  %v2635 = vld [vmem:[%s14 + $0xac] sm:$0xf]
  %v2636 = vld [vmem:[%s14 + $0xb0] sm:$0xf]
  %v2637 = vld [vmem:[%s14 + $0xb4] sm:$0xf]
  %v2638 = vld [vmem:[%s14 + $0xb8] sm:$0xf]
  %v2639 = vld [vmem:[%s14 + $0xbc] sm:$0xf]
  %v2640 = vld [vmem:[%s15] sm:$0x1]
  %v2642 = vperm.slane %v2640, 0
  %v2692 = vunpack.c.l.b16 %v2592
  %v2693 = vunpack.c.l.b16 %v2593
  %v2694 = vunpack.c.l.b16 %v2594
  %v2695 = vunpack.c.l.b16 %v2595
  %v2696 = vunpack.c.l.b16 %v2596
  %v2697 = vunpack.c.l.b16 %v2597
  %v2698 = vunpack.c.l.b16 %v2598
  %v2699 = vunpack.c.l.b16 %v2599
  %v2700 = vunpack.c.l.b16 %v2600
  %v2701 = vunpack.c.l.b16 %v2601
  %v2702 = vunpack.c.l.b16 %v2602
  %v2703 = vunpack.c.l.b16 %v2603
  %v2704 = vunpack.c.l.b16 %v2604
  %v2705 = vunpack.c.l.b16 %v2605
  %v2706 = vunpack.c.l.b16 %v2606
  %v2707 = vunpack.c.l.b16 %v2607
  %v2708 = vunpack.c.l.b16 %v2608
  %v2709 = vunpack.c.l.b16 %v2609
  %v2710 = vunpack.c.l.b16 %v2610
  %v2711 = vunpack.c.l.b16 %v2611
  %v2712 = vunpack.c.l.b16 %v2612
  %v2713 = vunpack.c.l.b16 %v2613
  %v2714 = vunpack.c.l.b16 %v2614
  %v2715 = vunpack.c.l.b16 %v2615
  %v2716 = vunpack.c.l.b16 %v2616
  %v2717 = vunpack.c.l.b16 %v2617
  %v2718 = vunpack.c.l.b16 %v2618
  %v2719 = vunpack.c.l.b16 %v2619
  %v2720 = vunpack.c.l.b16 %v2620
  %v2721 = vunpack.c.l.b16 %v2621
  %v2722 = vunpack.c.l.b16 %v2622
  %v2723 = vunpack.c.l.b16 %v2623
  %v2724 = vunpack.c.l.b16 %v2624
  %v2725 = vunpack.c.l.b16 %v2625
  %v2726 = vunpack.c.l.b16 %v2626
  %v2727 = vunpack.c.l.b16 %v2627
  %v2728 = vunpack.c.l.b16 %v2628
  %v2729 = vunpack.c.l.b16 %v2629
  %v2730 = vunpack.c.l.b16 %v2630
  %v2731 = vunpack.c.l.b16 %v2631
  %v2732 = vunpack.c.l.b16 %v2632
  %v2733 = vunpack.c.l.b16 %v2633
  %v2734 = vunpack.c.l.b16 %v2634
  %v2735 = vunpack.c.l.b16 %v2635
  %v2736 = vunpack.c.l.b16 %v2636
  %v2737 = vunpack.c.l.b16 %v2637
  %v2738 = vunpack.c.l.b16 %v2638
  %v2739 = vunpack.c.l.b16 %v2639
  %v2740 = vpack.c.b16 %v2693, %v2692
  %v2741 = vpack.c.b16 %v2695, %v2694
  %v2742 = vpack.c.b16 %v2697, %v2696
  %v2743 = vpack.c.b16 %v2699, %v2698
  %v2744 = vpack.c.b16 %v2701, %v2700
  %v2745 = vpack.c.b16 %v2703, %v2702
  %v2746 = vpack.c.b16 %v2705, %v2704
  %v2747 = vpack.c.b16 %v2707, %v2706
  %v2748 = vpack.c.b16 %v2709, %v2708
  %v2749 = vpack.c.b16 %v2711, %v2710
  %v2750 = vpack.c.b16 %v2713, %v2712
  %v2751 = vpack.c.b16 %v2715, %v2714
  %v2752 = vpack.c.b16 %v2717, %v2716
  %v2753 = vpack.c.b16 %v2719, %v2718
  %v2754 = vpack.c.b16 %v2721, %v2720
  %v2755 = vpack.c.b16 %v2723, %v2722
  %v2756 = vpack.c.b16 %v2725, %v2724
  %v2757 = vpack.c.b16 %v2727, %v2726
  %v2758 = vpack.c.b16 %v2729, %v2728
  %v2759 = vpack.c.b16 %v2731, %v2730
  %v2760 = vpack.c.b16 %v2733, %v2732
  %v2761 = vpack.c.b16 %v2735, %v2734
  %v2762 = vpack.c.b16 %v2737, %v2736
  %v2763 = vpack.c.b16 %v2739, %v2738
  %2788 = vmatpush.bf16.msra.mxu0 %v2747
  %2789 = vmatpush.bf16.msra.mxu0 %v2746
  %2790 = vmatpush.bf16.msra.mxu0 %v2745
  %2791 = vmatpush.bf16.msra.mxu0 %v2744
  %2792 = vmatpush.bf16.msra.mxu0 %v2743
  %2793 = vmatpush.bf16.msra.mxu0 %v2742
  %2794 = vmatpush.bf16.msra.mxu0 %v2741
  %2795 = vmatpush.bf16.msra.mxu0 %v2740
  %2796 = vmatmul.bf16.gmra.mxu0 %v2583
  %v2797 = vpop.f32.mrf.mxu0
  %v2798 = vadd.f32 %v2642, %v2797
  %v2799 = vpop.f32.mrf.mxu0
  %v2800 = vadd.f32 %v2642, %v2799
  %2801 = vmatmul.bf16.gmra.mxu0 %v2586
  %v2802 = vpop.f32.mrf.mxu0
  %v2803 = vadd.f32 %v2642, %v2802
  %v2804 = vpop.f32.mrf.mxu0
  %v2805 = vadd.f32 %v2642, %v2804
  %2806 = vmatmul.bf16.gmra.mxu0 %v2589
  %v2807 = vpop.f32.mrf.mxu0
  %v2808 = vadd.f32 %v2642, %v2807
  %v2809 = vpop.f32.mrf.mxu0
  %2810 = vdwg.mxu0
  %2811 = vmatpush.bf16.msra.mxu0 %v2755
  %2812 = vmatpush.bf16.msra.mxu0 %v2754
  %2813 = vmatpush.bf16.msra.mxu0 %v2753
  %2814 = vmatpush.bf16.msra.mxu0 %v2752
  %2815 = vmatpush.bf16.msra.mxu0 %v2751
  %2816 = vmatpush.bf16.msra.mxu0 %v2750
  %2817 = vmatpush.bf16.msra.mxu0 %v2749
  %2818 = vmatpush.bf16.msra.mxu0 %v2748
  %2819 = vmatmul.bf16.gmra.mxu0 %v2584
  %v2820 = vpop.f32.mrf.mxu0
  %v2821 = vadd.f32 %v2798, %v2820
  %v2822 = vpop.f32.mrf.mxu0
  %v2823 = vadd.f32 %v2800, %v2822
  %2824 = vmatmul.bf16.gmra.mxu0 %v2587
  %v2825 = vpop.f32.mrf.mxu0
  %v2826 = vadd.f32 %v2803, %v2825
  %v2827 = vpop.f32.mrf.mxu0
  %v2828 = vadd.f32 %v2805, %v2827
  %2829 = vmatmul.bf16.gmra.mxu0 %v2590
  %v2830 = vpop.f32.mrf.mxu0
  %v2831 = vadd.f32 %v2808, %v2830
  %v2832 = vpop.f32.mrf.mxu0
  %2833 = vdwg.mxu0
  %2834 = vmatpush.bf16.msra.mxu0 %v2763
  %2835 = vmatpush.bf16.msra.mxu0 %v2762
  %2836 = vmatpush.bf16.msra.mxu0 %v2761
  %2837 = vmatpush.bf16.msra.mxu0 %v2760
  %2838 = vmatpush.bf16.msra.mxu0 %v2759
  %2839 = vmatpush.bf16.msra.mxu0 %v2758
  %2840 = vmatpush.bf16.msra.mxu0 %v2757
  %2841 = vmatpush.bf16.msra.mxu0 %v2756
  %2842 = vmatmul.bf16.gmra.mxu0 %v2585
  %v2843 = vpop.f32.mrf.mxu0
  %v2844 = vadd.f32 %v2821, %v2843
  %v2845 = vpop.f32.mrf.mxu0
  %v2846 = vadd.f32 %v2823, %v2845
  %2847 = vmatmul.bf16.gmra.mxu0 %v2588
  %v2848 = vpop.f32.mrf.mxu0
  %v2849 = vadd.f32 %v2826, %v2848
  %v2850 = vpop.f32.mrf.mxu0
  %v2851 = vadd.f32 %v2828, %v2850
  %2852 = vmatmul.bf16.gmra.mxu0 %v2591
  %v2853 = vpop.f32.mrf.mxu0
  %v2854 = vadd.f32 %v2831, %v2853
  %v2855 = vpop.f32.mrf.mxu0
  %2856 = vdwg.mxu0
  %v2857 = vmax.f32 %v2844, 0.0
  %v2858 = vmax.f32 %v2846, 0.0
  %v2859 = vmax.f32 %v2849, 0.0
  %v2860 = vmax.f32 %v2851, 0.0
  %v2861 = vmax.f32 %v2854, 0.0
  %v2862 = vmul.f32 %v2857, %v651
  %v2863 = vmul.f32 %v2858, %v656
  %v2864 = vmul.f32 %v2859, %v661
  %v2865 = vmul.f32 %v2860, %v666
  %v2866 = vmul.f32 %v2861, %v671
  %2867 = vst [vmem:[#allocation4] sm:$0xff] %v2862
  %2868 = vst [vmem:[#allocation4 + $0x8] sm:$0xff] %v2863
  %2869 = vst [vmem:[#allocation4 + $0x10] sm:$0xff] %v2864
  %2870 = vst [vmem:[#allocation4 + $0x18] sm:$0xff] %v2865
  %2871 = vst [vmem:[#allocation4 + $0x20] sm:$0xff] %v2866
  %v2872 = vld [vmem:[#allocation4] sm:$0xff]
  %v2873 = vld [vmem:[#allocation4 + $0x8] sm:$0xff]
  %v2874 = vld [vmem:[#allocation4 + $0x10] sm:$0xff]
  %v2875 = vld [vmem:[#allocation4 + $0x18] sm:$0xff]
  %v2876 = vld [vmem:[#allocation4 + $0x20] sm:$0xff]
  %v2877 = vrot.slane %v2872, 7
  %v2878 = vrot.slane %v2873, 7
  %v2879 = vrot.slane %v2874, 7
  %v2880 = vrot.slane %v2875, 7
  %v2881 = vrot.slane %v2876, 7
  %v2882 = vsel %vm111, %v2880, %v2881
  %v2883 = vsel %vm111, %v2879, %v2880
  %v2884 = vsel %vm111, %v2878, %v2879
  %v2885 = vsel %vm111, %v2877, %v2878
  %v2886 = vsel %vm111, %v2881, %v2877
  %v2887 = vrot.slane %v2872, 1
  %v2888 = vrot.slane %v2873, 1
  %v2889 = vrot.slane %v2874, 1
  %v2890 = vrot.slane %v2875, 1
  %v2891 = vrot.slane %v2876, 1
  %v2892 = vsel %vm122, %v2890, %v2891
  %v2893 = vsel %vm122, %v2889, %v2890
  %v2894 = vsel %vm122, %v2888, %v2889
  %v2895 = vsel %vm122, %v2887, %v2888
  %v2896 = vsel %vm122, %v2891, %v2887
  %v2897 = vpack.c.bf16 %v2885, %v2886
  %v2898 = vpack.c.bf16 %v2873, %v2872
  %v2899 = vpack.c.bf16 %v2894, %v2895
  %v2900 = vpack.c.bf16 %v2883, %v2884
  %v2901 = vpack.c.bf16 %v2875, %v2874
  %v2902 = vpack.c.bf16 %v2892, %v2893
  %v2903 = vpack.c.bf16 %v2882, %v2882
  %v2904 = vpack.c.bf16 %v2876, %v2876
  %v2905 = vpack.c.bf16 %v2896, %v2896
  %v2906 = vld [vmem:[%s16] sm:$0xf]
  %v2907 = vld [vmem:[%s16 + $0x4] sm:$0xf]
  %v2908 = vld [vmem:[%s16 + $0x8] sm:$0xf]
  %v2909 = vld [vmem:[%s16 + $0xc] sm:$0xf]
  %v2910 = vld [vmem:[%s16 + $0x10] sm:$0xf]
  %v2911 = vld [vmem:[%s16 + $0x14] sm:$0xf]
  %v2912 = vld [vmem:[%s16 + $0x18] sm:$0xf]
  %v2913 = vld [vmem:[%s16 + $0x1c] sm:$0xf]
  %v2914 = vld [vmem:[%s16 + $0x20] sm:$0xf]
  %v2915 = vld [vmem:[%s16 + $0x24] sm:$0xf]
  %v2916 = vld [vmem:[%s16 + $0x28] sm:$0xf]
  %v2917 = vld [vmem:[%s16 + $0x2c] sm:$0xf]
  %v2918 = vld [vmem:[%s16 + $0x30] sm:$0xf]
  %v2919 = vld [vmem:[%s16 + $0x34] sm:$0xf]
  %v2920 = vld [vmem:[%s16 + $0x38] sm:$0xf]
  %v2921 = vld [vmem:[%s16 + $0x3c] sm:$0xf]
  %v2922 = vld [vmem:[%s16 + $0x40] sm:$0xf]
  %v2923 = vld [vmem:[%s16 + $0x44] sm:$0xf]
  %v2924 = vld [vmem:[%s16 + $0x48] sm:$0xf]
  %v2925 = vld [vmem:[%s16 + $0x4c] sm:$0xf]
  %v2926 = vld [vmem:[%s16 + $0x50] sm:$0xf]
  %v2927 = vld [vmem:[%s16 + $0x54] sm:$0xf]
  %v2928 = vld [vmem:[%s16 + $0x58] sm:$0xf]
  %v2929 = vld [vmem:[%s16 + $0x5c] sm:$0xf]
  %v2930 = vld [vmem:[%s16 + $0x60] sm:$0xf]
  %v2931 = vld [vmem:[%s16 + $0x64] sm:$0xf]
  %v2932 = vld [vmem:[%s16 + $0x68] sm:$0xf]
  %v2933 = vld [vmem:[%s16 + $0x6c] sm:$0xf]
  %v2934 = vld [vmem:[%s16 + $0x70] sm:$0xf]
  %v2935 = vld [vmem:[%s16 + $0x74] sm:$0xf]
  %v2936 = vld [vmem:[%s16 + $0x78] sm:$0xf]
  %v2937 = vld [vmem:[%s16 + $0x7c] sm:$0xf]
  %v2938 = vld [vmem:[%s16 + $0x80] sm:$0xf]
  %v2939 = vld [vmem:[%s16 + $0x84] sm:$0xf]
  %v2940 = vld [vmem:[%s16 + $0x88] sm:$0xf]
  %v2941 = vld [vmem:[%s16 + $0x8c] sm:$0xf]
  %v2942 = vld [vmem:[%s16 + $0x90] sm:$0xf]
  %v2943 = vld [vmem:[%s16 + $0x94] sm:$0xf]
  %v2944 = vld [vmem:[%s16 + $0x98] sm:$0xf]
  %v2945 = vld [vmem:[%s16 + $0x9c] sm:$0xf]
  %v2946 = vld [vmem:[%s16 + $0xa0] sm:$0xf]
  %v2947 = vld [vmem:[%s16 + $0xa4] sm:$0xf]
  %v2948 = vld [vmem:[%s16 + $0xa8] sm:$0xf]
  %v2949 = vld [vmem:[%s16 + $0xac] sm:$0xf]
  %v2950 = vld [vmem:[%s16 + $0xb0] sm:$0xf]
  %v2951 = vld [vmem:[%s16 + $0xb4] sm:$0xf]
  %v2952 = vld [vmem:[%s16 + $0xb8] sm:$0xf]
  %v2953 = vld [vmem:[%s16 + $0xbc] sm:$0xf]
  %v2954 = vld [vmem:[%s17] sm:$0x1]
  %v2956 = vperm.slane %v2954, 0
  %v3006 = vunpack.c.l.b16 %v2906
  %v3007 = vunpack.c.l.b16 %v2907
  %v3008 = vunpack.c.l.b16 %v2908
  %v3009 = vunpack.c.l.b16 %v2909
  %v3010 = vunpack.c.l.b16 %v2910
  %v3011 = vunpack.c.l.b16 %v2911
  %v3012 = vunpack.c.l.b16 %v2912
  %v3013 = vunpack.c.l.b16 %v2913
  %v3014 = vunpack.c.l.b16 %v2914
  %v3015 = vunpack.c.l.b16 %v2915
  %v3016 = vunpack.c.l.b16 %v2916
  %v3017 = vunpack.c.l.b16 %v2917
  %v3018 = vunpack.c.l.b16 %v2918
  %v3019 = vunpack.c.l.b16 %v2919
  %v3020 = vunpack.c.l.b16 %v2920
  %v3021 = vunpack.c.l.b16 %v2921
  %v3022 = vunpack.c.l.b16 %v2922
  %v3023 = vunpack.c.l.b16 %v2923
  %v3024 = vunpack.c.l.b16 %v2924
  %v3025 = vunpack.c.l.b16 %v2925
  %v3026 = vunpack.c.l.b16 %v2926
  %v3027 = vunpack.c.l.b16 %v2927
  %v3028 = vunpack.c.l.b16 %v2928
  %v3029 = vunpack.c.l.b16 %v2929
  %v3030 = vunpack.c.l.b16 %v2930
  %v3031 = vunpack.c.l.b16 %v2931
  %v3032 = vunpack.c.l.b16 %v2932
  %v3033 = vunpack.c.l.b16 %v2933
  %v3034 = vunpack.c.l.b16 %v2934
  %v3035 = vunpack.c.l.b16 %v2935
  %v3036 = vunpack.c.l.b16 %v2936
  %v3037 = vunpack.c.l.b16 %v2937
  %v3038 = vunpack.c.l.b16 %v2938
  %v3039 = vunpack.c.l.b16 %v2939
  %v3040 = vunpack.c.l.b16 %v2940
  %v3041 = vunpack.c.l.b16 %v2941
  %v3042 = vunpack.c.l.b16 %v2942
  %v3043 = vunpack.c.l.b16 %v2943
  %v3044 = vunpack.c.l.b16 %v2944
  %v3045 = vunpack.c.l.b16 %v2945
  %v3046 = vunpack.c.l.b16 %v2946
  %v3047 = vunpack.c.l.b16 %v2947
  %v3048 = vunpack.c.l.b16 %v2948
  %v3049 = vunpack.c.l.b16 %v2949
  %v3050 = vunpack.c.l.b16 %v2950
  %v3051 = vunpack.c.l.b16 %v2951
  %v3052 = vunpack.c.l.b16 %v2952
  %v3053 = vunpack.c.l.b16 %v2953
  %v3054 = vpack.c.b16 %v3007, %v3006
  %v3055 = vpack.c.b16 %v3009, %v3008
  %v3056 = vpack.c.b16 %v3011, %v3010
  %v3057 = vpack.c.b16 %v3013, %v3012
  %v3058 = vpack.c.b16 %v3015, %v3014
  %v3059 = vpack.c.b16 %v3017, %v3016
  %v3060 = vpack.c.b16 %v3019, %v3018
  %v3061 = vpack.c.b16 %v3021, %v3020
  %v3062 = vpack.c.b16 %v3023, %v3022
  %v3063 = vpack.c.b16 %v3025, %v3024
  %v3064 = vpack.c.b16 %v3027, %v3026
  %v3065 = vpack.c.b16 %v3029, %v3028
  %v3066 = vpack.c.b16 %v3031, %v3030
  %v3067 = vpack.c.b16 %v3033, %v3032
  %v3068 = vpack.c.b16 %v3035, %v3034
  %v3069 = vpack.c.b16 %v3037, %v3036
  %v3070 = vpack.c.b16 %v3039, %v3038
  %v3071 = vpack.c.b16 %v3041, %v3040
  %v3072 = vpack.c.b16 %v3043, %v3042
  %v3073 = vpack.c.b16 %v3045, %v3044
  %v3074 = vpack.c.b16 %v3047, %v3046
  %v3075 = vpack.c.b16 %v3049, %v3048
  %v3076 = vpack.c.b16 %v3051, %v3050
  %v3077 = vpack.c.b16 %v3053, %v3052
  %3102 = vmatpush.bf16.msra.mxu0 %v3061
  %3103 = vmatpush.bf16.msra.mxu0 %v3060
  %3104 = vmatpush.bf16.msra.mxu0 %v3059
  %3105 = vmatpush.bf16.msra.mxu0 %v3058
  %3106 = vmatpush.bf16.msra.mxu0 %v3057
  %3107 = vmatpush.bf16.msra.mxu0 %v3056
  %3108 = vmatpush.bf16.msra.mxu0 %v3055
  %3109 = vmatpush.bf16.msra.mxu0 %v3054
  %3110 = vmatmul.bf16.gmra.mxu0 %v2897
  %v3111 = vpop.f32.mrf.mxu0
  %v3112 = vadd.f32 %v2956, %v3111
  %v3113 = vpop.f32.mrf.mxu0
  %v3114 = vadd.f32 %v2956, %v3113
  %3115 = vmatmul.bf16.gmra.mxu0 %v2900
  %v3116 = vpop.f32.mrf.mxu0
  %v3117 = vadd.f32 %v2956, %v3116
  %v3118 = vpop.f32.mrf.mxu0
  %v3119 = vadd.f32 %v2956, %v3118
  %3120 = vmatmul.bf16.gmra.mxu0 %v2903
  %v3121 = vpop.f32.mrf.mxu0
  %v3122 = vadd.f32 %v2956, %v3121
  %v3123 = vpop.f32.mrf.mxu0
  %3124 = vdwg.mxu0
  %3125 = vmatpush.bf16.msra.mxu0 %v3069
  %3126 = vmatpush.bf16.msra.mxu0 %v3068
  %3127 = vmatpush.bf16.msra.mxu0 %v3067
  %3128 = vmatpush.bf16.msra.mxu0 %v3066
  %3129 = vmatpush.bf16.msra.mxu0 %v3065
  %3130 = vmatpush.bf16.msra.mxu0 %v3064
  %3131 = vmatpush.bf16.msra.mxu0 %v3063
  %3132 = vmatpush.bf16.msra.mxu0 %v3062
  %3133 = vmatmul.bf16.gmra.mxu0 %v2898
  %v3134 = vpop.f32.mrf.mxu0
  %v3135 = vadd.f32 %v3112, %v3134
  %v3136 = vpop.f32.mrf.mxu0
  %v3137 = vadd.f32 %v3114, %v3136
  %3138 = vmatmul.bf16.gmra.mxu0 %v2901
  %v3139 = vpop.f32.mrf.mxu0
  %v3140 = vadd.f32 %v3117, %v3139
  %v3141 = vpop.f32.mrf.mxu0
  %v3142 = vadd.f32 %v3119, %v3141
  %3143 = vmatmul.bf16.gmra.mxu0 %v2904
  %v3144 = vpop.f32.mrf.mxu0
  %v3145 = vadd.f32 %v3122, %v3144
  %v3146 = vpop.f32.mrf.mxu0
  %3147 = vdwg.mxu0
  %3148 = vmatpush.bf16.msra.mxu0 %v3077
  %3149 = vmatpush.bf16.msra.mxu0 %v3076
  %3150 = vmatpush.bf16.msra.mxu0 %v3075
  %3151 = vmatpush.bf16.msra.mxu0 %v3074
  %3152 = vmatpush.bf16.msra.mxu0 %v3073
  %3153 = vmatpush.bf16.msra.mxu0 %v3072
  %3154 = vmatpush.bf16.msra.mxu0 %v3071
  %3155 = vmatpush.bf16.msra.mxu0 %v3070
  %3156 = vmatmul.bf16.gmra.mxu0 %v2899
  %v3157 = vpop.f32.mrf.mxu0
  %v3158 = vadd.f32 %v3135, %v3157
  %v3159 = vpop.f32.mrf.mxu0
  %v3160 = vadd.f32 %v3137, %v3159
  %3161 = vmatmul.bf16.gmra.mxu0 %v2902
  %v3162 = vpop.f32.mrf.mxu0
  %v3163 = vadd.f32 %v3140, %v3162
  %v3164 = vpop.f32.mrf.mxu0
  %v3165 = vadd.f32 %v3142, %v3164
  %3166 = vmatmul.bf16.gmra.mxu0 %v2905
  %v3167 = vpop.f32.mrf.mxu0
  %v3168 = vadd.f32 %v3145, %v3167
  %v3169 = vpop.f32.mrf.mxu0
  %3170 = vdwg.mxu0
  %v3171 = vmax.f32 %v3158, 0.0
  %v3172 = vmax.f32 %v3160, 0.0
  %v3173 = vmax.f32 %v3163, 0.0
  %v3174 = vmax.f32 %v3165, 0.0
  %v3175 = vmax.f32 %v3168, 0.0
  %v3176 = vmul.f32 %v3171, %v651
  %v3177 = vmul.f32 %v3172, %v656
  %v3178 = vmul.f32 %v3173, %v661
  %v3179 = vmul.f32 %v3174, %v666
  %v3180 = vmul.f32 %v3175, %v671
  %3181 = vst [vmem:[#allocation3] sm:$0xff] %v3176
  %3182 = vst [vmem:[#allocation3 + $0x8] sm:$0xff] %v3177
  %3183 = vst [vmem:[#allocation3 + $0x10] sm:$0xff] %v3178
  %3184 = vst [vmem:[#allocation3 + $0x18] sm:$0xff] %v3179
  %3185 = vst [vmem:[#allocation3 + $0x20] sm:$0xff] %v3180
  %v3186 = vld [vmem:[#allocation3] sm:$0xff]
  %v3187 = vld [vmem:[#allocation3 + $0x8] sm:$0xff]
  %v3188 = vld [vmem:[#allocation3 + $0x10] sm:$0xff]
  %v3189 = vld [vmem:[#allocation3 + $0x18] sm:$0xff]
  %v3190 = vld [vmem:[#allocation3 + $0x20] sm:$0xff]
  %v3191 = vrot.slane %v3186, 7
  %v3192 = vrot.slane %v3187, 7
  %v3193 = vrot.slane %v3188, 7
  %v3194 = vrot.slane %v3189, 7
  %v3195 = vrot.slane %v3190, 7
  %v3196 = vsel %vm111, %v3194, %v3195
  %v3197 = vsel %vm111, %v3193, %v3194
  %v3198 = vsel %vm111, %v3192, %v3193
  %v3199 = vsel %vm111, %v3191, %v3192
  %v3200 = vsel %vm111, %v3195, %v3191
  %v3201 = vrot.slane %v3186, 1
  %v3202 = vrot.slane %v3187, 1
  %v3203 = vrot.slane %v3188, 1
  %v3204 = vrot.slane %v3189, 1
  %v3205 = vrot.slane %v3190, 1
  %v3206 = vsel %vm122, %v3204, %v3205
  %v3207 = vsel %vm122, %v3203, %v3204
  %v3208 = vsel %vm122, %v3202, %v3203
  %v3209 = vsel %vm122, %v3201, %v3202
  %v3210 = vsel %vm122, %v3205, %v3201
  %v3211 = vpack.c.bf16 %v3199, %v3200
  %v3212 = vpack.c.bf16 %v3187, %v3186
  %v3213 = vpack.c.bf16 %v3208, %v3209
  %v3214 = vpack.c.bf16 %v3197, %v3198
  %v3215 = vpack.c.bf16 %v3189, %v3188
  %v3216 = vpack.c.bf16 %v3206, %v3207
  %v3217 = vpack.c.bf16 %v3196, %v3196
  %v3218 = vpack.c.bf16 %v3190, %v3190
  %v3219 = vpack.c.bf16 %v3210, %v3210
  %v3220 = vld [vmem:[%s18] sm:$0xf]
  %v3221 = vld [vmem:[%s18 + $0x4] sm:$0xf]
  %v3222 = vld [vmem:[%s18 + $0x8] sm:$0xf]
  %v3223 = vld [vmem:[%s18 + $0xc] sm:$0xf]
  %v3224 = vld [vmem:[%s18 + $0x10] sm:$0xf]
  %v3225 = vld [vmem:[%s18 + $0x14] sm:$0xf]
  %v3226 = vld [vmem:[%s18 + $0x18] sm:$0xf]
  %v3227 = vld [vmem:[%s18 + $0x1c] sm:$0xf]
  %v3228 = vld [vmem:[%s18 + $0x20] sm:$0xf]
  %v3229 = vld [vmem:[%s18 + $0x24] sm:$0xf]
  %v3230 = vld [vmem:[%s18 + $0x28] sm:$0xf]
  %v3231 = vld [vmem:[%s18 + $0x2c] sm:$0xf]
  %v3232 = vld [vmem:[%s18 + $0x30] sm:$0xf]
  %v3233 = vld [vmem:[%s18 + $0x34] sm:$0xf]
  %v3234 = vld [vmem:[%s18 + $0x38] sm:$0xf]
  %v3235 = vld [vmem:[%s18 + $0x3c] sm:$0xf]
  %v3236 = vld [vmem:[%s18 + $0x40] sm:$0xf]
  %v3237 = vld [vmem:[%s18 + $0x44] sm:$0xf]
  %v3238 = vld [vmem:[%s18 + $0x48] sm:$0xf]
  %v3239 = vld [vmem:[%s18 + $0x4c] sm:$0xf]
  %v3240 = vld [vmem:[%s18 + $0x50] sm:$0xf]
  %v3241 = vld [vmem:[%s18 + $0x54] sm:$0xf]
  %v3242 = vld [vmem:[%s18 + $0x58] sm:$0xf]
  %v3243 = vld [vmem:[%s18 + $0x5c] sm:$0xf]
  %v3244 = vld [vmem:[%s18 + $0x60] sm:$0xf]
  %v3245 = vld [vmem:[%s18 + $0x64] sm:$0xf]
  %v3246 = vld [vmem:[%s18 + $0x68] sm:$0xf]
  %v3247 = vld [vmem:[%s18 + $0x6c] sm:$0xf]
  %v3248 = vld [vmem:[%s18 + $0x70] sm:$0xf]
  %v3249 = vld [vmem:[%s18 + $0x74] sm:$0xf]
  %v3250 = vld [vmem:[%s18 + $0x78] sm:$0xf]
  %v3251 = vld [vmem:[%s18 + $0x7c] sm:$0xf]
  %v3252 = vld [vmem:[%s18 + $0x80] sm:$0xf]
  %v3253 = vld [vmem:[%s18 + $0x84] sm:$0xf]
  %v3254 = vld [vmem:[%s18 + $0x88] sm:$0xf]
  %v3255 = vld [vmem:[%s18 + $0x8c] sm:$0xf]
  %v3256 = vld [vmem:[%s18 + $0x90] sm:$0xf]
  %v3257 = vld [vmem:[%s18 + $0x94] sm:$0xf]
  %v3258 = vld [vmem:[%s18 + $0x98] sm:$0xf]
  %v3259 = vld [vmem:[%s18 + $0x9c] sm:$0xf]
  %v3260 = vld [vmem:[%s18 + $0xa0] sm:$0xf]
  %v3261 = vld [vmem:[%s18 + $0xa4] sm:$0xf]
  %v3262 = vld [vmem:[%s18 + $0xa8] sm:$0xf]
  %v3263 = vld [vmem:[%s18 + $0xac] sm:$0xf]
  %v3264 = vld [vmem:[%s18 + $0xb0] sm:$0xf]
  %v3265 = vld [vmem:[%s18 + $0xb4] sm:$0xf]
  %v3266 = vld [vmem:[%s18 + $0xb8] sm:$0xf]
  %v3267 = vld [vmem:[%s18 + $0xbc] sm:$0xf]
  %v3268 = vld [vmem:[%s19] sm:$0x1]
  %v3270 = vperm.slane %v3268, 0
  %v3320 = vunpack.c.l.b16 %v3220
  %v3321 = vunpack.c.l.b16 %v3221
  %v3322 = vunpack.c.l.b16 %v3222
  %v3323 = vunpack.c.l.b16 %v3223
  %v3324 = vunpack.c.l.b16 %v3224
  %v3325 = vunpack.c.l.b16 %v3225
  %v3326 = vunpack.c.l.b16 %v3226
  %v3327 = vunpack.c.l.b16 %v3227
  %v3328 = vunpack.c.l.b16 %v3228
  %v3329 = vunpack.c.l.b16 %v3229
  %v3330 = vunpack.c.l.b16 %v3230
  %v3331 = vunpack.c.l.b16 %v3231
  %v3332 = vunpack.c.l.b16 %v3232
  %v3333 = vunpack.c.l.b16 %v3233
  %v3334 = vunpack.c.l.b16 %v3234
  %v3335 = vunpack.c.l.b16 %v3235
  %v3336 = vunpack.c.l.b16 %v3236
  %v3337 = vunpack.c.l.b16 %v3237
  %v3338 = vunpack.c.l.b16 %v3238
  %v3339 = vunpack.c.l.b16 %v3239
  %v3340 = vunpack.c.l.b16 %v3240
  %v3341 = vunpack.c.l.b16 %v3241
  %v3342 = vunpack.c.l.b16 %v3242
  %v3343 = vunpack.c.l.b16 %v3243
  %v3344 = vunpack.c.l.b16 %v3244
  %v3345 = vunpack.c.l.b16 %v3245
  %v3346 = vunpack.c.l.b16 %v3246
  %v3347 = vunpack.c.l.b16 %v3247
  %v3348 = vunpack.c.l.b16 %v3248
  %v3349 = vunpack.c.l.b16 %v3249
  %v3350 = vunpack.c.l.b16 %v3250
  %v3351 = vunpack.c.l.b16 %v3251
  %v3352 = vunpack.c.l.b16 %v3252
  %v3353 = vunpack.c.l.b16 %v3253
  %v3354 = vunpack.c.l.b16 %v3254
  %v3355 = vunpack.c.l.b16 %v3255
  %v3356 = vunpack.c.l.b16 %v3256
  %v3357 = vunpack.c.l.b16 %v3257
  %v3358 = vunpack.c.l.b16 %v3258
  %v3359 = vunpack.c.l.b16 %v3259
  %v3360 = vunpack.c.l.b16 %v3260
  %v3361 = vunpack.c.l.b16 %v3261
  %v3362 = vunpack.c.l.b16 %v3262
  %v3363 = vunpack.c.l.b16 %v3263
  %v3364 = vunpack.c.l.b16 %v3264
  %v3365 = vunpack.c.l.b16 %v3265
  %v3366 = vunpack.c.l.b16 %v3266
  %v3367 = vunpack.c.l.b16 %v3267
  %v3368 = vpack.c.b16 %v3321, %v3320
  %v3369 = vpack.c.b16 %v3323, %v3322
  %v3370 = vpack.c.b16 %v3325, %v3324
  %v3371 = vpack.c.b16 %v3327, %v3326
  %v3372 = vpack.c.b16 %v3329, %v3328
  %v3373 = vpack.c.b16 %v3331, %v3330
  %v3374 = vpack.c.b16 %v3333, %v3332
  %v3375 = vpack.c.b16 %v3335, %v3334
  %v3376 = vpack.c.b16 %v3337, %v3336
  %v3377 = vpack.c.b16 %v3339, %v3338
  %v3378 = vpack.c.b16 %v3341, %v3340
  %v3379 = vpack.c.b16 %v3343, %v3342
  %v3380 = vpack.c.b16 %v3345, %v3344
  %v3381 = vpack.c.b16 %v3347, %v3346
  %v3382 = vpack.c.b16 %v3349, %v3348
  %v3383 = vpack.c.b16 %v3351, %v3350
  %v3384 = vpack.c.b16 %v3353, %v3352
  %v3385 = vpack.c.b16 %v3355, %v3354
  %v3386 = vpack.c.b16 %v3357, %v3356
  %v3387 = vpack.c.b16 %v3359, %v3358
  %v3388 = vpack.c.b16 %v3361, %v3360
  %v3389 = vpack.c.b16 %v3363, %v3362
  %v3390 = vpack.c.b16 %v3365, %v3364
  %v3391 = vpack.c.b16 %v3367, %v3366
  %3416 = vmatpush.bf16.msra.mxu0 %v3375
  %3417 = vmatpush.bf16.msra.mxu0 %v3374
  %3418 = vmatpush.bf16.msra.mxu0 %v3373
  %3419 = vmatpush.bf16.msra.mxu0 %v3372
  %3420 = vmatpush.bf16.msra.mxu0 %v3371
  %3421 = vmatpush.bf16.msra.mxu0 %v3370
  %3422 = vmatpush.bf16.msra.mxu0 %v3369
  %3423 = vmatpush.bf16.msra.mxu0 %v3368
  %3424 = vmatmul.bf16.gmra.mxu0 %v3211
  %v3425 = vpop.f32.mrf.mxu0
  %v3426 = vadd.f32 %v3270, %v3425
  %v3427 = vpop.f32.mrf.mxu0
  %v3428 = vadd.f32 %v3270, %v3427
  %3429 = vmatmul.bf16.gmra.mxu0 %v3214
  %v3430 = vpop.f32.mrf.mxu0
  %v3431 = vadd.f32 %v3270, %v3430
  %v3432 = vpop.f32.mrf.mxu0
  %v3433 = vadd.f32 %v3270, %v3432
  %3434 = vmatmul.bf16.gmra.mxu0 %v3217
  %v3435 = vpop.f32.mrf.mxu0
  %v3436 = vadd.f32 %v3270, %v3435
  %v3437 = vpop.f32.mrf.mxu0
  %3438 = vdwg.mxu0
  %3439 = vmatpush.bf16.msra.mxu0 %v3383
  %3440 = vmatpush.bf16.msra.mxu0 %v3382
  %3441 = vmatpush.bf16.msra.mxu0 %v3381
  %3442 = vmatpush.bf16.msra.mxu0 %v3380
  %3443 = vmatpush.bf16.msra.mxu0 %v3379
  %3444 = vmatpush.bf16.msra.mxu0 %v3378
  %3445 = vmatpush.bf16.msra.mxu0 %v3377
  %3446 = vmatpush.bf16.msra.mxu0 %v3376
  %3447 = vmatmul.bf16.gmra.mxu0 %v3212
  %v3448 = vpop.f32.mrf.mxu0
  %v3449 = vadd.f32 %v3426, %v3448
  %v3450 = vpop.f32.mrf.mxu0
  %v3451 = vadd.f32 %v3428, %v3450
  %3452 = vmatmul.bf16.gmra.mxu0 %v3215
  %v3453 = vpop.f32.mrf.mxu0
  %v3454 = vadd.f32 %v3431, %v3453
  %v3455 = vpop.f32.mrf.mxu0
  %v3456 = vadd.f32 %v3433, %v3455
  %3457 = vmatmul.bf16.gmra.mxu0 %v3218
  %v3458 = vpop.f32.mrf.mxu0
  %v3459 = vadd.f32 %v3436, %v3458
  %v3460 = vpop.f32.mrf.mxu0
  %3461 = vdwg.mxu0
  %3462 = vmatpush.bf16.msra.mxu0 %v3391
  %3463 = vmatpush.bf16.msra.mxu0 %v3390
  %3464 = vmatpush.bf16.msra.mxu0 %v3389
  %3465 = vmatpush.bf16.msra.mxu0 %v3388
  %3466 = vmatpush.bf16.msra.mxu0 %v3387
  %3467 = vmatpush.bf16.msra.mxu0 %v3386
  %3468 = vmatpush.bf16.msra.mxu0 %v3385
  %3469 = vmatpush.bf16.msra.mxu0 %v3384
  %3470 = vmatmul.bf16.gmra.mxu0 %v3213
  %v3471 = vpop.f32.mrf.mxu0
  %v3472 = vadd.f32 %v3449, %v3471
  %v3473 = vpop.f32.mrf.mxu0
  %v3474 = vadd.f32 %v3451, %v3473
  %3475 = vmatmul.bf16.gmra.mxu0 %v3216
  %v3476 = vpop.f32.mrf.mxu0
  %v3477 = vadd.f32 %v3454, %v3476
  %v3478 = vpop.f32.mrf.mxu0
  %v3479 = vadd.f32 %v3456, %v3478
  %3480 = vmatmul.bf16.gmra.mxu0 %v3219
  %v3481 = vpop.f32.mrf.mxu0
  %v3482 = vadd.f32 %v3459, %v3481
  %v3483 = vpop.f32.mrf.mxu0
  %3484 = vdwg.mxu0
  %v3485 = vmax.f32 %v3472, 0.0
  %v3486 = vmax.f32 %v3474, 0.0
  %v3487 = vmax.f32 %v3477, 0.0
  %v3488 = vmax.f32 %v3479, 0.0
  %v3489 = vmax.f32 %v3482, 0.0
  %v3490 = vmul.f32 %v3485, %v651
  %v3491 = vmul.f32 %v3486, %v656
  %v3492 = vmul.f32 %v3487, %v661
  %v3493 = vmul.f32 %v3488, %v666
  %v3494 = vmul.f32 %v3489, %v671
  %3495 = vst [vmem:[#allocation4] sm:$0xff] %v3490
  %3496 = vst [vmem:[#allocation4 + $0x8] sm:$0xff] %v3491
  %3497 = vst [vmem:[#allocation4 + $0x10] sm:$0xff] %v3492
  %3498 = vst [vmem:[#allocation4 + $0x18] sm:$0xff] %v3493
  %3499 = vst [vmem:[#allocation4 + $0x20] sm:$0xff] %v3494
  %v3500 = vld [vmem:[#allocation4] sm:$0xff]
  %v3501 = vld [vmem:[#allocation4 + $0x8] sm:$0xff]
  %v3502 = vld [vmem:[#allocation4 + $0x10] sm:$0xff]
  %v3503 = vld [vmem:[#allocation4 + $0x18] sm:$0xff]
  %v3504 = vld [vmem:[#allocation4 + $0x20] sm:$0xff]
  %v3505 = vrot.slane %v3500, 7
  %v3506 = vrot.slane %v3501, 7
  %v3507 = vrot.slane %v3502, 7
  %v3508 = vrot.slane %v3503, 7
  %v3509 = vrot.slane %v3504, 7
  %v3510 = vsel %vm111, %v3508, %v3509
  %v3511 = vsel %vm111, %v3507, %v3508
  %v3512 = vsel %vm111, %v3506, %v3507
  %v3513 = vsel %vm111, %v3505, %v3506
  %v3514 = vsel %vm111, %v3509, %v3505
  %v3515 = vrot.slane %v3500, 1
  %v3516 = vrot.slane %v3501, 1
  %v3517 = vrot.slane %v3502, 1
  %v3518 = vrot.slane %v3503, 1
  %v3519 = vrot.slane %v3504, 1
  %v3520 = vsel %vm122, %v3518, %v3519
  %v3521 = vsel %vm122, %v3517, %v3518
  %v3522 = vsel %vm122, %v3516, %v3517
  %v3523 = vsel %vm122, %v3515, %v3516
  %v3524 = vsel %vm122, %v3519, %v3515
  %v3525 = vpack.c.bf16 %v3513, %v3514
  %v3526 = vpack.c.bf16 %v3501, %v3500
  %v3527 = vpack.c.bf16 %v3522, %v3523
  %v3528 = vpack.c.bf16 %v3511, %v3512
  %v3529 = vpack.c.bf16 %v3503, %v3502
  %v3530 = vpack.c.bf16 %v3520, %v3521
  %v3531 = vpack.c.bf16 %v3510, %v3510
  %v3532 = vpack.c.bf16 %v3504, %v3504
  %v3533 = vpack.c.bf16 %v3524, %v3524
  %v3534 = vld [vmem:[%s20] sm:$0xf]
  %v3535 = vld [vmem:[%s20 + $0x4] sm:$0xf]
  %v3536 = vld [vmem:[%s20 + $0x8] sm:$0xf]
  %v3537 = vld [vmem:[%s20 + $0xc] sm:$0xf]
  %v3538 = vld [vmem:[%s20 + $0x10] sm:$0xf]
  %v3539 = vld [vmem:[%s20 + $0x14] sm:$0xf]
  %v3540 = vld [vmem:[%s20 + $0x18] sm:$0xf]
  %v3541 = vld [vmem:[%s20 + $0x1c] sm:$0xf]
  %v3542 = vld [vmem:[%s20 + $0x20] sm:$0xf]
  %v3543 = vld [vmem:[%s20 + $0x24] sm:$0xf]
  %v3544 = vld [vmem:[%s20 + $0x28] sm:$0xf]
  %v3545 = vld [vmem:[%s20 + $0x2c] sm:$0xf]
  %v3546 = vld [vmem:[%s20 + $0x30] sm:$0xf]
  %v3547 = vld [vmem:[%s20 + $0x34] sm:$0xf]
  %v3548 = vld [vmem:[%s20 + $0x38] sm:$0xf]
  %v3549 = vld [vmem:[%s20 + $0x3c] sm:$0xf]
  %v3550 = vld [vmem:[%s20 + $0x40] sm:$0xf]
  %v3551 = vld [vmem:[%s20 + $0x44] sm:$0xf]
  %v3552 = vld [vmem:[%s20 + $0x48] sm:$0xf]
  %v3553 = vld [vmem:[%s20 + $0x4c] sm:$0xf]
  %v3554 = vld [vmem:[%s20 + $0x50] sm:$0xf]
  %v3555 = vld [vmem:[%s20 + $0x54] sm:$0xf]
  %v3556 = vld [vmem:[%s20 + $0x58] sm:$0xf]
  %v3557 = vld [vmem:[%s20 + $0x5c] sm:$0xf]
  %v3558 = vld [vmem:[%s20 + $0x60] sm:$0xf]
  %v3559 = vld [vmem:[%s20 + $0x64] sm:$0xf]
  %v3560 = vld [vmem:[%s20 + $0x68] sm:$0xf]
  %v3561 = vld [vmem:[%s20 + $0x6c] sm:$0xf]
  %v3562 = vld [vmem:[%s20 + $0x70] sm:$0xf]
  %v3563 = vld [vmem:[%s20 + $0x74] sm:$0xf]
  %v3564 = vld [vmem:[%s20 + $0x78] sm:$0xf]
  %v3565 = vld [vmem:[%s20 + $0x7c] sm:$0xf]
  %v3566 = vld [vmem:[%s20 + $0x80] sm:$0xf]
  %v3567 = vld [vmem:[%s20 + $0x84] sm:$0xf]
  %v3568 = vld [vmem:[%s20 + $0x88] sm:$0xf]
  %v3569 = vld [vmem:[%s20 + $0x8c] sm:$0xf]
  %v3570 = vld [vmem:[%s20 + $0x90] sm:$0xf]
  %v3571 = vld [vmem:[%s20 + $0x94] sm:$0xf]
  %v3572 = vld [vmem:[%s20 + $0x98] sm:$0xf]
  %v3573 = vld [vmem:[%s20 + $0x9c] sm:$0xf]
  %v3574 = vld [vmem:[%s20 + $0xa0] sm:$0xf]
  %v3575 = vld [vmem:[%s20 + $0xa4] sm:$0xf]
  %v3576 = vld [vmem:[%s20 + $0xa8] sm:$0xf]
  %v3577 = vld [vmem:[%s20 + $0xac] sm:$0xf]
  %v3578 = vld [vmem:[%s20 + $0xb0] sm:$0xf]
  %v3579 = vld [vmem:[%s20 + $0xb4] sm:$0xf]
  %v3580 = vld [vmem:[%s20 + $0xb8] sm:$0xf]
  %v3581 = vld [vmem:[%s20 + $0xbc] sm:$0xf]
  %v3582 = vld [vmem:[%s21] sm:$0x1]
  %v3584 = vperm.slane %v3582, 0
  %v3634 = vunpack.c.l.b16 %v3534
  %v3635 = vunpack.c.l.b16 %v3535
  %v3636 = vunpack.c.l.b16 %v3536
  %v3637 = vunpack.c.l.b16 %v3537
  %v3638 = vunpack.c.l.b16 %v3538
  %v3639 = vunpack.c.l.b16 %v3539
  %v3640 = vunpack.c.l.b16 %v3540
  %v3641 = vunpack.c.l.b16 %v3541
  %v3642 = vunpack.c.l.b16 %v3542
  %v3643 = vunpack.c.l.b16 %v3543
  %v3644 = vunpack.c.l.b16 %v3544
  %v3645 = vunpack.c.l.b16 %v3545
  %v3646 = vunpack.c.l.b16 %v3546
  %v3647 = vunpack.c.l.b16 %v3547
  %v3648 = vunpack.c.l.b16 %v3548
  %v3649 = vunpack.c.l.b16 %v3549
  %v3650 = vunpack.c.l.b16 %v3550
  %v3651 = vunpack.c.l.b16 %v3551
  %v3652 = vunpack.c.l.b16 %v3552
  %v3653 = vunpack.c.l.b16 %v3553
  %v3654 = vunpack.c.l.b16 %v3554
  %v3655 = vunpack.c.l.b16 %v3555
  %v3656 = vunpack.c.l.b16 %v3556
  %v3657 = vunpack.c.l.b16 %v3557
  %v3658 = vunpack.c.l.b16 %v3558
  %v3659 = vunpack.c.l.b16 %v3559
  %v3660 = vunpack.c.l.b16 %v3560
  %v3661 = vunpack.c.l.b16 %v3561
  %v3662 = vunpack.c.l.b16 %v3562
  %v3663 = vunpack.c.l.b16 %v3563
  %v3664 = vunpack.c.l.b16 %v3564
  %v3665 = vunpack.c.l.b16 %v3565
  %v3666 = vunpack.c.l.b16 %v3566
  %v3667 = vunpack.c.l.b16 %v3567
  %v3668 = vunpack.c.l.b16 %v3568
  %v3669 = vunpack.c.l.b16 %v3569
  %v3670 = vunpack.c.l.b16 %v3570
  %v3671 = vunpack.c.l.b16 %v3571
  %v3672 = vunpack.c.l.b16 %v3572
  %v3673 = vunpack.c.l.b16 %v3573
  %v3674 = vunpack.c.l.b16 %v3574
  %v3675 = vunpack.c.l.b16 %v3575
  %v3676 = vunpack.c.l.b16 %v3576
  %v3677 = vunpack.c.l.b16 %v3577
  %v3678 = vunpack.c.l.b16 %v3578
  %v3679 = vunpack.c.l.b16 %v3579
  %v3680 = vunpack.c.l.b16 %v3580
  %v3681 = vunpack.c.l.b16 %v3581
  %v3682 = vpack.c.b16 %v3635, %v3634
  %v3683 = vpack.c.b16 %v3637, %v3636
  %v3684 = vpack.c.b16 %v3639, %v3638
  %v3685 = vpack.c.b16 %v3641, %v3640
  %v3686 = vpack.c.b16 %v3643, %v3642
  %v3687 = vpack.c.b16 %v3645, %v3644
  %v3688 = vpack.c.b16 %v3647, %v3646
  %v3689 = vpack.c.b16 %v3649, %v3648
  %v3690 = vpack.c.b16 %v3651, %v3650
  %v3691 = vpack.c.b16 %v3653, %v3652
  %v3692 = vpack.c.b16 %v3655, %v3654
  %v3693 = vpack.c.b16 %v3657, %v3656
  %v3694 = vpack.c.b16 %v3659, %v3658
  %v3695 = vpack.c.b16 %v3661, %v3660
  %v3696 = vpack.c.b16 %v3663, %v3662
  %v3697 = vpack.c.b16 %v3665, %v3664
  %v3698 = vpack.c.b16 %v3667, %v3666
  %v3699 = vpack.c.b16 %v3669, %v3668
  %v3700 = vpack.c.b16 %v3671, %v3670
  %v3701 = vpack.c.b16 %v3673, %v3672
  %v3702 = vpack.c.b16 %v3675, %v3674
  %v3703 = vpack.c.b16 %v3677, %v3676
  %v3704 = vpack.c.b16 %v3679, %v3678
  %v3705 = vpack.c.b16 %v3681, %v3680
  %3730 = vmatpush.bf16.msra.mxu0 %v3689
  %3731 = vmatpush.bf16.msra.mxu0 %v3688
  %3732 = vmatpush.bf16.msra.mxu0 %v3687
  %3733 = vmatpush.bf16.msra.mxu0 %v3686
  %3734 = vmatpush.bf16.msra.mxu0 %v3685
  %3735 = vmatpush.bf16.msra.mxu0 %v3684
  %3736 = vmatpush.bf16.msra.mxu0 %v3683
  %3737 = vmatpush.bf16.msra.mxu0 %v3682
  %3738 = vmatmul.bf16.gmra.mxu0 %v3525
  %v3739 = vpop.f32.mrf.mxu0
  %v3740 = vadd.f32 %v3584, %v3739
  %v3741 = vpop.f32.mrf.mxu0
  %v3742 = vadd.f32 %v3584, %v3741
  %3743 = vmatmul.bf16.gmra.mxu0 %v3528
  %v3744 = vpop.f32.mrf.mxu0
  %v3745 = vadd.f32 %v3584, %v3744
  %v3746 = vpop.f32.mrf.mxu0
  %v3747 = vadd.f32 %v3584, %v3746
  %3748 = vmatmul.bf16.gmra.mxu0 %v3531
  %v3749 = vpop.f32.mrf.mxu0
  %v3750 = vadd.f32 %v3584, %v3749
  %v3751 = vpop.f32.mrf.mxu0
  %3752 = vdwg.mxu0
  %3753 = vmatpush.bf16.msra.mxu0 %v3697
  %3754 = vmatpush.bf16.msra.mxu0 %v3696
  %3755 = vmatpush.bf16.msra.mxu0 %v3695
  %3756 = vmatpush.bf16.msra.mxu0 %v3694
  %3757 = vmatpush.bf16.msra.mxu0 %v3693
  %3758 = vmatpush.bf16.msra.mxu0 %v3692
  %3759 = vmatpush.bf16.msra.mxu0 %v3691
  %3760 = vmatpush.bf16.msra.mxu0 %v3690
  %3761 = vmatmul.bf16.gmra.mxu0 %v3526
  %v3762 = vpop.f32.mrf.mxu0
  %v3763 = vadd.f32 %v3740, %v3762
  %v3764 = vpop.f32.mrf.mxu0
  %v3765 = vadd.f32 %v3742, %v3764
  %3766 = vmatmul.bf16.gmra.mxu0 %v3529
  %v3767 = vpop.f32.mrf.mxu0
  %v3768 = vadd.f32 %v3745, %v3767
  %v3769 = vpop.f32.mrf.mxu0
  %v3770 = vadd.f32 %v3747, %v3769
  %3771 = vmatmul.bf16.gmra.mxu0 %v3532
  %v3772 = vpop.f32.mrf.mxu0
  %v3773 = vadd.f32 %v3750, %v3772
  %v3774 = vpop.f32.mrf.mxu0
  %3775 = vdwg.mxu0
  %3776 = vmatpush.bf16.msra.mxu0 %v3705
  %3777 = vmatpush.bf16.msra.mxu0 %v3704
  %3778 = vmatpush.bf16.msra.mxu0 %v3703
  %3779 = vmatpush.bf16.msra.mxu0 %v3702
  %3780 = vmatpush.bf16.msra.mxu0 %v3701
  %3781 = vmatpush.bf16.msra.mxu0 %v3700
  %3782 = vmatpush.bf16.msra.mxu0 %v3699
  %3783 = vmatpush.bf16.msra.mxu0 %v3698
  %3784 = vmatmul.bf16.gmra.mxu0 %v3527
  %v3785 = vpop.f32.mrf.mxu0
  %v3786 = vadd.f32 %v3763, %v3785
  %v3787 = vpop.f32.mrf.mxu0
  %v3788 = vadd.f32 %v3765, %v3787
  %3789 = vmatmul.bf16.gmra.mxu0 %v3530
  %v3790 = vpop.f32.mrf.mxu0
  %v3791 = vadd.f32 %v3768, %v3790
  %v3792 = vpop.f32.mrf.mxu0
  %v3793 = vadd.f32 %v3770, %v3792
  %3794 = vmatmul.bf16.gmra.mxu0 %v3533
  %v3795 = vpop.f32.mrf.mxu0
  %v3796 = vadd.f32 %v3773, %v3795
  %v3797 = vpop.f32.mrf.mxu0
  %3798 = vdwg.mxu0
  %v3799 = vmax.f32 %v3786, 0.0
  %v3800 = vmax.f32 %v3788, 0.0
  %v3801 = vmax.f32 %v3791, 0.0
  %v3802 = vmax.f32 %v3793, 0.0
  %v3803 = vmax.f32 %v3796, 0.0
  %v3804 = vmul.f32 %v3799, %v651
  %v3805 = vmul.f32 %v3800, %v656
  %v3806 = vmul.f32 %v3801, %v661
  %v3807 = vmul.f32 %v3802, %v666
  %v3808 = vmul.f32 %v3803, %v671
  %3809 = vst [vmem:[#allocation3] sm:$0xff] %v3804
  %3810 = vst [vmem:[#allocation3 + $0x8] sm:$0xff] %v3805
  %3811 = vst [vmem:[#allocation3 + $0x10] sm:$0xff] %v3806
  %3812 = vst [vmem:[#allocation3 + $0x18] sm:$0xff] %v3807
  %3813 = vst [vmem:[#allocation3 + $0x20] sm:$0xff] %v3808
  %v3814 = vld [vmem:[#allocation3] sm:$0xff]
  %v3815 = vld [vmem:[#allocation3 + $0x8] sm:$0xff]
  %v3816 = vld [vmem:[#allocation3 + $0x10] sm:$0xff]
  %v3817 = vld [vmem:[#allocation3 + $0x18] sm:$0xff]
  %v3818 = vld [vmem:[#allocation3 + $0x20] sm:$0xff]
  %v3819 = vrot.slane %v3814, 7
  %v3820 = vrot.slane %v3815, 7
  %v3821 = vrot.slane %v3816, 7
  %v3822 = vrot.slane %v3817, 7
  %v3823 = vrot.slane %v3818, 7
  %v3824 = vsel %vm111, %v3822, %v3823
  %v3825 = vsel %vm111, %v3821, %v3822
  %v3826 = vsel %vm111, %v3820, %v3821
  %v3827 = vsel %vm111, %v3819, %v3820
  %v3828 = vsel %vm111, %v3823, %v3819
  %v3829 = vrot.slane %v3814, 1
  %v3830 = vrot.slane %v3815, 1
  %v3831 = vrot.slane %v3816, 1
  %v3832 = vrot.slane %v3817, 1
  %v3833 = vrot.slane %v3818, 1
  %v3834 = vsel %vm122, %v3832, %v3833
  %v3835 = vsel %vm122, %v3831, %v3832
  %v3836 = vsel %vm122, %v3830, %v3831
  %v3837 = vsel %vm122, %v3829, %v3830
  %v3838 = vsel %vm122, %v3833, %v3829
  %v3839 = vpack.c.bf16 %v3827, %v3828
  %v3840 = vpack.c.bf16 %v3815, %v3814
  %v3841 = vpack.c.bf16 %v3836, %v3837
  %v3842 = vpack.c.bf16 %v3825, %v3826
  %v3843 = vpack.c.bf16 %v3817, %v3816
  %v3844 = vpack.c.bf16 %v3834, %v3835
  %v3845 = vpack.c.bf16 %v3824, %v3824
  %v3846 = vpack.c.bf16 %v3818, %v3818
  %v3847 = vpack.c.bf16 %v3838, %v3838
  %v3848 = vld [vmem:[%s22] sm:$0xf]
  %v3849 = vld [vmem:[%s22 + $0x4] sm:$0xf]
  %v3850 = vld [vmem:[%s22 + $0x8] sm:$0xf]
  %v3851 = vld [vmem:[%s22 + $0xc] sm:$0xf]
  %v3852 = vld [vmem:[%s22 + $0x10] sm:$0xf]
  %v3853 = vld [vmem:[%s22 + $0x14] sm:$0xf]
  %v3854 = vld [vmem:[%s22 + $0x18] sm:$0xf]
  %v3855 = vld [vmem:[%s22 + $0x1c] sm:$0xf]
  %v3856 = vld [vmem:[%s22 + $0x20] sm:$0xf]
  %v3857 = vld [vmem:[%s22 + $0x24] sm:$0xf]
  %v3858 = vld [vmem:[%s22 + $0x28] sm:$0xf]
  %v3859 = vld [vmem:[%s22 + $0x2c] sm:$0xf]
  %v3860 = vld [vmem:[%s22 + $0x30] sm:$0xf]
  %v3861 = vld [vmem:[%s22 + $0x34] sm:$0xf]
  %v3862 = vld [vmem:[%s22 + $0x38] sm:$0xf]
  %v3863 = vld [vmem:[%s22 + $0x3c] sm:$0xf]
  %v3864 = vld [vmem:[%s22 + $0x40] sm:$0xf]
  %v3865 = vld [vmem:[%s22 + $0x44] sm:$0xf]
  %v3866 = vld [vmem:[%s22 + $0x48] sm:$0xf]
  %v3867 = vld [vmem:[%s22 + $0x4c] sm:$0xf]
  %v3868 = vld [vmem:[%s22 + $0x50] sm:$0xf]
  %v3869 = vld [vmem:[%s22 + $0x54] sm:$0xf]
  %v3870 = vld [vmem:[%s22 + $0x58] sm:$0xf]
  %v3871 = vld [vmem:[%s22 + $0x5c] sm:$0xf]
  %v3872 = vld [vmem:[%s22 + $0x60] sm:$0xf]
  %v3873 = vld [vmem:[%s22 + $0x64] sm:$0xf]
  %v3874 = vld [vmem:[%s22 + $0x68] sm:$0xf]
  %v3875 = vld [vmem:[%s22 + $0x6c] sm:$0xf]
  %v3876 = vld [vmem:[%s22 + $0x70] sm:$0xf]
  %v3877 = vld [vmem:[%s22 + $0x74] sm:$0xf]
  %v3878 = vld [vmem:[%s22 + $0x78] sm:$0xf]
  %v3879 = vld [vmem:[%s22 + $0x7c] sm:$0xf]
  %v3880 = vld [vmem:[%s22 + $0x80] sm:$0xf]
  %v3881 = vld [vmem:[%s22 + $0x84] sm:$0xf]
  %v3882 = vld [vmem:[%s22 + $0x88] sm:$0xf]
  %v3883 = vld [vmem:[%s22 + $0x8c] sm:$0xf]
  %v3884 = vld [vmem:[%s22 + $0x90] sm:$0xf]
  %v3885 = vld [vmem:[%s22 + $0x94] sm:$0xf]
  %v3886 = vld [vmem:[%s22 + $0x98] sm:$0xf]
  %v3887 = vld [vmem:[%s22 + $0x9c] sm:$0xf]
  %v3888 = vld [vmem:[%s22 + $0xa0] sm:$0xf]
  %v3889 = vld [vmem:[%s22 + $0xa4] sm:$0xf]
  %v3890 = vld [vmem:[%s22 + $0xa8] sm:$0xf]
  %v3891 = vld [vmem:[%s22 + $0xac] sm:$0xf]
  %v3892 = vld [vmem:[%s22 + $0xb0] sm:$0xf]
  %v3893 = vld [vmem:[%s22 + $0xb4] sm:$0xf]
  %v3894 = vld [vmem:[%s22 + $0xb8] sm:$0xf]
  %v3895 = vld [vmem:[%s22 + $0xbc] sm:$0xf]
  %v3896 = vld [vmem:[%s23] sm:$0x1]
  %v3898 = vperm.slane %v3896, 0
  %v3948 = vunpack.c.l.b16 %v3848
  %v3949 = vunpack.c.l.b16 %v3849
  %v3950 = vunpack.c.l.b16 %v3850
  %v3951 = vunpack.c.l.b16 %v3851
  %v3952 = vunpack.c.l.b16 %v3852
  %v3953 = vunpack.c.l.b16 %v3853
  %v3954 = vunpack.c.l.b16 %v3854
  %v3955 = vunpack.c.l.b16 %v3855
  %v3956 = vunpack.c.l.b16 %v3856
  %v3957 = vunpack.c.l.b16 %v3857
  %v3958 = vunpack.c.l.b16 %v3858
  %v3959 = vunpack.c.l.b16 %v3859
  %v3960 = vunpack.c.l.b16 %v3860
  %v3961 = vunpack.c.l.b16 %v3861
  %v3962 = vunpack.c.l.b16 %v3862
  %v3963 = vunpack.c.l.b16 %v3863
  %v3964 = vunpack.c.l.b16 %v3864
  %v3965 = vunpack.c.l.b16 %v3865
  %v3966 = vunpack.c.l.b16 %v3866
  %v3967 = vunpack.c.l.b16 %v3867
  %v3968 = vunpack.c.l.b16 %v3868
  %v3969 = vunpack.c.l.b16 %v3869
  %v3970 = vunpack.c.l.b16 %v3870
  %v3971 = vunpack.c.l.b16 %v3871
  %v3972 = vunpack.c.l.b16 %v3872
  %v3973 = vunpack.c.l.b16 %v3873
  %v3974 = vunpack.c.l.b16 %v3874
  %v3975 = vunpack.c.l.b16 %v3875
  %v3976 = vunpack.c.l.b16 %v3876
  %v3977 = vunpack.c.l.b16 %v3877
  %v3978 = vunpack.c.l.b16 %v3878
  %v3979 = vunpack.c.l.b16 %v3879
  %v3980 = vunpack.c.l.b16 %v3880
  %v3981 = vunpack.c.l.b16 %v3881
  %v3982 = vunpack.c.l.b16 %v3882
  %v3983 = vunpack.c.l.b16 %v3883
  %v3984 = vunpack.c.l.b16 %v3884
  %v3985 = vunpack.c.l.b16 %v3885
  %v3986 = vunpack.c.l.b16 %v3886
  %v3987 = vunpack.c.l.b16 %v3887
  %v3988 = vunpack.c.l.b16 %v3888
  %v3989 = vunpack.c.l.b16 %v3889
  %v3990 = vunpack.c.l.b16 %v3890
  %v3991 = vunpack.c.l.b16 %v3891
  %v3992 = vunpack.c.l.b16 %v3892
  %v3993 = vunpack.c.l.b16 %v3893
  %v3994 = vunpack.c.l.b16 %v3894
  %v3995 = vunpack.c.l.b16 %v3895
  %v3996 = vpack.c.b16 %v3949, %v3948
  %v3997 = vpack.c.b16 %v3951, %v3950
  %v3998 = vpack.c.b16 %v3953, %v3952
  %v3999 = vpack.c.b16 %v3955, %v3954
  %v4000 = vpack.c.b16 %v3957, %v3956
  %v4001 = vpack.c.b16 %v3959, %v3958
  %v4002 = vpack.c.b16 %v3961, %v3960
  %v4003 = vpack.c.b16 %v3963, %v3962
  %v4004 = vpack.c.b16 %v3965, %v3964
  %v4005 = vpack.c.b16 %v3967, %v3966
  %v4006 = vpack.c.b16 %v3969, %v3968
  %v4007 = vpack.c.b16 %v3971, %v3970
  %v4008 = vpack.c.b16 %v3973, %v3972
  %v4009 = vpack.c.b16 %v3975, %v3974
  %v4010 = vpack.c.b16 %v3977, %v3976
  %v4011 = vpack.c.b16 %v3979, %v3978
  %v4012 = vpack.c.b16 %v3981, %v3980
  %v4013 = vpack.c.b16 %v3983, %v3982
  %v4014 = vpack.c.b16 %v3985, %v3984
  %v4015 = vpack.c.b16 %v3987, %v3986
  %v4016 = vpack.c.b16 %v3989, %v3988
  %v4017 = vpack.c.b16 %v3991, %v3990
  %v4018 = vpack.c.b16 %v3993, %v3992
  %v4019 = vpack.c.b16 %v3995, %v3994
  %4044 = vmatpush.bf16.msra.mxu0 %v4003
  %4045 = vmatpush.bf16.msra.mxu0 %v4002
  %4046 = vmatpush.bf16.msra.mxu0 %v4001
  %4047 = vmatpush.bf16.msra.mxu0 %v4000
  %4048 = vmatpush.bf16.msra.mxu0 %v3999
  %4049 = vmatpush.bf16.msra.mxu0 %v3998
  %4050 = vmatpush.bf16.msra.mxu0 %v3997
  %4051 = vmatpush.bf16.msra.mxu0 %v3996
  %4052 = vmatmul.bf16.gmra.mxu0 %v3839
  %v4053 = vpop.f32.mrf.mxu0
  %v4054 = vadd.f32 %v3898, %v4053
  %v4055 = vpop.f32.mrf.mxu0
  %v4056 = vadd.f32 %v3898, %v4055
  %4057 = vmatmul.bf16.gmra.mxu0 %v3842
  %v4058 = vpop.f32.mrf.mxu0
  %v4059 = vadd.f32 %v3898, %v4058
  %v4060 = vpop.f32.mrf.mxu0
  %v4061 = vadd.f32 %v3898, %v4060
  %4062 = vmatmul.bf16.gmra.mxu0 %v3845
  %v4063 = vpop.f32.mrf.mxu0
  %v4064 = vadd.f32 %v3898, %v4063
  %v4065 = vpop.f32.mrf.mxu0
  %4066 = vdwg.mxu0
  %4067 = vmatpush.bf16.msra.mxu0 %v4011
  %4068 = vmatpush.bf16.msra.mxu0 %v4010
  %4069 = vmatpush.bf16.msra.mxu0 %v4009
  %4070 = vmatpush.bf16.msra.mxu0 %v4008
  %4071 = vmatpush.bf16.msra.mxu0 %v4007
  %4072 = vmatpush.bf16.msra.mxu0 %v4006
  %4073 = vmatpush.bf16.msra.mxu0 %v4005
  %4074 = vmatpush.bf16.msra.mxu0 %v4004
  %4075 = vmatmul.bf16.gmra.mxu0 %v3840
  %v4076 = vpop.f32.mrf.mxu0
  %v4077 = vadd.f32 %v4054, %v4076
  %v4078 = vpop.f32.mrf.mxu0
  %v4079 = vadd.f32 %v4056, %v4078
  %4080 = vmatmul.bf16.gmra.mxu0 %v3843
  %v4081 = vpop.f32.mrf.mxu0
  %v4082 = vadd.f32 %v4059, %v4081
  %v4083 = vpop.f32.mrf.mxu0
  %v4084 = vadd.f32 %v4061, %v4083
  %4085 = vmatmul.bf16.gmra.mxu0 %v3846
  %v4086 = vpop.f32.mrf.mxu0
  %v4087 = vadd.f32 %v4064, %v4086
  %v4088 = vpop.f32.mrf.mxu0
  %4089 = vdwg.mxu0
  %4090 = vmatpush.bf16.msra.mxu0 %v4019
  %4091 = vmatpush.bf16.msra.mxu0 %v4018
  %4092 = vmatpush.bf16.msra.mxu0 %v4017
  %4093 = vmatpush.bf16.msra.mxu0 %v4016
  %4094 = vmatpush.bf16.msra.mxu0 %v4015
  %4095 = vmatpush.bf16.msra.mxu0 %v4014
  %4096 = vmatpush.bf16.msra.mxu0 %v4013
  %4097 = vmatpush.bf16.msra.mxu0 %v4012
  %4098 = vmatmul.bf16.gmra.mxu0 %v3841
  %v4099 = vpop.f32.mrf.mxu0
  %v4100 = vadd.f32 %v4077, %v4099
  %v4101 = vpop.f32.mrf.mxu0
  %v4102 = vadd.f32 %v4079, %v4101
  %4103 = vmatmul.bf16.gmra.mxu0 %v3844
  %v4104 = vpop.f32.mrf.mxu0
  %v4105 = vadd.f32 %v4082, %v4104
  %v4106 = vpop.f32.mrf.mxu0
  %v4107 = vadd.f32 %v4084, %v4106
  %4108 = vmatmul.bf16.gmra.mxu0 %v3847
  %v4109 = vpop.f32.mrf.mxu0
  %v4110 = vadd.f32 %v4087, %v4109
  %v4111 = vpop.f32.mrf.mxu0
  %4112 = vdwg.mxu0
  %vm4113 = vcmask 15362
  %4114 = vst.msk [vmem:[%s24 - $0x2] sm:$0xfc] %vm4113, %v4100
  %vm4115 = vcmask 15360
  %4116 = vst.msk [vmem:[%s24 + $0x6] sm:$0xff] %vm4115, %v4102
  %vm4117 = vcmask 9216
  %4118 = vst.msk [vmem:[%s24 + $0xe] sm:$0x3] %vm4117, %v4105
  %s4119 = scalar_lea.vmem %s24, 16
  %vm4120 = vcmask 15366
  %4121 = vst.msk [vmem:[%s4119 - $0x6] sm:$0xc0] %vm4120, %v4105
  %4122 = vst.msk [vmem:[%s4119 + $0x2] sm:$0xff] %vm4115, %v4107
  %vm4123 = vcmask 13312
  %4124 = vst.msk [vmem:[%s4119 + $0xa] sm:$0x3f] %vm4123, %v4110
  // Predicated region
  $region98: #{conv_decoder_forward.1} parent=0 // pred_check
    _
  $region99: #{conv_decoder_forward.1} parent=0 // pred_check_branch
    %4126 = sbr.rel (0) target = $region101
  $region100: #{conv_decoder_forward.1} parent=0 // pred_region
    _
  $region101: #{conv_decoder_forward.1} parent=0 // pred_fallthru
    _
  // Predicated region
  $region102: #{conv_decoder_forward.1} parent=0 // pred_check
    _
  $region103: #{conv_decoder_forward.1} parent=0 // pred_check_branch
    %4128 = sbr.rel (0) target = $region105
  $region104: #{conv_decoder_forward.1} parent=0 // pred_region
    _
  $region105: #{conv_decoder_forward.1} parent=0 // pred_fallthru
    _

</llo_original>
